<compile_context>
chip_gen: v7x
topology: tpu7x:2x2x1
jax: 0.10.0
libtpu: 0.0.40
codegen_flags: <defaults>
</compile_context>

<pallas_src>
import functools

import jax
import jax.numpy as jnp
import numpy as np
from jax import lax
from jax.experimental import pallas as pl
from jax.experimental.pallas import tpu as pltpu

EPS = 1e-5


def _cparams(n_axes):
    return pltpu.CompilerParams(
        dimension_semantics=("parallel",) * n_axes,
        vmem_limit_bytes=48 << 20)


# ---------------------------------------------------------------------------
# Kernels (all channels-major: blocks are (1, C, spatial_tile))
# ---------------------------------------------------------------------------
def _partial_stats_cm(y_f32):
    """(C, S) tile -> per-channel single-pass (sum, sum_sq), shape (C, 2)."""
    s = jnp.sum(y_f32, axis=1, keepdims=True)
    sq = jnp.sum(y_f32 * y_f32, axis=1, keepdims=True)
    return jnp.concatenate([s, sq], axis=1)


def conv1x1_cm_stats_kernel(x_ref, w_ref, t_ref, stats_ref):
    """t = w1 @ x (bf16 MXU operands, f32 acc); emit bf16 tile + BN partials."""
    t = jnp.dot(w_ref[...], x_ref[0].astype(jnp.bfloat16),
                preferred_element_type=jnp.float32)            # (width, TS)
    tb = t.astype(t_ref.dtype)
    t_ref[...] = tb.reshape(t_ref.shape)
    stats_ref[...] = _partial_stats_cm(
        tb.astype(jnp.float32)).reshape(stats_ref.shape)


def bn_relu_conv1x1_cm_stats_kernel(t_ref, scale_ref, shift_ref, w_ref,
                                    out_ref, stats_ref):
    """out = w3 @ relu(t*scale+shift); emit bf16 tile + BN partials."""
    a = jnp.maximum(t_ref[0].astype(jnp.float32) * scale_ref[...]
                    + shift_ref[...], 0.0)                     # (width, TS)
    y = jnp.dot(w_ref[...], a.astype(jnp.bfloat16),
                preferred_element_type=jnp.float32)            # (Cout, TS)
    yb = y.astype(out_ref.dtype)
    out_ref[...] = yb.reshape(out_ref.shape)
    stats_ref[...] = _partial_stats_cm(
        yb.astype(jnp.float32)).reshape(stats_ref.shape)


def bn_relu_conv3x3_cm_stats_kernel(H, W, Cpad, t_ref, scale_ref, shift_ref,
                                    w_ref, out_ref, stats_ref):
    """3x3 conv (stride 1, pad 1) of relu(bn(t)) for one image.

    Channels-major in/out; the im2col slab is built channels-last in bf16 with
    the channel axis zero-padded (in VMEM only) to Cpad % 128 == 0 so the
    lane-axis concat of the three W-shifts is vreg-aligned and K = 3*Cpad is a
    multiple of 128.  Only 3 big-K matmuls (one per ky).
    """
    C = t_ref.shape[1]
    HW = H * W

    a_cm = jnp.maximum(t_ref[0].astype(jnp.float32) * scale_ref[...]
                       + shift_ref[...], 0.0)                  # (C, HW) f32
    if Cpad > C:
        a_cm = jnp.concatenate(
            [a_cm, jnp.zeros((Cpad - C, HW), jnp.float32)], axis=0)

    # In-VMEM f32 transpose to channels-last, then bf16 im2col slab.
    a = a_cm.T.astype(jnp.bfloat16).reshape(H, W, Cpad)        # (H, W, Cpad)
    zcol = jnp.zeros((H, 1, Cpad), jnp.bfloat16)
    aw = jnp.concatenate([zcol, a, zcol], axis=1)              # (H, W+2, Cpad)
    cat = jnp.concatenate([aw[:, 0:W], aw[:, 1:W + 1], aw[:, 2:W + 2]],
                          axis=-1)                             # (H, W, 3*Cpad)
    zrow = jnp.zeros((1, W, 3 * Cpad), jnp.bfloat16)
    catp = jnp.concatenate([zrow, cat, zrow], axis=0)          # (H+2, W, 3*Cpad)

    # acc seeded by ky = 0 (no zero-fill + add).
    acc = jnp.dot(catp[0:H].reshape(HW, 3 * Cpad), w_ref[0],
                  preferred_element_type=jnp.float32)          # (HW, Cpad)
    for ky in (1, 2):
        acc = acc + jnp.dot(catp[ky:ky + H].reshape(HW, 3 * Cpad), w_ref[ky],
                            preferred_element_type=jnp.float32)

    y_cm = acc.T[:C]                                           # drop co padding
    yb = y_cm.astype(out_ref.dtype)
    out_ref[...] = yb.reshape(out_ref.shape)
    stats_ref[...] = _partial_stats_cm(
        yb.astype(jnp.float32)).reshape(stats_ref.shape)


def bn_add_relu_cm_kernel(t_ref, x_ref, scale_ref, shift_ref, out_ref):
    """out = relu(t*scale + shift + identity); NCHW-native, no layout ops."""
    y = t_ref[0].astype(jnp.float32) * scale_ref[...] + shift_ref[...]
    out_ref[...] = jnp.maximum(y + x_ref[0], 0.0).reshape(out_ref.shape)


# ---------------------------------------------------------------------------
# Wrapper
# ---------------------------------------------------------------------------
def _divisors_desc(n):
    small, large = [], []
    d = 1
    while d * d <= n:
        if n % d == 0:
            small.append(d)
            if d * d != n:
                large.append(n // d)
        d += 1
    return large + small[::-1]


def _spatial_tile(hw, per_col_bytes, budget_bytes=12 << 20):
    """Largest multiple-of-128 divisor of hw whose double-buffered block set
    fits the byte budget, preferring >= 2 grid steps; falls back to hw."""
    cap = max(128, budget_bytes // max(2 * per_col_bytes, 1))
    best = None
    for d in _divisors_desc(hw):
        if d % 128 != 0 or d > cap:
            continue
        if hw // d >= 2:
            return d
        if best is None:
            best = d
    return best if best is not None else hw


def _affine_from_stats(stats, gamma, beta, count):
    """Fold training-mode BN (biased var) into per-channel (scale, shift).

    TODO(synk): single-pass var = E[x^2] - mean^2 can lose precision when
    |mean| >> std; clamped to >= 0 so it never NaNs.
    """
    s = jnp.sum(stats.reshape(-1, stats.shape[-2], 2), axis=0)   # (C, 2)
    mean = s[:, 0] / count
    var = jnp.maximum(s[:, 1] / count - mean * mean, 0.0)
    scale = gamma * lax.rsqrt(var + EPS)
    shift = beta - mean * scale
    return (scale.reshape(-1, 1).astype(jnp.float32),
            shift.reshape(-1, 1).astype(jnp.float32))


@jax.jit
def bottleneck_pallas(x_nchw, params):
    N, Cin, H, W = x_nchw.shape
    HW = H * W
    w1, w2, w3 = params["w1"], params["w2"], params["w3"]
    width = w1.shape[0]
    Cout = w3.shape[0]
    assert Cin == Cout                       # downsample=None => identity add

    bf16 = jnp.bfloat16
    x3 = x_nchw.reshape(N, Cin, HW).astype(jnp.float32)   # free reshape, no transpose
    count = jnp.float32(N * HW)

    # Weights: bf16, channel-major matmul layouts.
    w1_cm = w1[:, :, 0, 0].astype(bf16)                    # (width, Cin)
    w3_cm = w3[:, :, 0, 0].astype(bf16)                    # (Cout, width)
    Cpad = ((width + 127) // 128) * 128                    # stage-2 lane/K padding
    w2p = jnp.zeros((Cpad, Cpad, 3, 3), jnp.float32).at[:width, :width].set(w2)
    w2_t = (jnp.transpose(w2p, (2, 3, 1, 0))               # (ky, kx, ci, co)
            .reshape(3, 3 * Cpad, Cpad).astype(bf16))

    # ---- stage 1: conv1 (1x1, NCHW-native matmul) + BN1 partial stats -------
    ts1 = _spatial_tile(HW, Cin * 4 + width * 2)
    sb1 = HW // ts1
    t1, st1 = pl.pallas_call(
        conv1x1_cm_stats_kernel,
        grid=(N, sb1),
        in_specs=[pl.BlockSpec((1, Cin, ts1), lambda n, s: (n, 0, s)),
                  pl.BlockSpec((width, Cin), lambda n, s: (0, 0))],
        out_specs=(pl.BlockSpec((1, width, ts1), lambda n, s: (n, 0, s)),
                   pl.BlockSpec((1, 1, width, 2), lambda n, s: (n, s, 0, 0))),
        out_shape=(jax.ShapeDtypeStruct((N, width, HW), bf16),
                   jax.ShapeDtypeStruct((N, sb1, width, 2), jnp.float32)),
        compiler_params=_cparams(2),
    )(x3, w1_cm)
    scale1, shift1 = _affine_from_stats(st1, params["g1"], params["b1"], count)

    # ---- stage 2: BN1 + ReLU -> conv2 (3x3) + BN2 partial stats -------------
    t2, st2 = pl.pallas_call(
        functools.partial(bn_relu_conv3x3_cm_stats_kernel, H, W, Cpad),
        grid=(N,),
        in_specs=[pl.BlockSpec((1, width, HW), lambda n: (n, 0, 0)),
                  pl.BlockSpec((width, 1), lambda n: (0, 0)),
                  pl.BlockSpec((width, 1), lambda n: (0, 0)),
                  pl.BlockSpec((3, 3 * Cpad, Cpad), lambda n: (0, 0, 0))],
        out_specs=(pl.BlockSpec((1, width, HW), lambda n: (n, 0, 0)),
                   pl.BlockSpec((1, width, 2), lambda n: (n, 0, 0))),
        out_shape=(jax.ShapeDtypeStruct((N, width, HW), bf16),
                   jax.ShapeDtypeStruct((N, width, 2), jnp.float32)),
        compiler_params=_cparams(1),
    )(t1, scale1, shift1, w2_t)
    scale2, shift2 = _affine_from_stats(st2, params["g2"], params["b2"], count)

    # ---- stage 3: BN2 + ReLU -> conv3 (1x1) + BN3 partial stats -------------
    ts3 = _spatial_tile(HW, width * 2 + Cout * 2)
    sb3 = HW // ts3
    t3, st3 = pl.pallas_call(
        bn_relu_conv1x1_cm_stats_kernel,
        grid=(N, sb3),
        in_specs=[pl.BlockSpec((1, width, ts3), lambda n, s: (n, 0, s)),
                  pl.BlockSpec((width, 1), lambda n, s: (0, 0)),
                  pl.BlockSpec((width, 1), lambda n, s: (0, 0)),
                  pl.BlockSpec((Cout, width), lambda n, s: (0, 0))],
        out_specs=(pl.BlockSpec((1, Cout, ts3), lambda n, s: (n, 0, s)),
                   pl.BlockSpec((1, 1, Cout, 2), lambda n, s: (n, s, 0, 0))),
        out_shape=(jax.ShapeDtypeStruct((N, Cout, HW), bf16),
                   jax.ShapeDtypeStruct((N, sb3, Cout, 2), jnp.float32)),
        compiler_params=_cparams(2),
    )(t2, scale2, shift2, w3_cm)
    scale3, shift3 = _affine_from_stats(st3, params["g3"], params["b3"], count)

    # ---- stage 4: BN3 -> + identity -> ReLU (NCHW-native output) ------------
    ts4 = _spatial_tile(HW, Cout * 2 + Cin * 4 + Cout * 4)
    out3 = pl.pallas_call(
        bn_add_relu_cm_kernel,
        grid=(N, HW // ts4),
        in_specs=[pl.BlockSpec((1, Cout, ts4), lambda n, s: (n, 0, s)),
                  pl.BlockSpec((1, Cin, ts4), lambda n, s: (n, 0, s)),
                  pl.BlockSpec((Cout, 1), lambda n, s: (0, 0)),
                  pl.BlockSpec((Cout, 1), lambda n, s: (0, 0))],
        out_specs=pl.BlockSpec((1, Cout, ts4), lambda n, s: (n, 0, s)),
        out_shape=jax.ShapeDtypeStruct((N, Cout, HW), jnp.float32),
        compiler_params=_cparams(2),
    )(t3, x3, scale3, shift3)

    return out3.reshape(N, Cout, H, W)        # free reshape; already NCHW


# ---------------------------------------------------------------------------
# Params + reference
# ---------------------------------------------------------------------------
def make_params(key, inplanes, planes, base_width=64, groups=1):
    width = int(planes * (base_width / 64.0)) * groups
    out_ch = planes * 4                      # expansion = 4
    ks = jax.random.split(key, 9)
    return dict(
        w1=0.1 * jax.random.normal(ks[0], (width, inplanes, 1, 1), jnp.float32),
        w2=0.1 * jax.random.normal(ks[1], (width, width, 3, 3), jnp.float32),
        w3=0.1 * jax.random.normal(ks[2], (out_ch, width, 1, 1), jnp.float32),
        g1=1.0 + 0.1 * jax.random.normal(ks[3], (width,), jnp.float32),
        b1=0.05 * jax.random.normal(ks[4], (width,), jnp.float32),
        g2=1.0 + 0.1 * jax.random.normal(ks[5], (width,), jnp.float32),
        b2=0.05 * jax.random.normal(ks[6], (width,), jnp.float32),
        g3=1.0 + 0.1 * jax.random.normal(ks[7], (out_ch,), jnp.float32),
        b3=0.05 * jax.random.normal(ks[8], (out_ch,), jnp.float32),
    )


def bottleneck_ref(x, params):
    """Pure-JAX NCHW reference mirroring the PyTorch forward with the kernel's
    mixed-precision policy: bf16 conv operands, f32 accumulation, conv outputs
    rounded to bf16, BatchNorm / ReLU / residual in f32."""
    def conv(t, w, pad):
        y = lax.conv_general_dilated(
            t.astype(jnp.bfloat16), w.astype(jnp.bfloat16),
            window_strides=(1, 1), padding=((pad, pad), (pad, pad)),
            dimension_numbers=("NCHW", "OIHW", "NCHW"),
            preferred_element_type=jnp.float32)
        return y.astype(jnp.bfloat16).astype(jnp.float32)

    def bn(t, g, b):
        mean = jnp.mean(t, axis=(0, 2, 3), keepdims=True)
        var = jnp.mean((t - mean) ** 2, axis=(0, 2, 3), keepdims=True)
        return ((t - mean) * lax.rsqrt(var + EPS) * g.reshape(1, -1, 1, 1)
                + b.reshape(1, -1, 1, 1))

    out = jax.nn.relu(bn(conv(x, params["w1"], 0), params["g1"], params["b1"]))
    out = jax.nn.relu(bn(conv(out, params["w2"], 1), params["g2"], params["b2"]))
    out = bn(conv(out, params["w3"], 0), params["g3"], params["b3"])
    return jax.nn.relu(out + x)


if __name__ == "__main__":
    key = jax.random.PRNGKey(0)
    k_x, k_p = jax.random.split(key)
    # width=4, out=planes*4=16=inplanes (identity path valid)
    N, inplanes, planes, H, W = 2, 16, 4, 16, 16
    x = jax.random.normal(k_x, (N, inplanes, H, W), jnp.float32)
    params = make_params(k_p, inplanes, planes)

    out = jax.block_until_ready(bottleneck_pallas(x, params))
    ref = bottleneck_ref(x, params)
    np.testing.assert_allclose(np.asarray(out), np.asarray(ref),
                               rtol=1e-2, atol=1e-2)
    print("KERNEL_OK")
</pallas_src>

<mosaic_0001>
module attributes {stable_mosaic.version = 11 : i64} {
  func.func @conv1x1_cm_stats_kernel(%arg0: i32, %arg1: i32, %arg2: memref<1x16x128xf32, #tpu.memory_space<vmem>>, %arg3: memref<4x16xbf16, #tpu.memory_space<vmem>>, %arg4: memref<1x4x128xbf16, #tpu.memory_space<vmem>>, %arg5: memref<1x1x4x2xf32, #tpu.memory_space<vmem>>) attributes {dimension_semantics = [#tpu.dimension_semantics<parallel>, #tpu.dimension_semantics<parallel>], iteration_bounds = array<i64: 2, 2>, scalar_prefetch = 0 : i64, scratch_operands = 0 : i64, tpu.core_type = #tpu.core_type<tc>, window_params = [{transform_indices = @transform_0, window_bounds = array<i64: 1, 16, 128>}, {pipeline_mode = #tpu.pipeline_mode<synchronous>, transform_indices = @transform_1, window_bounds = array<i64: 4, 16>}, {transform_indices = @transform_2, window_bounds = array<i64: 1, 4, 128>}, {transform_indices = @transform_3, window_bounds = array<i64: 1, 1, 4, 2>}]} {
    %c0 = arith.constant 0 : index
    %c0_0 = arith.constant 0 : index
    %0 = vector.load %arg3[%c0, %c0_0] : memref<4x16xbf16, #tpu.memory_space<vmem>>, vector<4x16xbf16>
    %c0_1 = arith.constant 0 : index
    %c0_2 = arith.constant 0 : index
    %c0_3 = arith.constant 0 : index
    %1 = vector.load %arg2[%c0_1, %c0_2, %c0_3] : memref<1x16x128xf32, #tpu.memory_space<vmem>>, vector<1x16x128xf32>
    %2 = vector.shape_cast %1 : vector<1x16x128xf32> to vector<16x128xf32>
    %3 = arith.truncf %2 : vector<16x128xf32> to vector<16x128xbf16>
    %cst = arith.constant dense<0.000000e+00> : vector<4x128xf32>
    %4 = tpu.matmul %0, %3, %cst {dimension_numbers = #tpu.dot_dimension_numbers<[1], [0], [0], [1], [0, 0, 1, 1], [], []>} : vector<4x16xbf16>, vector<16x128xbf16>, vector<4x128xf32> -> vector<4x128xf32>
    %5 = arith.truncf %4 : vector<4x128xf32> to vector<4x128xbf16>
    %6 = vector.shape_cast %5 : vector<4x128xbf16> to vector<1x4x128xbf16>
    %c0_4 = arith.constant 0 : index
    %c0_5 = arith.constant 0 : index
    %c0_6 = arith.constant 0 : index
    %7 = vector.load %arg4[%c0_4, %c0_5, %c0_6] : memref<1x4x128xbf16, #tpu.memory_space<vmem>>, vector<1x4x128xbf16>
    tpu.vector_store %arg4[%c0_4, %c0_5, %c0_6], %6 {strides = array<i32>} : memref<1x4x128xbf16, #tpu.memory_space<vmem>>, vector<1x4x128xbf16>,
    %8 = arith.extf %5 : vector<4x128xbf16> to vector<4x128xf32>
    %cst_7 = arith.constant dense<0.000000e+00> : vector<4xf32>
    %9 = vector.multi_reduction <add>, %8, %cst_7 [1] : vector<4x128xf32> to vector<4xf32>
    %10 = vector.shape_cast %9 : vector<4xf32> to vector<4x1xf32>
    %11 = arith.mulf %8, %8 : vector<4x128xf32>
    %cst_8 = arith.constant dense<0.000000e+00> : vector<4xf32>
    %12 = vector.multi_reduction <add>, %11, %cst_8 [1] : vector<4x128xf32> to vector<4xf32>
    %13 = vector.shape_cast %12 : vector<4xf32> to vector<4x1xf32>
    %14 = tpu.concatenate %10, %13 in 1 : vector<4x1xf32>, vector<4x1xf32> -> vector<4x2xf32>
    %15 = vector.shape_cast %14 : vector<4x2xf32> to vector<1x1x4x2xf32>
    %c0_9 = arith.constant 0 : index
    %c0_10 = arith.constant 0 : index
    %c0_11 = arith.constant 0 : index
    %c0_12 = arith.constant 0 : index
    %16 = vector.load %arg5[%c0_9, %c0_10, %c0_11, %c0_12] : memref<1x1x4x2xf32, #tpu.memory_space<vmem>>, vector<1x1x4x2xf32>
    tpu.vector_store %arg5[%c0_9, %c0_10, %c0_11, %c0_12], %15 {strides = array<i32>} : memref<1x1x4x2xf32, #tpu.memory_space<vmem>>, vector<1x1x4x2xf32>,
    return
  }
  func.func @transform_0(%arg0: i32, %arg1: i32) -> (i32, i32, i32) {
    %c0_i32 = arith.constant 0 : i32
    %c0_i32_0 = arith.constant 0 : i32
    return %arg0, %c0_i32, %arg1 : i32, i32, i32
  }
  func.func @transform_1(%arg0: i32, %arg1: i32) -> (i32, i32) {
    %c0_i32 = arith.constant 0 : i32
    %c0_i32_0 = arith.constant 0 : i32
    %c0_i32_1 = arith.constant 0 : i32
    return %c0_i32, %c0_i32_0 : i32, i32
  }
  func.func @transform_2(%arg0: i32, %arg1: i32) -> (i32, i32, i32) {
    %c0_i32 = arith.constant 0 : i32
    %c0_i32_0 = arith.constant 0 : i32
    return %arg0, %c0_i32, %arg1 : i32, i32, i32
  }
  func.func @transform_3(%arg0: i32, %arg1: i32) -> (i32, i32, i32, i32) {
    %c0_i32 = arith.constant 0 : i32
    %c0_i32_0 = arith.constant 0 : i32
    %c0_i32_1 = arith.constant 0 : i32
    return %arg0, %arg1, %c0_i32, %c0_i32_0 : i32, i32, i32, i32
  }
}

module attributes {stable_mosaic.version = 11 : i64} {
  func.func @bn_relu_conv3x3_cm_stats_kernel(%arg0: i32, %arg1: memref<1x4x256xbf16, #tpu.memory_space<vmem>>, %arg2: memref<4x1xf32, #tpu.memory_space<vmem>>, %arg3: memref<4x1xf32, #tpu.memory_space<vmem>>, %arg4: memref<3x384x128xbf16, #tpu.memory_space<vmem>>, %arg5: memref<1x4x256xbf16, #tpu.memory_space<vmem>>, %arg6: memref<1x4x2xf32, #tpu.memory_space<vmem>>) attributes {dimension_semantics = [#tpu.dimension_semantics<parallel>], iteration_bounds = array<i64: 2>, scalar_prefetch = 0 : i64, scratch_operands = 0 : i64, tpu.core_type = #tpu.core_type<tc>, window_params = [{transform_indices = @transform_0, window_bounds = array<i64: 1, 4, 256>}, {pipeline_mode = #tpu.pipeline_mode<synchronous>, transform_indices = @transform_1, window_bounds = array<i64: 4, 1>}, {pipeline_mode = #tpu.pipeline_mode<synchronous>, transform_indices = @transform_2, window_bounds = array<i64: 4, 1>}, {pipeline_mode = #tpu.pipeline_mode<synchronous>, transform_indices = @transform_3, window_bounds = array<i64: 3, 384, 128>}, {transform_indices = @transform_4, window_bounds = array<i64: 1, 4, 256>}, {transform_indices = @transform_5, window_bounds = array<i64: 1, 4, 2>}]} {
    %c0 = arith.constant 0 : index
    %c0_0 = arith.constant 0 : index
    %c0_1 = arith.constant 0 : index
    %0 = vector.load %arg1[%c0, %c0_0, %c0_1] : memref<1x4x256xbf16, #tpu.memory_space<vmem>>, vector<1x4x256xbf16>
    %1 = vector.shape_cast %0 : vector<1x4x256xbf16> to vector<4x256xbf16>
    %2 = arith.extf %1 : vector<4x256xbf16> to vector<4x256xf32>
    %c0_2 = arith.constant 0 : index
    %c0_3 = arith.constant 0 : index
    %3 = vector.load %arg2[%c0_2, %c0_3] : memref<4x1xf32, #tpu.memory_space<vmem>>, vector<4x1xf32>
    %4 = vector.broadcast %3 : vector<4x1xf32> to vector<4x256xf32>
    %5 = arith.mulf %2, %4 : vector<4x256xf32>
    %c0_4 = arith.constant 0 : index
    %c0_5 = arith.constant 0 : index
    %6 = vector.load %arg3[%c0_4, %c0_5] : memref<4x1xf32, #tpu.memory_space<vmem>>, vector<4x1xf32>
    %7 = vector.broadcast %6 : vector<4x1xf32> to vector<4x256xf32>
    %8 = arith.addf %5, %7 : vector<4x256xf32>
    %cst = arith.constant 0.000000e+00 : f32
    %9 = vector.broadcast %cst : f32 to vector<4x256xf32>
    %10 = arith.maximumf %8, %9 : vector<4x256xf32>
    %cst_6 = arith.constant 0.000000e+00 : f32
    %11 = vector.broadcast %cst_6 : f32 to vector<124x256xf32>
    %12 = tpu.concatenate %10, %11 in 0 : vector<4x256xf32>, vector<124x256xf32> -> vector<128x256xf32>
    %13 = tpu.transpose %12, [1, 0] : vector<128x256xf32> -> vector<256x128xf32>
    %14 = arith.truncf %13 : vector<256x128xf32> to vector<256x128xbf16>
    %15 = vector.shape_cast %14 : vector<256x128xbf16> to vector<16x16x128xbf16>
    %cst_7 = arith.constant 0.000000e+00 : bf16
    %16 = vector.broadcast %cst_7 : bf16 to vector<16x1x128xbf16>
    %17 = tpu.concatenate %16, %15, %16 in 1 : vector<16x1x128xbf16>, vector<16x16x128xbf16>, vector<16x1x128xbf16> -> vector<16x18x128xbf16>
    %18 = vector.extract_strided_slice %17 {offsets = [0, 0, 0], sizes = [16, 16, 128], strides = [1, 1, 1]} : vector<16x18x128xbf16> to vector<16x16x128xbf16>
    %19 = vector.extract_strided_slice %17 {offsets = [0, 1, 0], sizes = [16, 16, 128], strides = [1, 1, 1]} : vector<16x18x128xbf16> to vector<16x16x128xbf16>
    %20 = vector.extract_strided_slice %17 {offsets = [0, 2, 0], sizes = [16, 16, 128], strides = [1, 1, 1]} : vector<16x18x128xbf16> to vector<16x16x128xbf16>
    %21 = tpu.concatenate %18, %19, %20 in 2 : vector<16x16x128xbf16>, vector<16x16x128xbf16>, vector<16x16x128xbf16> -> vector<16x16x384xbf16>
    %cst_8 = arith.constant 0.000000e+00 : bf16
    %22 = vector.broadcast %cst_8 : bf16 to vector<1x16x384xbf16>
    %23 = tpu.concatenate %22, %21, %22 in 0 : vector<1x16x384xbf16>, vector<16x16x384xbf16>, vector<1x16x384xbf16> -> vector<18x16x384xbf16>
    %24 = vector.extract_strided_slice %23 {offsets = [0, 0, 0], sizes = [16, 16, 384], strides = [1, 1, 1]} : vector<18x16x384xbf16> to vector<16x16x384xbf16>
    %25 = vector.shape_cast %24 : vector<16x16x384xbf16> to vector<256x384xbf16>
    %c0_9 = arith.constant 0 : index
    %c0_10 = arith.constant 0 : index
    %c0_11 = arith.constant 0 : index
    %26 = vector.load %arg4[%c0_9, %c0_10, %c0_11] : memref<3x384x128xbf16, #tpu.memory_space<vmem>>, vector<1x384x128xbf16>
    %27 = vector.shape_cast %26 : vector<1x384x128xbf16> to vector<384x128xbf16>
    %cst_12 = arith.constant dense<0.000000e+00> : vector<256x128xf32>
    %28 = tpu.matmul %25, %27, %cst_12 {dimension_numbers = #tpu.dot_dimension_numbers<[1], [0], [0], [1], [0, 0, 1, 1], [], []>} : vector<256x384xbf16>, vector<384x128xbf16>, vector<256x128xf32> -> vector<256x128xf32>
    %29 = vector.extract_strided_slice %23 {offsets = [1, 0, 0], sizes = [16, 16, 384], strides = [1, 1, 1]} : vector<18x16x384xbf16> to vector<16x16x384xbf16>
    %30 = vector.shape_cast %29 : vector<16x16x384xbf16> to vector<256x384xbf16>
    %c1 = arith.constant 1 : index
    %c0_13 = arith.constant 0 : index
    %c0_14 = arith.constant 0 : index
    %31 = vector.load %arg4[%c1, %c0_13, %c0_14] : memref<3x384x128xbf16, #tpu.memory_space<vmem>>, vector<1x384x128xbf16>
    %32 = vector.shape_cast %31 : vector<1x384x128xbf16> to vector<384x128xbf16>
    %cst_15 = arith.constant dense<0.000000e+00> : vector<256x128xf32>
    %33 = tpu.matmul %30, %32, %cst_15 {dimension_numbers = #tpu.dot_dimension_numbers<[1], [0], [0], [1], [0, 0, 1, 1], [], []>} : vector<256x384xbf16>, vector<384x128xbf16>, vector<256x128xf32> -> vector<256x128xf32>
    %34 = arith.addf %28, %33 : vector<256x128xf32>
    %35 = vector.extract_strided_slice %23 {offsets = [2, 0, 0], sizes = [16, 16, 384], strides = [1, 1, 1]} : vector<18x16x384xbf16> to vector<16x16x384xbf16>
    %36 = vector.shape_cast %35 : vector<16x16x384xbf16> to vector<256x384xbf16>
    %c2 = arith.constant 2 : index
    %c0_16 = arith.constant 0 : index
    %c0_17 = arith.constant 0 : index
    %37 = vector.load %arg4[%c2, %c0_16, %c0_17] : memref<3x384x128xbf16, #tpu.memory_space<vmem>>, vector<1x384x128xbf16>
    %38 = vector.shape_cast %37 : vector<1x384x128xbf16> to vector<384x128xbf16>
    %cst_18 = arith.constant dense<0.000000e+00> : vector<256x128xf32>
    %39 = tpu.matmul %36, %38, %cst_18 {dimension_numbers = #tpu.dot_dimension_numbers<[1], [0], [0], [1], [0, 0, 1, 1], [], []>} : vector<256x384xbf16>, vector<384x128xbf16>, vector<256x128xf32> -> vector<256x128xf32>
    %40 = arith.addf %34, %39 : vector<256x128xf32>
    %41 = tpu.transpose %40, [1, 0] : vector<256x128xf32> -> vector<128x256xf32>
    %42 = vector.extract_strided_slice %41 {offsets = [0, 0], sizes = [4, 256], strides = [1, 1]} : vector<128x256xf32> to vector<4x256xf32>
    %43 = arith.truncf %42 : vector<4x256xf32> to vector<4x256xbf16>
    %44 = vector.shape_cast %43 : vector<4x256xbf16> to vector<1x4x256xbf16>
    %c0_19 = arith.constant 0 : index
    %c0_20 = arith.constant 0 : index
    %c0_21 = arith.constant 0 : index
    %45 = vector.load %arg5[%c0_19, %c0_20, %c0_21] : memref<1x4x256xbf16, #tpu.memory_space<vmem>>, vector<1x4x256xbf16>
    tpu.vector_store %arg5[%c0_19, %c0_20, %c0_21], %44 {strides = array<i32>} : memref<1x4x256xbf16, #tpu.memory_space<vmem>>, vector<1x4x256xbf16>,
    %46 = arith.extf %43 : vector<4x256xbf16> to vector<4x256xf32>
    %cst_22 = arith.constant dense<0.000000e+00> : vector<4xf32>
    %47 = vector.multi_reduction <add>, %46, %cst_22 [1] : vector<4x256xf32> to vector<4xf32>
    %48 = vector.shape_cast %47 : vector<4xf32> to vector<4x1xf32>
    %49 = arith.mulf %46, %46 : vector<4x256xf32>
    %cst_23 = arith.constant dense<0.000000e+00> : vector<4xf32>
    %50 = vector.multi_reduction <add>, %49, %cst_23 [1] : vector<4x256xf32> to vector<4xf32>
    %51 = vector.shape_cast %50 : vector<4xf32> to vector<4x1xf32>
    %52 = tpu.concatenate %48, %51 in 1 : vector<4x1xf32>, vector<4x1xf32> -> vector<4x2xf32>
    %53 = vector.shape_cast %52 : vector<4x2xf32> to vector<1x4x2xf32>
    %c0_24 = arith.constant 0 : index
    %c0_25 = arith.constant 0 : index
    %c0_26 = arith.constant 0 : index
    %54 = vector.load %arg6[%c0_24, %c0_25, %c0_26] : memref<1x4x2xf32, #tpu.memory_space<vmem>>, vector<1x4x2xf32>
    tpu.vector_store %arg6[%c0_24, %c0_25, %c0_26], %53 {strides = array<i32>} : memref<1x4x2xf32, #tpu.memory_space<vmem>>, vector<1x4x2xf32>,
    return
  }
  func.func @transform_0(%arg0: i32) -> (i32, i32, i32) {
    %c0_i32 = arith.constant 0 : i32
    %c0_i32_0 = arith.constant 0 : i32
    %c0_i32_1 = arith.constant 0 : i32
    return %arg0, %c0_i32, %c0_i32_0 : i32, i32, i32
  }
  func.func @transform_1(%arg0: i32) -> (i32, i32) {
    %c0_i32 = arith.constant 0 : i32
    %c0_i32_0 = arith.constant 0 : i32
    %c0_i32_1 = arith.constant 0 : i32
    return %c0_i32, %c0_i32_0 : i32, i32
  }
  func.func @transform_2(%arg0: i32) -> (i32, i32) {
    %c0_i32 = arith.constant 0 : i32
    %c0_i32_0 = arith.constant 0 : i32
    %c0_i32_1 = arith.constant 0 : i32
    return %c0_i32, %c0_i32_0 : i32, i32
  }
  func.func @transform_3(%arg0: i32) -> (i32, i32, i32) {
    %c0_i32 = arith.constant 0 : i32
    %c0_i32_0 = arith.constant 0 : i32
    %c0_i32_1 = arith.constant 0 : i32
    %c0_i32_2 = arith.constant 0 : i32
    return %c0_i32, %c0_i32_0, %c0_i32_1 : i32, i32, i32
  }
  func.func @transform_4(%arg0: i32) -> (i32, i32, i32) {
    %c0_i32 = arith.constant 0 : i32
    %c0_i32_0 = arith.constant 0 : i32
    %c0_i32_1 = arith.constant 0 : i32
    return %arg0, %c0_i32, %c0_i32_0 : i32, i32, i32
  }
  func.func @transform_5(%arg0: i32) -> (i32, i32, i32) {
    %c0_i32 = arith.constant 0 : i32
    %c0_i32_0 = arith.constant 0 : i32
    %c0_i32_1 = arith.constant 0 : i32
    return %arg0, %c0_i32, %c0_i32_0 : i32, i32, i32
  }
}

module attributes {stable_mosaic.version = 11 : i64} {
  func.func @bn_relu_conv1x1_cm_stats_kernel(%arg0: i32, %arg1: i32, %arg2: memref<1x4x128xbf16, #tpu.memory_space<vmem>>, %arg3: memref<4x1xf32, #tpu.memory_space<vmem>>, %arg4: memref<4x1xf32, #tpu.memory_space<vmem>>, %arg5: memref<16x4xbf16, #tpu.memory_space<vmem>>, %arg6: memref<1x16x128xbf16, #tpu.memory_space<vmem>>, %arg7: memref<1x1x16x2xf32, #tpu.memory_space<vmem>>) attributes {dimension_semantics = [#tpu.dimension_semantics<parallel>, #tpu.dimension_semantics<parallel>], iteration_bounds = array<i64: 2, 2>, scalar_prefetch = 0 : i64, scratch_operands = 0 : i64, tpu.core_type = #tpu.core_type<tc>, window_params = [{transform_indices = @transform_0, window_bounds = array<i64: 1, 4, 128>}, {pipeline_mode = #tpu.pipeline_mode<synchronous>, transform_indices = @transform_1, window_bounds = array<i64: 4, 1>}, {pipeline_mode = #tpu.pipeline_mode<synchronous>, transform_indices = @transform_2, window_bounds = array<i64: 4, 1>}, {pipeline_mode = #tpu.pipeline_mode<synchronous>, transform_indices = @transform_3, window_bounds = array<i64: 16, 4>}, {transform_indices = @transform_4, window_bounds = array<i64: 1, 16, 128>}, {transform_indices = @transform_5, window_bounds = array<i64: 1, 1, 16, 2>}]} {
    %c0 = arith.constant 0 : index
    %c0_0 = arith.constant 0 : index
    %c0_1 = arith.constant 0 : index
    %0 = vector.load %arg2[%c0, %c0_0, %c0_1] : memref<1x4x128xbf16, #tpu.memory_space<vmem>>, vector<1x4x128xbf16>
    %1 = vector.shape_cast %0 : vector<1x4x128xbf16> to vector<4x128xbf16>
    %2 = arith.extf %1 : vector<4x128xbf16> to vector<4x128xf32>
    %c0_2 = arith.constant 0 : index
    %c0_3 = arith.constant 0 : index
    %3 = vector.load %arg3[%c0_2, %c0_3] : memref<4x1xf32, #tpu.memory_space<vmem>>, vector<4x1xf32>
    %4 = vector.broadcast %3 : vector<4x1xf32> to vector<4x128xf32>
    %5 = arith.mulf %2, %4 : vector<4x128xf32>
    %c0_4 = arith.constant 0 : index
    %c0_5 = arith.constant 0 : index
    %6 = vector.load %arg4[%c0_4, %c0_5] : memref<4x1xf32, #tpu.memory_space<vmem>>, vector<4x1xf32>
    %7 = vector.broadcast %6 : vector<4x1xf32> to vector<4x128xf32>
    %8 = arith.addf %5, %7 : vector<4x128xf32>
    %cst = arith.constant 0.000000e+00 : f32
    %9 = vector.broadcast %cst : f32 to vector<4x128xf32>
    %10 = arith.maximumf %8, %9 : vector<4x128xf32>
    %c0_6 = arith.constant 0 : index
    %c0_7 = arith.constant 0 : index
    %11 = vector.load %arg5[%c0_6, %c0_7] : memref<16x4xbf16, #tpu.memory_space<vmem>>, vector<16x4xbf16>
    %12 = arith.truncf %10 : vector<4x128xf32> to vector<4x128xbf16>
    %cst_8 = arith.constant dense<0.000000e+00> : vector<16x128xf32>
    %13 = tpu.matmul %11, %12, %cst_8 {dimension_numbers = #tpu.dot_dimension_numbers<[1], [0], [0], [1], [0, 0, 1, 1], [], []>} : vector<16x4xbf16>, vector<4x128xbf16>, vector<16x128xf32> -> vector<16x128xf32>
    %14 = arith.truncf %13 : vector<16x128xf32> to vector<16x128xbf16>
    %15 = vector.shape_cast %14 : vector<16x128xbf16> to vector<1x16x128xbf16>
    %c0_9 = arith.constant 0 : index
    %c0_10 = arith.constant 0 : index
    %c0_11 = arith.constant 0 : index
    %16 = vector.load %arg6[%c0_9, %c0_10, %c0_11] : memref<1x16x128xbf16, #tpu.memory_space<vmem>>, vector<1x16x128xbf16>
    tpu.vector_store %arg6[%c0_9, %c0_10, %c0_11], %15 {strides = array<i32>} : memref<1x16x128xbf16, #tpu.memory_space<vmem>>, vector<1x16x128xbf16>,
    %17 = arith.extf %14 : vector<16x128xbf16> to vector<16x128xf32>
    %cst_12 = arith.constant dense<0.000000e+00> : vector<16xf32>
    %18 = vector.multi_reduction <add>, %17, %cst_12 [1] : vector<16x128xf32> to vector<16xf32>
    %19 = vector.shape_cast %18 : vector<16xf32> to vector<16x1xf32>
    %20 = arith.mulf %17, %17 : vector<16x128xf32>
    %cst_13 = arith.constant dense<0.000000e+00> : vector<16xf32>
    %21 = vector.multi_reduction <add>, %20, %cst_13 [1] : vector<16x128xf32> to vector<16xf32>
    %22 = vector.shape_cast %21 : vector<16xf32> to vector<16x1xf32>
    %23 = tpu.concatenate %19, %22 in 1 : vector<16x1xf32>, vector<16x1xf32> -> vector<16x2xf32>
    %24 = vector.shape_cast %23 : vector<16x2xf32> to vector<1x1x16x2xf32>
    %c0_14 = arith.constant 0 : index
    %c0_15 = arith.constant 0 : index
    %c0_16 = arith.constant 0 : index
    %c0_17 = arith.constant 0 : index
    %25 = vector.load %arg7[%c0_14, %c0_15, %c0_16, %c0_17] : memref<1x1x16x2xf32, #tpu.memory_space<vmem>>, vector<1x1x16x2xf32>
    tpu.vector_store %arg7[%c0_14, %c0_15, %c0_16, %c0_17], %24 {strides = array<i32>} : memref<1x1x16x2xf32, #tpu.memory_space<vmem>>, vector<1x1x16x2xf32>,
    return
  }
  func.func @transform_0(%arg0: i32, %arg1: i32) -> (i32, i32, i32) {
    %c0_i32 = arith.constant 0 : i32
    %c0_i32_0 = arith.constant 0 : i32
    return %arg0, %c0_i32, %arg1 : i32, i32, i32
  }
  func.func @transform_1(%arg0: i32, %arg1: i32) -> (i32, i32) {
    %c0_i32 = arith.constant 0 : i32
    %c0_i32_0 = arith.constant 0 : i32
    %c0_i32_1 = arith.constant 0 : i32
    return %c0_i32, %c0_i32_0 : i32, i32
  }
  func.func @transform_2(%arg0: i32, %arg1: i32) -> (i32, i32) {
    %c0_i32 = arith.constant 0 : i32
    %c0_i32_0 = arith.constant 0 : i32
    %c0_i32_1 = arith.constant 0 : i32
    return %c0_i32, %c0_i32_0 : i32, i32
  }
  func.func @transform_3(%arg0: i32, %arg1: i32) -> (i32, i32) {
    %c0_i32 = arith.constant 0 : i32
    %c0_i32_0 = arith.constant 0 : i32
    %c0_i32_1 = arith.constant 0 : i32
    return %c0_i32, %c0_i32_0 : i32, i32
  }
  func.func @transform_4(%arg0: i32, %arg1: i32) -> (i32, i32, i32) {
    %c0_i32 = arith.constant 0 : i32
    %c0_i32_0 = arith.constant 0 : i32
    return %arg0, %c0_i32, %arg1 : i32, i32, i32
  }
  func.func @transform_5(%arg0: i32, %arg1: i32) -> (i32, i32, i32, i32) {
    %c0_i32 = arith.constant 0 : i32
    %c0_i32_0 = arith.constant 0 : i32
    %c0_i32_1 = arith.constant 0 : i32
    return %arg0, %arg1, %c0_i32, %c0_i32_0 : i32, i32, i32, i32
  }
}

module attributes {stable_mosaic.version = 11 : i64} {
  func.func @bn_add_relu_cm_kernel(%arg0: i32, %arg1: i32, %arg2: memref<1x16x128xbf16, #tpu.memory_space<vmem>>, %arg3: memref<1x16x128xf32, #tpu.memory_space<vmem>>, %arg4: memref<16x1xf32, #tpu.memory_space<vmem>>, %arg5: memref<16x1xf32, #tpu.memory_space<vmem>>, %arg6: memref<1x16x128xf32, #tpu.memory_space<vmem>>) attributes {dimension_semantics = [#tpu.dimension_semantics<parallel>, #tpu.dimension_semantics<parallel>], iteration_bounds = array<i64: 2, 2>, scalar_prefetch = 0 : i64, scratch_operands = 0 : i64, tpu.core_type = #tpu.core_type<tc>, window_params = [{transform_indices = @transform_0, window_bounds = array<i64: 1, 16, 128>}, {transform_indices = @transform_1, window_bounds = array<i64: 1, 16, 128>}, {pipeline_mode = #tpu.pipeline_mode<synchronous>, transform_indices = @transform_2, window_bounds = array<i64: 16, 1>}, {pipeline_mode = #tpu.pipeline_mode<synchronous>, transform_indices = @transform_3, window_bounds = array<i64: 16, 1>}, {transform_indices = @transform_4, window_bounds = array<i64: 1, 16, 128>}]} {
    %c0 = arith.constant 0 : index
    %c0_0 = arith.constant 0 : index
    %c0_1 = arith.constant 0 : index
    %0 = vector.load %arg2[%c0, %c0_0, %c0_1] : memref<1x16x128xbf16, #tpu.memory_space<vmem>>, vector<1x16x128xbf16>
    %1 = vector.shape_cast %0 : vector<1x16x128xbf16> to vector<16x128xbf16>
    %2 = arith.extf %1 : vector<16x128xbf16> to vector<16x128xf32>
    %c0_2 = arith.constant 0 : index
    %c0_3 = arith.constant 0 : index
    %3 = vector.load %arg4[%c0_2, %c0_3] : memref<16x1xf32, #tpu.memory_space<vmem>>, vector<16x1xf32>
    %4 = vector.broadcast %3 : vector<16x1xf32> to vector<16x128xf32>
    %5 = arith.mulf %2, %4 : vector<16x128xf32>
    %c0_4 = arith.constant 0 : index
    %c0_5 = arith.constant 0 : index
    %6 = vector.load %arg5[%c0_4, %c0_5] : memref<16x1xf32, #tpu.memory_space<vmem>>, vector<16x1xf32>
    %7 = vector.broadcast %6 : vector<16x1xf32> to vector<16x128xf32>
    %8 = arith.addf %5, %7 : vector<16x128xf32>
    %c0_6 = arith.constant 0 : index
    %c0_7 = arith.constant 0 : index
    %c0_8 = arith.constant 0 : index
    %9 = vector.load %arg3[%c0_6, %c0_7, %c0_8] : memref<1x16x128xf32, #tpu.memory_space<vmem>>, vector<1x16x128xf32>
    %10 = vector.shape_cast %9 : vector<1x16x128xf32> to vector<16x128xf32>
    %11 = arith.addf %8, %10 : vector<16x128xf32>
    %cst = arith.constant 0.000000e+00 : f32
    %12 = vector.broadcast %cst : f32 to vector<16x128xf32>
    %13 = arith.maximumf %11, %12 : vector<16x128xf32>
    %14 = vector.shape_cast %13 : vector<16x128xf32> to vector<1x16x128xf32>
    %c0_9 = arith.constant 0 : index
    %c0_10 = arith.constant 0 : index
    %c0_11 = arith.constant 0 : index
    %15 = vector.load %arg6[%c0_9, %c0_10, %c0_11] : memref<1x16x128xf32, #tpu.memory_space<vmem>>, vector<1x16x128xf32>
    tpu.vector_store %arg6[%c0_9, %c0_10, %c0_11], %14 {strides = array<i32>} : memref<1x16x128xf32, #tpu.memory_space<vmem>>, vector<1x16x128xf32>,
    return
  }
  func.func @transform_0(%arg0: i32, %arg1: i32) -> (i32, i32, i32) {
    %c0_i32 = arith.constant 0 : i32
    %c0_i32_0 = arith.constant 0 : i32
    return %arg0, %c0_i32, %arg1 : i32, i32, i32
  }
  func.func @transform_1(%arg0: i32, %arg1: i32) -> (i32, i32, i32) {
    %c0_i32 = arith.constant 0 : i32
    %c0_i32_0 = arith.constant 0 : i32
    return %arg0, %c0_i32, %arg1 : i32, i32, i32
  }
  func.func @transform_2(%arg0: i32, %arg1: i32) -> (i32, i32) {
    %c0_i32 = arith.constant 0 : i32
    %c0_i32_0 = arith.constant 0 : i32
    %c0_i32_1 = arith.constant 0 : i32
    return %c0_i32, %c0_i32_0 : i32, i32
  }
  func.func @transform_3(%arg0: i32, %arg1: i32) -> (i32, i32) {
    %c0_i32 = arith.constant 0 : i32
    %c0_i32_0 = arith.constant 0 : i32
    %c0_i32_1 = arith.constant 0 : i32
    return %c0_i32, %c0_i32_0 : i32, i32
  }
  func.func @transform_4(%arg0: i32, %arg1: i32) -> (i32, i32, i32) {
    %c0_i32 = arith.constant 0 : i32
    %c0_i32_0 = arith.constant 0 : i32
    return %arg0, %c0_i32, %arg1 : i32, i32, i32
  }
}

</mosaic_0001>

<llo_original>
// kernel: bottleneck_pallas.4
$region0: #{bottleneck_pallas.4}
  #allocation0 [shape = 'u32[]', space=smem, size = 0x4, offset = 0x4, fixed_abs, tag = 'smem constant byte address 0x4 - core index']
  #allocation1 [shape = 'u32[144,128]{1,0:T(1,128)}', space=vmem, size = 0x12000, scoped, tag = 'internal scratch']
  %s0 = inlined_call_operand.vmem [shape: f32[2,16,256], index: 0, kind: input, shape index: {}]
  %s1 = inlined_call_operand.vmem [shape: bf16[4,16], index: 1, kind: input, shape index: {}]
  %s2 = inlined_call_operand.vmem [shape: bf16[2,4,256], index: 2, kind: output, shape index: {0}]
  %s3 = inlined_call_operand.vmem [shape: f32[2,2,4,2], index: 3, kind: output, shape index: {1}]
  %4 = xla_tuple %s2, %s3
  %s5 = sld [smem:[#allocation0]]
  $region87: #{bottleneck_pallas.4} parent=0
    _
  %s7 = ssub.s32 1, %s5
  %s8 = scalar_select 0, %s7, %s5
  $region1: #{bottleneck_pallas.4} parent=0
    #allocation2 [shape = 'u8[16384]{0}', space=vmem, size = 0x4000, scoped, tag = 'input window, operand 0']
    loop: start=0, step=1, limit=6
    $region2: #{bottleneck_pallas.4} parent=1 // loop_pre_header
      _
    $region3: #{bottleneck_pallas.4} parent=1 // loop_header
      %s10 = sphi 0, %s14
      %p11 = scmp.ge.s32.totalorder %s10, 6
      %s17 = sphi 0, %s29
      %s18 = sphi 0, %s25
      %s19 = sphi 0, %s17
      %s20 = sphi 0, %s18
      %s21 = sphi 0, %s19
      %s22 = sphi 0, %s20
      %s34 = sphi 0, %s36
      %s37 = sphi 0, %s34
      %s38 = sphi 0, %s37
      %s54 = sphi 0, %s38
      %s58 = sphi 0, %s58
      %s60 = sphi 0, %s58
      %s61 = sphi 0, %s60
      %s75 = sphi 0, %s61
      %s83 = sphi 0, %s85
      %s86 = sphi 0, %s83
      %s87 = sphi 0, %s86
      %s103 = sphi 0, %s87
      %s111 = sphi 0, %s113
      %s114 = sphi 0, %s111
      %s115 = sphi 0, %s114
      %s131 = sphi 0, %s115
    $region4: #{bottleneck_pallas.4} parent=1 // loop_header_branch
      %13 = sbr.rel (%p11) target = $region8
    $region5: #{bottleneck_pallas.4} parent=1 // loop_body
      %s15 = ssub.s32 %s10, 1
      %s16 = ssub.s32 %s10, 2
      %s23 = sadd.s32 1, %s18
      %p24 = scmp.ge.s32.totalorder %s23, 2
      %s25 = scalar_select %p24, 0, %s23
      %s26 = sadd.s32 1, %s17
      %s27 = scalar_select %p24, %s26, %s17
      %p28 = scmp.ge.s32.totalorder %s27, 2
      %s29 = scalar_select %p28, 0, %s27
      %s30 = ssub.s32 %s17, %s29
      %s31 = ssub.s32 %s18, %s25
      %s32 = sor.u32 %s30, %s31
      %p33 = scmp.eq.s32.totalorder %s32, 0
      %s35 = sadd.s32 %s34, 1
      %s36 = scalar_select %p33, %s34, %s35
      %p39 = pneg %p33
      %p40 = scmp.eq.s32.totalorder %s10, 3
      %p41 = por %p39, %p40
      %p42 = scmp.ne.s32.totalorder %s34, %s37
      %p43 = scmp.eq.s32.totalorder %s10, 0
      %p44 = por %p42, %p43
      %p45 = scmp.ne.s32.totalorder %s34, %s37
      %p46 = scmp.eq.s32.totalorder %s15, 3
      %p47 = por %p45, %p46
      %p48 = scmp.ne.s32.totalorder %s37, %s38
      %p49 = scmp.eq.s32.totalorder %s15, 0
      %p50 = por %p48, %p49
      %p51 = scmp.ne.s32.totalorder %s37, %s38
      %p52 = scmp.eq.s32.totalorder %s16, 3
      %p53 = por %p51, %p52
      %p55 = scmp.ne.s32.totalorder %s38, %s54
      %p56 = scmp.eq.s32.totalorder %s16, 0
      %p57 = por %p55, %p56
      %s59 = sadd.s32 %s58, 1
      %p62 = scmp.eq.s32.totalorder %s10, 3
      %p63 = scmp.ne.s32.totalorder %s58, %s60
      %p64 = scmp.eq.s32.totalorder %s10, 0
      %p65 = por %p63, %p64
      %p66 = scmp.ne.s32.totalorder %s58, %s60
      %p67 = scmp.eq.s32.totalorder %s15, 3
      %p68 = por %p66, %p67
      %p69 = scmp.ne.s32.totalorder %s60, %s61
      %p70 = scmp.eq.s32.totalorder %s15, 0
      %p71 = por %p69, %p70
      %p72 = scmp.ne.s32.totalorder %s60, %s61
      %p73 = scmp.eq.s32.totalorder %s16, 3
      %p74 = por %p72, %p73
      %p76 = scmp.ne.s32.totalorder %s61, %s75
      %p77 = scmp.eq.s32.totalorder %s16, 0
      %p78 = por %p76, %p77
      %s79 = ssub.s32 %s17, %s29
      %s80 = ssub.s32 %s18, %s25
      %s81 = sor.u32 %s79, %s80
      %p82 = scmp.eq.s32.totalorder %s81, 0
      %s84 = sadd.s32 %s83, 1
      %s85 = scalar_select %p82, %s83, %s84
      %p88 = pneg %p82
      %p89 = scmp.eq.s32.totalorder %s10, 3
      %p90 = por %p88, %p89
      %p91 = scmp.ne.s32.totalorder %s83, %s86
      %p92 = scmp.eq.s32.totalorder %s10, 0
      %p93 = por %p91, %p92
      %p94 = scmp.ne.s32.totalorder %s83, %s86
      %p95 = scmp.eq.s32.totalorder %s15, 3
      %p96 = por %p94, %p95
      %p97 = scmp.ne.s32.totalorder %s86, %s87
      %p98 = scmp.eq.s32.totalorder %s15, 0
      %p99 = por %p97, %p98
      %p100 = scmp.ne.s32.totalorder %s86, %s87
      %p101 = scmp.eq.s32.totalorder %s16, 3
      %p102 = por %p100, %p101
      %p104 = scmp.ne.s32.totalorder %s87, %s103
      %p105 = scmp.eq.s32.totalorder %s16, 0
      %p106 = por %p104, %p105
      %s107 = ssub.s32 %s17, %s29
      %s108 = ssub.s32 %s18, %s25
      %s109 = sor.u32 %s107, %s108
      %p110 = scmp.eq.s32.totalorder %s109, 0
      %s112 = sadd.s32 %s111, 1
      %s113 = scalar_select %p110, %s111, %s112
      %p116 = pneg %p110
      %p117 = scmp.eq.s32.totalorder %s10, 3
      %p118 = por %p116, %p117
      %p119 = scmp.ne.s32.totalorder %s111, %s114
      %p120 = scmp.eq.s32.totalorder %s10, 0
      %p121 = por %p119, %p120
      %p122 = scmp.ne.s32.totalorder %s111, %s114
      %p123 = scmp.eq.s32.totalorder %s15, 3
      %p124 = por %p122, %p123
      %p125 = scmp.ne.s32.totalorder %s114, %s115
      %p126 = scmp.eq.s32.totalorder %s15, 0
      %p127 = por %p125, %p126
      %p128 = scmp.ne.s32.totalorder %s114, %s115
      %p129 = scmp.eq.s32.totalorder %s16, 3
      %p130 = por %p128, %p129
      %p132 = scmp.ne.s32.totalorder %s115, %s131
      %p133 = scmp.eq.s32.totalorder %s16, 0
      %p134 = por %p132, %p133
      %p135 = scmp.le.s32.totalorder 1, %s10
      %p136 = scmp.lt.s32.totalorder %s10, 5
      %p137 = pnand %p135, %p136
      %p138 = pneg %p137
      // Predicated region
      $region9: #{bottleneck_pallas.4} parent=5 // pred_check
        _
      $region10: #{bottleneck_pallas.4} parent=5 // pred_check_branch
        %140 = sbr.rel (%p137) target = $region12
      $region11: #{bottleneck_pallas.4} parent=5 // pred_region
        %s141 = ssub.s32 %s10, 1
        // Predicated region
        $region13: #{bottleneck_pallas.4} parent=11 // pred_check
          %p142 = pneg %p71
        $region14: #{bottleneck_pallas.4} parent=11 // pred_check_branch
          %144 = sbr.rel (%p142) target = $region16
        $region15: #{bottleneck_pallas.4} parent=11 // pred_region
          _
        $region16: #{bottleneck_pallas.4} parent=11 // pred_fallthru
          _
      $region12: #{bottleneck_pallas.4} parent=5 // pred_fallthru
        _
      %p145 = scmp.lt.s32.totalorder %s10, 4
      // Predicated region
      $region17: #{bottleneck_pallas.4} parent=5 // pred_check
        %p146 = pneg %p145
      $region18: #{bottleneck_pallas.4} parent=5 // pred_check_branch
        %148 = sbr.rel (%p146) target = $region20
      $region19: #{bottleneck_pallas.4} parent=5 // pred_region
        // Predicated region
        $region21: #{bottleneck_pallas.4} parent=19 // pred_check
          %p149 = pneg %p44
        $region22: #{bottleneck_pallas.4} parent=19 // pred_check_branch
          %151 = sbr.rel (%p149) target = $region24
        $region23: #{bottleneck_pallas.4} parent=19 // pred_region
          %s152 = sand.u32 %s34, 1
          %s153 = sand.u32 %s34, 1
          %s154 = smul.addr %s153, 16
          %s155 = scalar_lea.vmem [#allocation2], %s154
          %s156 = smul.addr %s17, 4
          %s157 = sadd.s32 %s18, %s156
          %s158 = smul.addr %s157, 8
          %s159 = scalar_lea.vmem %s0, %s158
          // Predicated region
          $region25: #{bottleneck_pallas.4} parent=23 // pred_check
            _
          $region26: #{bottleneck_pallas.4} parent=23 // pred_check_branch
            %161 = sbr.rel (0) target = $region28
          $region27: #{bottleneck_pallas.4} parent=23 // pred_region
            // Predicated region
            $region29: #{bottleneck_pallas.4} parent=27 // pred_check
              _
            $region30: #{bottleneck_pallas.4} parent=27 // pred_check_branch
              %163 = sbr.rel (0) target = $region32
            $region31: #{bottleneck_pallas.4} parent=27 // pred_region
              // Predicated region
              $region44: #{bottleneck_pallas.4} parent=31 // pred_check
                _
              $region45: #{bottleneck_pallas.4} parent=31 // pred_check_branch
                %180 = sbr.rel (0) target = $region47
              $region46: #{bottleneck_pallas.4} parent=31 // pred_region
                loop: start=0, step=1, limit=1
                $region48: #{bottleneck_pallas.4} parent=46 // loop_pre_header
                  _
                $region49: #{bottleneck_pallas.4} parent=46 // loop_header
                  %s182 = sphi 0, %s186
                  %p183 = scmp.ge.s32.totalorder %s182, 1
                  %s187 = sphi %s159, %s159
                  %s188 = sphi %s155, %s155
                $region50: #{bottleneck_pallas.4} parent=46 // loop_header_branch
                  %185 = sbr.rel (%p183) target = $region54
                $region51: #{bottleneck_pallas.4} parent=46 // loop_body
                  %v189 = vld [vmem:[%s187] sm:$0xff]
                  %190 = vst [vmem:[%s188] sm:$0xff] %v189
                  %v191 = vld [vmem:[%s187 + $0x10] sm:$0xff]
                  %192 = vst [vmem:[%s188 + $0x8] sm:$0xff] %v191
                $region52: #{bottleneck_pallas.4} parent=46 // loop_footer
                  %s186 = sadd.s32 1, %s182
                $region53: #{bottleneck_pallas.4} parent=46 // loop_footer_branch
                  %181 = sbr.rel target = $region49
                $region54: #{bottleneck_pallas.4} parent=46 // loop_exit
                  _
              $region47: #{bottleneck_pallas.4} parent=31 // pred_fallthru
                _
              // Predicated region
              $region55: #{bottleneck_pallas.4} parent=31 // pred_check
                _
              $region56: #{bottleneck_pallas.4} parent=31 // pred_check_branch
                %194 = sbr.rel target = $region58
              $region57: #{bottleneck_pallas.4} parent=31 // pred_region
                _
              $region58: #{bottleneck_pallas.4} parent=31 // pred_fallthru
                _
            $region32: #{bottleneck_pallas.4} parent=27 // pred_fallthru
              _
            // Predicated region
            $region33: #{bottleneck_pallas.4} parent=27 // pred_check
              _
            $region34: #{bottleneck_pallas.4} parent=27 // pred_check_branch
              %165 = sbr.rel target = $region36
            $region35: #{bottleneck_pallas.4} parent=27 // pred_region
              loop: start=0, step=1, limit=1
              $region37: #{bottleneck_pallas.4} parent=35 // loop_pre_header
                _
              $region38: #{bottleneck_pallas.4} parent=35 // loop_header
                %s168 = sphi 0, %s172
                %p169 = scmp.ge.s32.totalorder %s168, 1
                %s173 = sphi %s159, %s159
                %s174 = sphi %s155, %s155
              $region39: #{bottleneck_pallas.4} parent=35 // loop_header_branch
                %171 = sbr.rel (%p169) target = $region43
              $region40: #{bottleneck_pallas.4} parent=35 // loop_body
                %v175 = vld [vmem:[%s173] sm:$0xff]
                %176 = vst [vmem:[%s174] sm:$0xff] %v175
                %v177 = vld [vmem:[%s173 + $0x10] sm:$0xff]
                %178 = vst [vmem:[%s174 + $0x8] sm:$0xff] %v177
              $region41: #{bottleneck_pallas.4} parent=35 // loop_footer
                %s172 = sadd.s32 1, %s168
              $region42: #{bottleneck_pallas.4} parent=35 // loop_footer_branch
                %167 = sbr.rel target = $region38
              $region43: #{bottleneck_pallas.4} parent=35 // loop_exit
                _
            $region36: #{bottleneck_pallas.4} parent=27 // pred_fallthru
              _
          $region28: #{bottleneck_pallas.4} parent=23 // pred_fallthru
            _
          %195 = vnop
        $region24: #{bottleneck_pallas.4} parent=19 // pred_fallthru
          _
      $region20: #{bottleneck_pallas.4} parent=5 // pred_fallthru
        _
      %p196 = scmp.le.s32.totalorder 1, %s10
      %p197 = scmp.lt.s32.totalorder %s10, 5
      %p198 = pnand %p196, %p197
      %p199 = pneg %p198
      // Predicated region
      $region59: #{bottleneck_pallas.4} parent=5 // pred_check
        _
      $region60: #{bottleneck_pallas.4} parent=5 // pred_check_branch
        %201 = sbr.rel (%p198) target = $region62
      $region61: #{bottleneck_pallas.4} parent=5 // pred_region
        %s202 = ssub.s32 %s10, 1
        %s203 = sand.u32 %s37, 1
        %s204 = sand.u32 %s37, 1
        %s205 = smul.addr %s204, 16
        %s206 = scalar_lea.vmem [#allocation2], %s205
        // Predicated region
        $region63: #{bottleneck_pallas.4} parent=61 // pred_check
          %p207 = pneg %p50
        $region64: #{bottleneck_pallas.4} parent=61 // pred_check_branch
          %209 = sbr.rel (%p207) target = $region66
        $region65: #{bottleneck_pallas.4} parent=61 // pred_region
          _
        $region66: #{bottleneck_pallas.4} parent=61 // pred_fallthru
          _
        %s210 = sand.u32 %s37, 1
        %s211 = sand.u32 %s37, 1
        %s212 = smul.addr %s211, 16
        %s213 = scalar_lea.vmem [#allocation2], %s212
        %p214 = pneg %p50
        %p215 = pneg %p47
        %p216 = pneg %p71
        %p217 = pneg %p68
        %p218 = pneg %p99
        %p219 = pneg %p96
        %p220 = scmp.lt.s32.totalorder %s19, 1
        %s221 = scalar_select %p220, %s19, 1
        %p222 = scmp.lt.s32.totalorder %s20, 1
        %s223 = scalar_select %p222, %s20, 1
        %s224 = smul.addr %s221, 2
        %s225 = sadd.s32 %s223, %s224
        %s226 = smul.addr %s225, 2
        %s227 = scalar_lea.vmem %s2, %s226
        %p228 = pneg %p127
        %p229 = pneg %p124
        %p230 = scmp.lt.s32.totalorder %s19, 1
        %s231 = scalar_select %p230, %s19, 1
        %p232 = scmp.lt.s32.totalorder %s20, 1
        %s233 = scalar_select %p232, %s20, 1
        %s234 = smul.addr %s231, 2
        %s235 = sadd.s32 %s233, %s234
        %s236 = smul.addr %s235, 4
        %s237 = scalar_lea.vmem %s3, %s236
        %p238 = scmp.lt.s32.totalorder %s19, 1
        %s239 = scalar_select %p238, %s19, 1
        %p240 = scmp.lt.s32.totalorder %s20, 1
        %s241 = scalar_select %p240, %s20, 1
        %s242 = smul.addr %s239, 2
        %s243 = sadd.s32 %s241, %s242
        %s244 = smul.addr %s243, 2
        %s245 = scalar_lea.vmem %s2, %s244
        %p246 = scmp.lt.s32.totalorder %s19, 1
        %s247 = scalar_select %p246, %s19, 1
        %p248 = scmp.lt.s32.totalorder %s20, 1
        %s249 = scalar_select %p248, %s20, 1
        %s250 = smul.addr %s247, 2
        %s251 = sadd.s32 %s249, %s250
        %s252 = smul.addr %s251, 4
        %s253 = scalar_lea.vmem %s3, %s252
        %v255 = vld [vmem:[%s1] sm:$0x3]
        %v256 = vld [vmem:[%s206] sm:$0xff]
        %v257 = vld [vmem:[%s206 + $0x8] sm:$0xff]
        %v258 = vpack.c.bf16 %v257, %v256
        %vm259 = vcmask 130048
        %v261 = vsel %vm259, %v255, 0
        %263 = vmatprep.subr.bf16.mxu0 0
        %264 = vmatpush1.bf16.msra.mxu0 %v258
        %265 = vmatprep.subr.bf16.mxu0 0
        %266 = vmatpush1.bf16.msra.mxu0 0
        %267 = vmatprep.subr.bf16.mxu0 0
        %268 = vmatpush1.bf16.msra.mxu0 0
        %269 = vmatprep.subr.bf16.mxu0 0
        %270 = vmatpush1.bf16.msra.mxu0 0
        %271 = vmatprep.subr.bf16.mxu0 0
        %272 = vmatpush1.bf16.msra.mxu0 0
        %273 = vmatprep.subr.bf16.mxu0 0
        %274 = vmatpush1.bf16.msra.mxu0 0
        %275 = vmatprep.subr.bf16.mxu0 0
        %276 = vmatpush1.bf16.msra.mxu0 0
        %277 = vmatprep.subr.bf16.mxu0 0
        %278 = vmatpush1.bf16.msra.mxu0 0
        %279 = vmatprep.subr.bf16.mxu0 0
        %280 = vmatpush1.bf16.msra.mxu0 0
        %281 = vmatprep.subr.bf16.mxu0 0
        %282 = vmatpush1.bf16.msra.mxu0 0
        %283 = vmatprep.subr.bf16.mxu0 0
        %284 = vmatpush1.bf16.msra.mxu0 0
        %285 = vmatprep.subr.bf16.mxu0 0
        %286 = vmatpush1.bf16.msra.mxu0 0
        %287 = vmatprep.subr.bf16.mxu0 0
        %288 = vmatpush1.bf16.msra.mxu0 0
        %289 = vmatprep.subr.bf16.mxu0 0
        %290 = vmatpush1.bf16.msra.mxu0 0
        %291 = vmatprep.subr.bf16.mxu0 0
        %292 = vmatpush1.bf16.msra.mxu0 0
        %293 = vmatprep.subr.bf16.mxu0 0
        %294 = vmatpush1.bf16.msra.mxu0 0
        %295 = vmatprep.mubr.bf16.mxu0 0
        %296 = vmatmul.mubr.bf16.gmra.mrb[0].mxu0 %v261
        %v297 = vpop.f32.mrb[0].mxu0
        %v298 = vadd.f32 0.0, %v297
        %v299 = vpop.f32.mrb[0].mxu0
        %v300 = vpop.f32.mrb[0].mxu0
        %v301 = vpop.f32.mrb[0].mxu0
        %302 = vdwg.mxu0
        %v303 = vpack.c.bf16 %v298, %v298
        %304 = vst [vmem:[%s245] sm:$0x3] %v303
        %v305 = vunpack.c.l.bf16 %v303
        %vm306 = vcmask 1043456
        %v307 = vsel %vm306, %v305, 0.0
        %308 = vadd.xlane.f32.xlu0 %v307
        %v309 = vpop.xlane.xlu0 %308
        %v310 = vmul.f32 %v305, %v305
        %v311 = vsel %vm306, %v310, 0.0
        %312 = vadd.xlane.f32.xlu0 %v311
        %v313 = vpop.xlane.xlu0 %312
        %vm314 = vcmask 7168
        %v315 = vsel %vm314, %v309, %v313
        %vm316 = vcmask 11264
        %317 = vst.msk [vmem:[%s253] sm:$0xf] %vm316, %v315
        %p318 = scmp.lt.s32.totalorder %s19, 1
        %s319 = scalar_select %p318, %s19, 1
        %p320 = scmp.lt.s32.totalorder %s20, 1
        %s321 = scalar_select %p320, %s20, 1
        %s322 = smul.addr %s319, 2
        %s323 = sadd.s32 %s321, %s322
        %s324 = smul.addr %s323, 2
        %s325 = scalar_lea.vmem %s2, %s324
        %p326 = scmp.lt.s32.totalorder %s19, 1
        %s327 = scalar_select %p326, %s19, 1
        %p328 = scmp.lt.s32.totalorder %s20, 1
        %s329 = scalar_select %p328, %s20, 1
        %s330 = smul.addr %s327, 2
        %s331 = sadd.s32 %s329, %s330
        %s332 = smul.addr %s331, 4
        %s333 = scalar_lea.vmem %s3, %s332
        // Predicated region
        $region67: #{bottleneck_pallas.4} parent=61 // pred_check
          %p334 = pneg %p96
        $region68: #{bottleneck_pallas.4} parent=61 // pred_check_branch
          %336 = sbr.rel (%p334) target = $region70
        $region69: #{bottleneck_pallas.4} parent=61 // pred_region
          _
        $region70: #{bottleneck_pallas.4} parent=61 // pred_fallthru
          _
        // Predicated region
        $region71: #{bottleneck_pallas.4} parent=61 // pred_check
          %p337 = pneg %p124
        $region72: #{bottleneck_pallas.4} parent=61 // pred_check_branch
          %339 = sbr.rel (%p337) target = $region74
        $region73: #{bottleneck_pallas.4} parent=61 // pred_region
          _
        $region74: #{bottleneck_pallas.4} parent=61 // pred_fallthru
          _
      $region62: #{bottleneck_pallas.4} parent=5 // pred_fallthru
        _
      %p340 = scmp.le.s32.totalorder 2, %s10
      // Predicated region
      $region75: #{bottleneck_pallas.4} parent=5 // pred_check
        %p341 = pneg %p340
      $region76: #{bottleneck_pallas.4} parent=5 // pred_check_branch
        %343 = sbr.rel (%p341) target = $region78
      $region77: #{bottleneck_pallas.4} parent=5 // pred_region
        %s344 = ssub.s32 %s10, 2
        // Predicated region
        $region79: #{bottleneck_pallas.4} parent=77 // pred_check
          %p345 = pneg %p102
        $region80: #{bottleneck_pallas.4} parent=77 // pred_check_branch
          %347 = sbr.rel (%p345) target = $region82
        $region81: #{bottleneck_pallas.4} parent=77 // pred_region
          %p348 = scmp.lt.s32.totalorder %s21, 1
          %s349 = scalar_select %p348, %s21, 1
          %p350 = scmp.lt.s32.totalorder %s22, 1
          %s351 = scalar_select %p350, %s22, 1
          %s352 = smul.addr %s349, 2
          %s353 = sadd.s32 %s351, %s352
          %s354 = smul.addr %s353, 2
          %s355 = scalar_lea.vmem %s2, %s354
        $region82: #{bottleneck_pallas.4} parent=77 // pred_fallthru
          _
        // Predicated region
        $region83: #{bottleneck_pallas.4} parent=77 // pred_check
          %p356 = pneg %p130
        $region84: #{bottleneck_pallas.4} parent=77 // pred_check_branch
          %358 = sbr.rel (%p356) target = $region86
        $region85: #{bottleneck_pallas.4} parent=77 // pred_region
          %p359 = scmp.lt.s32.totalorder %s21, 1
          %s360 = scalar_select %p359, %s21, 1
          %p361 = scmp.lt.s32.totalorder %s22, 1
          %s362 = scalar_select %p361, %s22, 1
          %s363 = smul.addr %s360, 2
          %s364 = sadd.s32 %s362, %s363
          %s365 = smul.addr %s364, 4
          %s366 = scalar_lea.vmem %s3, %s365
        $region86: #{bottleneck_pallas.4} parent=77 // pred_fallthru
          _
      $region78: #{bottleneck_pallas.4} parent=5 // pred_fallthru
        _
    $region6: #{bottleneck_pallas.4} parent=1 // loop_footer
      %s14 = sadd.s32 1, %s10
    $region7: #{bottleneck_pallas.4} parent=1 // loop_footer_branch
      %9 = sbr.rel target = $region3
    $region8: #{bottleneck_pallas.4} parent=1 // loop_exit
      _

// kernel: bottleneck_pallas.7
$region0: #{bottleneck_pallas.7}
  #allocation0 [shape = 'u32[]', space=smem, size = 0x4, offset = 0x4, fixed_abs, tag = 'smem constant byte address 0x4 - core index']
  #allocation1 [shape = 'u32[144,128]{1,0:T(1,128)}', space=vmem, size = 0x12000, scoped, tag = 'internal scratch']
  %s0 = inlined_call_operand.vmem [shape: bf16[2,16,256], index: 0, kind: input, shape index: {}]
  %s1 = inlined_call_operand.vmem [shape: f32[2,16,256], index: 1, kind: input, shape index: {}]
  %s2 = inlined_call_operand.vmem [shape: f32[16,1], index: 2, kind: input, shape index: {}]
  %s3 = inlined_call_operand.vmem [shape: f32[16,1], index: 3, kind: input, shape index: {}]
  %s4 = inlined_call_operand.vmem [shape: f32[2,16,256], index: 4, kind: output, shape index: {}]
  %s5 = sld [smem:[#allocation0]]
  $region162: #{bottleneck_pallas.7} parent=0
    _
  %s7 = ssub.s32 1, %s5
  %s8 = scalar_select 0, %s7, %s5
  $region1: #{bottleneck_pallas.7} parent=0
    #allocation2 [shape = 'u8[8192]{0}', space=vmem, size = 0x2000, scoped, tag = 'input window, operand 0']
    #allocation3 [shape = 'u8[16384]{0}', space=vmem, size = 0x4000, scoped, tag = 'input window, operand 1']
    #allocation4 [shape = 'u8[16384]{0}', space=vmem, size = 0x4000, scoped, tag = 'output window, operand 0']
    loop: start=0, step=1, limit=6
    $region2: #{bottleneck_pallas.7} parent=1 // loop_pre_header
      _
    $region3: #{bottleneck_pallas.7} parent=1 // loop_header
      %s10 = sphi 0, %s14
      %p11 = scmp.ge.s32.totalorder %s10, 6
      %s17 = sphi 0, %s29
      %s18 = sphi 0, %s25
      %s19 = sphi 0, %s17
      %s20 = sphi 0, %s18
      %s21 = sphi 0, %s19
      %s22 = sphi 0, %s20
      %s34 = sphi 0, %s36
      %s37 = sphi 0, %s34
      %s38 = sphi 0, %s37
      %s54 = sphi 0, %s38
      %s62 = sphi 0, %s64
      %s65 = sphi 0, %s62
      %s66 = sphi 0, %s65
      %s82 = sphi 0, %s66
      %s86 = sphi 0, %s86
      %s88 = sphi 0, %s86
      %s89 = sphi 0, %s88
      %s103 = sphi 0, %s89
      %s107 = sphi 0, %s107
      %s109 = sphi 0, %s107
      %s110 = sphi 0, %s109
      %s124 = sphi 0, %s110
      %s132 = sphi 0, %s134
      %s135 = sphi 0, %s132
      %s136 = sphi 0, %s135
      %s152 = sphi 0, %s136
    $region4: #{bottleneck_pallas.7} parent=1 // loop_header_branch
      %13 = sbr.rel (%p11) target = $region8
    $region5: #{bottleneck_pallas.7} parent=1 // loop_body
      %s15 = ssub.s32 %s10, 1
      %s16 = ssub.s32 %s10, 2
      %s23 = sadd.s32 1, %s18
      %p24 = scmp.ge.s32.totalorder %s23, 2
      %s25 = scalar_select %p24, 0, %s23
      %s26 = sadd.s32 1, %s17
      %s27 = scalar_select %p24, %s26, %s17
      %p28 = scmp.ge.s32.totalorder %s27, 2
      %s29 = scalar_select %p28, 0, %s27
      %s30 = ssub.s32 %s17, %s29
      %s31 = ssub.s32 %s18, %s25
      %s32 = sor.u32 %s30, %s31
      %p33 = scmp.eq.s32.totalorder %s32, 0
      %s35 = sadd.s32 %s34, 1
      %s36 = scalar_select %p33, %s34, %s35
      %p39 = pneg %p33
      %p40 = scmp.eq.s32.totalorder %s10, 3
      %p41 = por %p39, %p40
      %p42 = scmp.ne.s32.totalorder %s34, %s37
      %p43 = scmp.eq.s32.totalorder %s10, 0
      %p44 = por %p42, %p43
      %p45 = scmp.ne.s32.totalorder %s34, %s37
      %p46 = scmp.eq.s32.totalorder %s15, 3
      %p47 = por %p45, %p46
      %p48 = scmp.ne.s32.totalorder %s37, %s38
      %p49 = scmp.eq.s32.totalorder %s15, 0
      %p50 = por %p48, %p49
      %p51 = scmp.ne.s32.totalorder %s37, %s38
      %p52 = scmp.eq.s32.totalorder %s16, 3
      %p53 = por %p51, %p52
      %p55 = scmp.ne.s32.totalorder %s38, %s54
      %p56 = scmp.eq.s32.totalorder %s16, 0
      %p57 = por %p55, %p56
      %s58 = ssub.s32 %s17, %s29
      %s59 = ssub.s32 %s18, %s25
      %s60 = sor.u32 %s58, %s59
      %p61 = scmp.eq.s32.totalorder %s60, 0
      %s63 = sadd.s32 %s62, 1
      %s64 = scalar_select %p61, %s62, %s63
      %p67 = pneg %p61
      %p68 = scmp.eq.s32.totalorder %s10, 3
      %p69 = por %p67, %p68
      %p70 = scmp.ne.s32.totalorder %s62, %s65
      %p71 = scmp.eq.s32.totalorder %s10, 0
      %p72 = por %p70, %p71
      %p73 = scmp.ne.s32.totalorder %s62, %s65
      %p74 = scmp.eq.s32.totalorder %s15, 3
      %p75 = por %p73, %p74
      %p76 = scmp.ne.s32.totalorder %s65, %s66
      %p77 = scmp.eq.s32.totalorder %s15, 0
      %p78 = por %p76, %p77
      %p79 = scmp.ne.s32.totalorder %s65, %s66
      %p80 = scmp.eq.s32.totalorder %s16, 3
      %p81 = por %p79, %p80
      %p83 = scmp.ne.s32.totalorder %s66, %s82
      %p84 = scmp.eq.s32.totalorder %s16, 0
      %p85 = por %p83, %p84
      %s87 = sadd.s32 %s86, 1
      %p90 = scmp.eq.s32.totalorder %s10, 3
      %p91 = scmp.ne.s32.totalorder %s86, %s88
      %p92 = scmp.eq.s32.totalorder %s10, 0
      %p93 = por %p91, %p92
      %p94 = scmp.ne.s32.totalorder %s86, %s88
      %p95 = scmp.eq.s32.totalorder %s15, 3
      %p96 = por %p94, %p95
      %p97 = scmp.ne.s32.totalorder %s88, %s89
      %p98 = scmp.eq.s32.totalorder %s15, 0
      %p99 = por %p97, %p98
      %p100 = scmp.ne.s32.totalorder %s88, %s89
      %p101 = scmp.eq.s32.totalorder %s16, 3
      %p102 = por %p100, %p101
      %p104 = scmp.ne.s32.totalorder %s89, %s103
      %p105 = scmp.eq.s32.totalorder %s16, 0
      %p106 = por %p104, %p105
      %s108 = sadd.s32 %s107, 1
      %p111 = scmp.eq.s32.totalorder %s10, 3
      %p112 = scmp.ne.s32.totalorder %s107, %s109
      %p113 = scmp.eq.s32.totalorder %s10, 0
      %p114 = por %p112, %p113
      %p115 = scmp.ne.s32.totalorder %s107, %s109
      %p116 = scmp.eq.s32.totalorder %s15, 3
      %p117 = por %p115, %p116
      %p118 = scmp.ne.s32.totalorder %s109, %s110
      %p119 = scmp.eq.s32.totalorder %s15, 0
      %p120 = por %p118, %p119
      %p121 = scmp.ne.s32.totalorder %s109, %s110
      %p122 = scmp.eq.s32.totalorder %s16, 3
      %p123 = por %p121, %p122
      %p125 = scmp.ne.s32.totalorder %s110, %s124
      %p126 = scmp.eq.s32.totalorder %s16, 0
      %p127 = por %p125, %p126
      %s128 = ssub.s32 %s17, %s29
      %s129 = ssub.s32 %s18, %s25
      %s130 = sor.u32 %s128, %s129
      %p131 = scmp.eq.s32.totalorder %s130, 0
      %s133 = sadd.s32 %s132, 1
      %s134 = scalar_select %p131, %s132, %s133
      %p137 = pneg %p131
      %p138 = scmp.eq.s32.totalorder %s10, 3
      %p139 = por %p137, %p138
      %p140 = scmp.ne.s32.totalorder %s132, %s135
      %p141 = scmp.eq.s32.totalorder %s10, 0
      %p142 = por %p140, %p141
      %p143 = scmp.ne.s32.totalorder %s132, %s135
      %p144 = scmp.eq.s32.totalorder %s15, 3
      %p145 = por %p143, %p144
      %p146 = scmp.ne.s32.totalorder %s135, %s136
      %p147 = scmp.eq.s32.totalorder %s15, 0
      %p148 = por %p146, %p147
      %p149 = scmp.ne.s32.totalorder %s135, %s136
      %p150 = scmp.eq.s32.totalorder %s16, 3
      %p151 = por %p149, %p150
      %p153 = scmp.ne.s32.totalorder %s136, %s152
      %p154 = scmp.eq.s32.totalorder %s16, 0
      %p155 = por %p153, %p154
      %p156 = scmp.le.s32.totalorder 1, %s10
      %p157 = scmp.lt.s32.totalorder %s10, 5
      %p158 = pnand %p156, %p157
      %p159 = pneg %p158
      // Predicated region
      $region9: #{bottleneck_pallas.7} parent=5 // pred_check
        _
      $region10: #{bottleneck_pallas.7} parent=5 // pred_check_branch
        %161 = sbr.rel (%p158) target = $region12
      $region11: #{bottleneck_pallas.7} parent=5 // pred_region
        %s162 = ssub.s32 %s10, 1
        // Predicated region
        $region13: #{bottleneck_pallas.7} parent=11 // pred_check
          %p163 = pneg %p99
        $region14: #{bottleneck_pallas.7} parent=11 // pred_check_branch
          %165 = sbr.rel (%p163) target = $region16
        $region15: #{bottleneck_pallas.7} parent=11 // pred_region
          _
        $region16: #{bottleneck_pallas.7} parent=11 // pred_fallthru
          _
        // Predicated region
        $region17: #{bottleneck_pallas.7} parent=11 // pred_check
          %p166 = pneg %p120
        $region18: #{bottleneck_pallas.7} parent=11 // pred_check_branch
          %168 = sbr.rel (%p166) target = $region20
        $region19: #{bottleneck_pallas.7} parent=11 // pred_region
          _
        $region20: #{bottleneck_pallas.7} parent=11 // pred_fallthru
          _
      $region12: #{bottleneck_pallas.7} parent=5 // pred_fallthru
        _
      %p169 = scmp.lt.s32.totalorder %s10, 4
      // Predicated region
      $region21: #{bottleneck_pallas.7} parent=5 // pred_check
        %p170 = pneg %p169
      $region22: #{bottleneck_pallas.7} parent=5 // pred_check_branch
        %172 = sbr.rel (%p170) target = $region24
      $region23: #{bottleneck_pallas.7} parent=5 // pred_region
        // Predicated region
        $region25: #{bottleneck_pallas.7} parent=23 // pred_check
          %p173 = pneg %p44
        $region26: #{bottleneck_pallas.7} parent=23 // pred_check_branch
          %175 = sbr.rel (%p173) target = $region28
        $region27: #{bottleneck_pallas.7} parent=23 // pred_region
          %s176 = sand.u32 %s34, 1
          %s177 = sand.u32 %s34, 1
          %s178 = smul.addr %s177, 8
          %s179 = scalar_lea.vmem [#allocation2], %s178
          %s180 = smul.addr %s17, 4
          %s181 = sadd.s32 %s18, %s180
          %s182 = smul.addr %s181, 4
          %s183 = scalar_lea.vmem %s0, %s182
          // Predicated region
          $region29: #{bottleneck_pallas.7} parent=27 // pred_check
            _
          $region30: #{bottleneck_pallas.7} parent=27 // pred_check_branch
            %185 = sbr.rel (0) target = $region32
          $region31: #{bottleneck_pallas.7} parent=27 // pred_region
            // Predicated region
            $region33: #{bottleneck_pallas.7} parent=31 // pred_check
              _
            $region34: #{bottleneck_pallas.7} parent=31 // pred_check_branch
              %187 = sbr.rel target = $region36
            $region35: #{bottleneck_pallas.7} parent=31 // pred_region
              // Predicated region
              $region48: #{bottleneck_pallas.7} parent=35 // pred_check
                _
              $region49: #{bottleneck_pallas.7} parent=35 // pred_check_branch
                %204 = sbr.rel (0) target = $region51
              $region50: #{bottleneck_pallas.7} parent=35 // pred_region
                loop: start=0, step=1, limit=1
                $region52: #{bottleneck_pallas.7} parent=50 // loop_pre_header
                  _
                $region53: #{bottleneck_pallas.7} parent=50 // loop_header
                  %s206 = sphi 0, %s210
                  %p207 = scmp.ge.s32.totalorder %s206, 1
                  %s211 = sphi %s183, %s183
                  %s212 = sphi %s179, %s179
                $region54: #{bottleneck_pallas.7} parent=50 // loop_header_branch
                  %209 = sbr.rel (%p207) target = $region58
                $region55: #{bottleneck_pallas.7} parent=50 // loop_body
                  _
                $region56: #{bottleneck_pallas.7} parent=50 // loop_footer
                  %s210 = sadd.s32 1, %s206
                $region57: #{bottleneck_pallas.7} parent=50 // loop_footer_branch
                  %205 = sbr.rel target = $region53
                $region58: #{bottleneck_pallas.7} parent=50 // loop_exit
                  _
                loop: start=0, step=1, limit=1
                $region59: #{bottleneck_pallas.7} parent=50 // loop_pre_header
                  _
                $region60: #{bottleneck_pallas.7} parent=50 // loop_header
                  %s215 = sphi 0, %s219
                  %p216 = scmp.ge.s32.totalorder %s215, 1
                  %s220 = sphi %s183, %s183
                  %s221 = sphi %s179, %s179
                $region61: #{bottleneck_pallas.7} parent=50 // loop_header_branch
                  %218 = sbr.rel (%p216) target = $region65
                $region62: #{bottleneck_pallas.7} parent=50 // loop_body
                  %v222 = vld [vmem:[%s220] sm:$0xf]
                  %223 = vst [vmem:[%s221] sm:$0xf] %v222
                  %v224 = vld [vmem:[%s220 + $0x8] sm:$0xf]
                  %225 = vst [vmem:[%s221 + $0x4] sm:$0xf] %v224
                $region63: #{bottleneck_pallas.7} parent=50 // loop_footer
                  %s219 = sadd.s32 1, %s215
                $region64: #{bottleneck_pallas.7} parent=50 // loop_footer_branch
                  %214 = sbr.rel target = $region60
                $region65: #{bottleneck_pallas.7} parent=50 // loop_exit
                  _
              $region51: #{bottleneck_pallas.7} parent=35 // pred_fallthru
                _
            $region36: #{bottleneck_pallas.7} parent=31 // pred_fallthru
              _
            // Predicated region
            $region37: #{bottleneck_pallas.7} parent=31 // pred_check
              _
            $region38: #{bottleneck_pallas.7} parent=31 // pred_check_branch
              %189 = sbr.rel (0) target = $region40
            $region39: #{bottleneck_pallas.7} parent=31 // pred_region
              loop: start=0, step=1, limit=1
              $region41: #{bottleneck_pallas.7} parent=39 // loop_pre_header
                _
              $region42: #{bottleneck_pallas.7} parent=39 // loop_header
                %s192 = sphi 0, %s196
                %p193 = scmp.ge.s32.totalorder %s192, 1
                %s197 = sphi %s183, %s183
                %s198 = sphi %s179, %s179
              $region43: #{bottleneck_pallas.7} parent=39 // loop_header_branch
                %195 = sbr.rel (%p193) target = $region47
              $region44: #{bottleneck_pallas.7} parent=39 // loop_body
                %v199 = vld [vmem:[%s197] sm:$0xf]
                %200 = vst [vmem:[%s198] sm:$0xf] %v199
                %v201 = vld [vmem:[%s197 + $0x8] sm:$0xf]
                %202 = vst [vmem:[%s198 + $0x4] sm:$0xf] %v201
              $region45: #{bottleneck_pallas.7} parent=39 // loop_footer
                %s196 = sadd.s32 1, %s192
              $region46: #{bottleneck_pallas.7} parent=39 // loop_footer_branch
                %191 = sbr.rel target = $region42
              $region47: #{bottleneck_pallas.7} parent=39 // loop_exit
                _
            $region40: #{bottleneck_pallas.7} parent=31 // pred_fallthru
              _
          $region32: #{bottleneck_pallas.7} parent=27 // pred_fallthru
            _
          %226 = vnop
        $region28: #{bottleneck_pallas.7} parent=23 // pred_fallthru
          _
        // Predicated region
        $region66: #{bottleneck_pallas.7} parent=23 // pred_check
          %p227 = pneg %p72
        $region67: #{bottleneck_pallas.7} parent=23 // pred_check_branch
          %229 = sbr.rel (%p227) target = $region69
        $region68: #{bottleneck_pallas.7} parent=23 // pred_region
          %s230 = sand.u32 %s62, 1
          %s231 = sand.u32 %s62, 1
          %s232 = smul.addr %s231, 16
          %s233 = scalar_lea.vmem [#allocation3], %s232
          %s234 = smul.addr %s17, 4
          %s235 = sadd.s32 %s18, %s234
          %s236 = smul.addr %s235, 8
          %s237 = scalar_lea.vmem %s1, %s236
          // Predicated region
          $region70: #{bottleneck_pallas.7} parent=68 // pred_check
            _
          $region71: #{bottleneck_pallas.7} parent=68 // pred_check_branch
            %239 = sbr.rel (0) target = $region73
          $region72: #{bottleneck_pallas.7} parent=68 // pred_region
            // Predicated region
            $region74: #{bottleneck_pallas.7} parent=72 // pred_check
              _
            $region75: #{bottleneck_pallas.7} parent=72 // pred_check_branch
              %241 = sbr.rel (0) target = $region77
            $region76: #{bottleneck_pallas.7} parent=72 // pred_region
              // Predicated region
              $region89: #{bottleneck_pallas.7} parent=76 // pred_check
                _
              $region90: #{bottleneck_pallas.7} parent=76 // pred_check_branch
                %258 = sbr.rel (0) target = $region92
              $region91: #{bottleneck_pallas.7} parent=76 // pred_region
                loop: start=0, step=1, limit=1
                $region93: #{bottleneck_pallas.7} parent=91 // loop_pre_header
                  _
                $region94: #{bottleneck_pallas.7} parent=91 // loop_header
                  %s260 = sphi 0, %s264
                  %p261 = scmp.ge.s32.totalorder %s260, 1
                  %s265 = sphi %s237, %s237
                  %s266 = sphi %s233, %s233
                $region95: #{bottleneck_pallas.7} parent=91 // loop_header_branch
                  %263 = sbr.rel (%p261) target = $region99
                $region96: #{bottleneck_pallas.7} parent=91 // loop_body
                  %v267 = vld [vmem:[%s265] sm:$0xff]
                  %268 = vst [vmem:[%s266] sm:$0xff] %v267
                  %v269 = vld [vmem:[%s265 + $0x10] sm:$0xff]
                  %270 = vst [vmem:[%s266 + $0x8] sm:$0xff] %v269
                $region97: #{bottleneck_pallas.7} parent=91 // loop_footer
                  %s264 = sadd.s32 1, %s260
                $region98: #{bottleneck_pallas.7} parent=91 // loop_footer_branch
                  %259 = sbr.rel target = $region94
                $region99: #{bottleneck_pallas.7} parent=91 // loop_exit
                  _
              $region92: #{bottleneck_pallas.7} parent=76 // pred_fallthru
                _
              // Predicated region
              $region100: #{bottleneck_pallas.7} parent=76 // pred_check
                _
              $region101: #{bottleneck_pallas.7} parent=76 // pred_check_branch
                %272 = sbr.rel target = $region103
              $region102: #{bottleneck_pallas.7} parent=76 // pred_region
                _
              $region103: #{bottleneck_pallas.7} parent=76 // pred_fallthru
                _
            $region77: #{bottleneck_pallas.7} parent=72 // pred_fallthru
              _
            // Predicated region
            $region78: #{bottleneck_pallas.7} parent=72 // pred_check
              _
            $region79: #{bottleneck_pallas.7} parent=72 // pred_check_branch
              %243 = sbr.rel target = $region81
            $region80: #{bottleneck_pallas.7} parent=72 // pred_region
              loop: start=0, step=1, limit=1
              $region82: #{bottleneck_pallas.7} parent=80 // loop_pre_header
                _
              $region83: #{bottleneck_pallas.7} parent=80 // loop_header
                %s246 = sphi 0, %s250
                %p247 = scmp.ge.s32.totalorder %s246, 1
                %s251 = sphi %s237, %s237
                %s252 = sphi %s233, %s233
              $region84: #{bottleneck_pallas.7} parent=80 // loop_header_branch
                %249 = sbr.rel (%p247) target = $region88
              $region85: #{bottleneck_pallas.7} parent=80 // loop_body
                %v253 = vld [vmem:[%s251] sm:$0xff]
                %254 = vst [vmem:[%s252] sm:$0xff] %v253
                %v255 = vld [vmem:[%s251 + $0x10] sm:$0xff]
                %256 = vst [vmem:[%s252 + $0x8] sm:$0xff] %v255
              $region86: #{bottleneck_pallas.7} parent=80 // loop_footer
                %s250 = sadd.s32 1, %s246
              $region87: #{bottleneck_pallas.7} parent=80 // loop_footer_branch
                %245 = sbr.rel target = $region83
              $region88: #{bottleneck_pallas.7} parent=80 // loop_exit
                _
            $region81: #{bottleneck_pallas.7} parent=72 // pred_fallthru
              _
          $region73: #{bottleneck_pallas.7} parent=68 // pred_fallthru
            _
          %273 = vnop
        $region69: #{bottleneck_pallas.7} parent=23 // pred_fallthru
          _
      $region24: #{bottleneck_pallas.7} parent=5 // pred_fallthru
        _
      %p274 = scmp.le.s32.totalorder 1, %s10
      %p275 = scmp.lt.s32.totalorder %s10, 5
      %p276 = pnand %p274, %p275
      %p277 = pneg %p276
      // Predicated region
      $region104: #{bottleneck_pallas.7} parent=5 // pred_check
        _
      $region105: #{bottleneck_pallas.7} parent=5 // pred_check_branch
        %279 = sbr.rel (%p276) target = $region107
      $region106: #{bottleneck_pallas.7} parent=5 // pred_region
        %s280 = ssub.s32 %s10, 1
        %s281 = sand.u32 %s37, 1
        %s282 = sand.u32 %s37, 1
        %s283 = smul.addr %s282, 8
        %s284 = scalar_lea.vmem [#allocation2], %s283
        // Predicated region
        $region108: #{bottleneck_pallas.7} parent=106 // pred_check
          %p285 = pneg %p50
        $region109: #{bottleneck_pallas.7} parent=106 // pred_check_branch
          %287 = sbr.rel (%p285) target = $region111
        $region110: #{bottleneck_pallas.7} parent=106 // pred_region
          _
        $region111: #{bottleneck_pallas.7} parent=106 // pred_fallthru
          _
        %s288 = sand.u32 %s65, 1
        %s289 = sand.u32 %s65, 1
        %s290 = smul.addr %s289, 16
        %s291 = scalar_lea.vmem [#allocation3], %s290
        // Predicated region
        $region112: #{bottleneck_pallas.7} parent=106 // pred_check
          %p292 = pneg %p78
        $region113: #{bottleneck_pallas.7} parent=106 // pred_check_branch
          %294 = sbr.rel (%p292) target = $region115
        $region114: #{bottleneck_pallas.7} parent=106 // pred_region
          _
        $region115: #{bottleneck_pallas.7} parent=106 // pred_fallthru
          _
        %s295 = sand.u32 %s37, 1
        %s296 = sand.u32 %s37, 1
        %s297 = smul.addr %s296, 8
        %s298 = scalar_lea.vmem [#allocation2], %s297
        %p299 = pneg %p50
        %p300 = pneg %p47
        %s301 = sand.u32 %s65, 1
        %s302 = sand.u32 %s65, 1
        %s303 = smul.addr %s302, 16
        %s304 = scalar_lea.vmem [#allocation3], %s303
        %p305 = pneg %p78
        %p306 = pneg %p75
        %p307 = pneg %p99
        %p308 = pneg %p96
        %p309 = pneg %p120
        %p310 = pneg %p117
        %p311 = pneg %p148
        %p312 = pneg %p145
        %s313 = sand.u32 %s135, 1
        %s314 = sand.u32 %s135, 1
        %s315 = smul.addr %s314, 16
        %s316 = scalar_lea.vmem [#allocation4], %s315
        %v317 = vld [vmem:[%s284] sm:$0xf]
        %v318 = vld [vmem:[%s284 + $0x4] sm:$0xf]
        %v319 = vunpack.c.l.bf16 %v317
        %v320 = vunpack.c.l.bf16 %v318
        %v321 = vld [vmem:[%s2] sm:$0xff]
        %v322 = vld [vmem:[%s2 + $0x8] sm:$0xff]
        %324 = vset.pattern.permute.xlu0 0
        %325 = vperm.xlu0 %324, %v321
        %v326 = vpop.permute.xlu0 %325
        %329 = vset.pattern.permute.xlu0 0
        %330 = vperm.xlu0 %329, %v322
        %v331 = vpop.permute.xlu0 %330
        %v333 = vmul.f32 %v319, %v326
        %v334 = vmul.f32 %v320, %v331
        %v335 = vld [vmem:[%s3] sm:$0xff]
        %v336 = vld [vmem:[%s3 + $0x8] sm:$0xff]
        %338 = vset.pattern.permute.xlu0 0
        %339 = vperm.xlu0 %338, %v335
        %v340 = vpop.permute.xlu0 %339
        %343 = vset.pattern.permute.xlu0 0
        %344 = vperm.xlu0 %343, %v336
        %v345 = vpop.permute.xlu0 %344
        %v347 = vadd.f32 %v333, %v340
        %v348 = vadd.f32 %v334, %v345
        %v349 = vld [vmem:[%s291] sm:$0xff]
        %v350 = vld [vmem:[%s291 + $0x8] sm:$0xff]
        %v351 = vadd.f32 %v347, %v349
        %v352 = vadd.f32 %v348, %v350
        %v353 = vmax.f32 %v351, 0.0
        %v354 = vmax.f32 %v352, 0.0
        %355 = vst [vmem:[%s316] sm:$0xff] %v353
        %356 = vst [vmem:[%s316 + $0x8] sm:$0xff] %v354
        %s357 = sand.u32 %s135, 1
        %s358 = sand.u32 %s135, 1
        %s359 = smul.addr %s358, 16
        %s360 = scalar_lea.vmem [#allocation4], %s359
        // Predicated region
        $region116: #{bottleneck_pallas.7} parent=106 // pred_check
          %p361 = pneg %p145
        $region117: #{bottleneck_pallas.7} parent=106 // pred_check_branch
          %363 = sbr.rel (%p361) target = $region119
        $region118: #{bottleneck_pallas.7} parent=106 // pred_region
          %s364 = smul.addr %s19, 4
          %s365 = sadd.s32 %s20, %s364
          %s366 = smul.addr %s365, 8
          %s367 = scalar_lea.vmem %s4, %s366
          // Predicated region
          $region120: #{bottleneck_pallas.7} parent=118 // pred_check
            _
          $region121: #{bottleneck_pallas.7} parent=118 // pred_check_branch
            %369 = sbr.rel (0) target = $region123
          $region122: #{bottleneck_pallas.7} parent=118 // pred_region
            // Predicated region
            $region124: #{bottleneck_pallas.7} parent=122 // pred_check
              _
            $region125: #{bottleneck_pallas.7} parent=122 // pred_check_branch
              %371 = sbr.rel (0) target = $region127
            $region126: #{bottleneck_pallas.7} parent=122 // pred_region
              // Predicated region
              $region139: #{bottleneck_pallas.7} parent=126 // pred_check
                _
              $region140: #{bottleneck_pallas.7} parent=126 // pred_check_branch
                %388 = sbr.rel (0) target = $region142
              $region141: #{bottleneck_pallas.7} parent=126 // pred_region
                loop: start=0, step=1, limit=1
                $region143: #{bottleneck_pallas.7} parent=141 // loop_pre_header
                  _
                $region144: #{bottleneck_pallas.7} parent=141 // loop_header
                  %s390 = sphi 0, %s394
                  %p391 = scmp.ge.s32.totalorder %s390, 1
                  %s395 = sphi %s360, %s360
                  %s396 = sphi %s367, %s367
                $region145: #{bottleneck_pallas.7} parent=141 // loop_header_branch
                  %393 = sbr.rel (%p391) target = $region149
                $region146: #{bottleneck_pallas.7} parent=141 // loop_body
                  %v397 = vld [vmem:[%s395] sm:$0xff]
                  %398 = vst [vmem:[%s396] sm:$0xff] %v397
                  %v399 = vld [vmem:[%s395 + $0x8] sm:$0xff]
                  %400 = vst [vmem:[%s396 + $0x10] sm:$0xff] %v399
                $region147: #{bottleneck_pallas.7} parent=141 // loop_footer
                  %s394 = sadd.s32 1, %s390
                $region148: #{bottleneck_pallas.7} parent=141 // loop_footer_branch
                  %389 = sbr.rel target = $region144
                $region149: #{bottleneck_pallas.7} parent=141 // loop_exit
                  _
              $region142: #{bottleneck_pallas.7} parent=126 // pred_fallthru
                _
              // Predicated region
              $region150: #{bottleneck_pallas.7} parent=126 // pred_check
                _
              $region151: #{bottleneck_pallas.7} parent=126 // pred_check_branch
                %402 = sbr.rel target = $region153
              $region152: #{bottleneck_pallas.7} parent=126 // pred_region
                _
              $region153: #{bottleneck_pallas.7} parent=126 // pred_fallthru
                _
            $region127: #{bottleneck_pallas.7} parent=122 // pred_fallthru
              _
            // Predicated region
            $region128: #{bottleneck_pallas.7} parent=122 // pred_check
              _
            $region129: #{bottleneck_pallas.7} parent=122 // pred_check_branch
              %373 = sbr.rel target = $region131
            $region130: #{bottleneck_pallas.7} parent=122 // pred_region
              loop: start=0, step=1, limit=1
              $region132: #{bottleneck_pallas.7} parent=130 // loop_pre_header
                _
              $region133: #{bottleneck_pallas.7} parent=130 // loop_header
                %s376 = sphi 0, %s380
                %p377 = scmp.ge.s32.totalorder %s376, 1
                %s381 = sphi %s360, %s360
                %s382 = sphi %s367, %s367
              $region134: #{bottleneck_pallas.7} parent=130 // loop_header_branch
                %379 = sbr.rel (%p377) target = $region138
              $region135: #{bottleneck_pallas.7} parent=130 // loop_body
                %v383 = vld [vmem:[%s381] sm:$0xff]
                %384 = vst [vmem:[%s382] sm:$0xff] %v383
                %v385 = vld [vmem:[%s381 + $0x8] sm:$0xff]
                %386 = vst [vmem:[%s382 + $0x10] sm:$0xff] %v385
              $region136: #{bottleneck_pallas.7} parent=130 // loop_footer
                %s380 = sadd.s32 1, %s376
              $region137: #{bottleneck_pallas.7} parent=130 // loop_footer_branch
                %375 = sbr.rel target = $region133
              $region138: #{bottleneck_pallas.7} parent=130 // loop_exit
                _
            $region131: #{bottleneck_pallas.7} parent=122 // pred_fallthru
              _
          $region123: #{bottleneck_pallas.7} parent=118 // pred_fallthru
            _
          %403 = vnop
        $region119: #{bottleneck_pallas.7} parent=106 // pred_fallthru
          _
      $region107: #{bottleneck_pallas.7} parent=5 // pred_fallthru
        _
      %p404 = scmp.le.s32.totalorder 2, %s10
      // Predicated region
      $region154: #{bottleneck_pallas.7} parent=5 // pred_check
        %p405 = pneg %p404
      $region155: #{bottleneck_pallas.7} parent=5 // pred_check_branch
        %407 = sbr.rel (%p405) target = $region157
      $region156: #{bottleneck_pallas.7} parent=5 // pred_region
        %s408 = ssub.s32 %s10, 2
        // Predicated region
        $region158: #{bottleneck_pallas.7} parent=156 // pred_check
          %p409 = pneg %p151
        $region159: #{bottleneck_pallas.7} parent=156 // pred_check_branch
          %411 = sbr.rel (%p409) target = $region161
        $region160: #{bottleneck_pallas.7} parent=156 // pred_region
          %s412 = sand.u32 %s136, 1
          %s413 = sand.u32 %s136, 1
          %s414 = smul.addr %s413, 16
          %s415 = scalar_lea.vmem [#allocation4], %s414
        $region161: #{bottleneck_pallas.7} parent=156 // pred_fallthru
          _
      $region157: #{bottleneck_pallas.7} parent=5 // pred_fallthru
        _
    $region6: #{bottleneck_pallas.7} parent=1 // loop_footer
      %s14 = sadd.s32 1, %s10
    $region7: #{bottleneck_pallas.7} parent=1 // loop_footer_branch
      %9 = sbr.rel target = $region3
    $region8: #{bottleneck_pallas.7} parent=1 // loop_exit
      _

// kernel: bottleneck_pallas.6
$region0: #{bottleneck_pallas.6}
  #allocation0 [shape = 'u32[]', space=smem, size = 0x4, offset = 0x4, fixed_abs, tag = 'smem constant byte address 0x4 - core index']
  #allocation1 [shape = 'u32[144,128]{1,0:T(1,128)}', space=vmem, size = 0x12000, scoped, tag = 'internal scratch']
  %s0 = inlined_call_operand.vmem [shape: bf16[2,4,256], index: 0, kind: input, shape index: {}]
  %s1 = inlined_call_operand.vmem [shape: f32[4,1], index: 1, kind: input, shape index: {}]
  %s2 = inlined_call_operand.vmem [shape: f32[4,1], index: 2, kind: input, shape index: {}]
  %s3 = inlined_call_operand.vmem [shape: bf16[16,4], index: 3, kind: input, shape index: {}]
  %s4 = inlined_call_operand.vmem [shape: bf16[2,16,256], index: 4, kind: output, shape index: {0}]
  %s5 = inlined_call_operand.vmem [shape: f32[2,2,16,2], index: 5, kind: output, shape index: {1}]
  %6 = xla_tuple %s4, %s5
  %s7 = sld [smem:[#allocation0]]
  $region94: #{bottleneck_pallas.6} parent=0
    _
  %s9 = ssub.s32 1, %s7
  %s10 = scalar_select 0, %s9, %s7
  $region1: #{bottleneck_pallas.6} parent=0
    #allocation2 [shape = 'u8[8192]{0}', space=vmem, size = 0x2000, scoped, tag = 'output window, operand 0']
    loop: start=0, step=1, limit=6
    $region2: #{bottleneck_pallas.6} parent=1 // loop_pre_header
      _
    $region3: #{bottleneck_pallas.6} parent=1 // loop_header
      %s12 = sphi 0, %s16
      %p13 = scmp.ge.s32.totalorder %s12, 6
      %s19 = sphi 0, %s31
      %s20 = sphi 0, %s27
      %s21 = sphi 0, %s19
      %s22 = sphi 0, %s20
      %s23 = sphi 0, %s21
      %s24 = sphi 0, %s22
      %s36 = sphi 0, %s38
      %s39 = sphi 0, %s36
      %s40 = sphi 0, %s39
      %s56 = sphi 0, %s40
      %s60 = sphi 0, %s60
      %s62 = sphi 0, %s60
      %s63 = sphi 0, %s62
      %s77 = sphi 0, %s63
      %s81 = sphi 0, %s81
      %s83 = sphi 0, %s81
      %s84 = sphi 0, %s83
      %s98 = sphi 0, %s84
      %s102 = sphi 0, %s102
      %s104 = sphi 0, %s102
      %s105 = sphi 0, %s104
      %s119 = sphi 0, %s105
      %s127 = sphi 0, %s129
      %s130 = sphi 0, %s127
      %s131 = sphi 0, %s130
      %s147 = sphi 0, %s131
      %s155 = sphi 0, %s157
      %s158 = sphi 0, %s155
      %s159 = sphi 0, %s158
      %s175 = sphi 0, %s159
    $region4: #{bottleneck_pallas.6} parent=1 // loop_header_branch
      %15 = sbr.rel (%p13) target = $region8
    $region5: #{bottleneck_pallas.6} parent=1 // loop_body
      %s17 = ssub.s32 %s12, 1
      %s18 = ssub.s32 %s12, 2
      %s25 = sadd.s32 1, %s20
      %p26 = scmp.ge.s32.totalorder %s25, 2
      %s27 = scalar_select %p26, 0, %s25
      %s28 = sadd.s32 1, %s19
      %s29 = scalar_select %p26, %s28, %s19
      %p30 = scmp.ge.s32.totalorder %s29, 2
      %s31 = scalar_select %p30, 0, %s29
      %s32 = ssub.s32 %s19, %s31
      %s33 = ssub.s32 %s20, %s27
      %s34 = sor.u32 %s32, %s33
      %p35 = scmp.eq.s32.totalorder %s34, 0
      %s37 = sadd.s32 %s36, 1
      %s38 = scalar_select %p35, %s36, %s37
      %p41 = pneg %p35
      %p42 = scmp.eq.s32.totalorder %s12, 3
      %p43 = por %p41, %p42
      %p44 = scmp.ne.s32.totalorder %s36, %s39
      %p45 = scmp.eq.s32.totalorder %s12, 0
      %p46 = por %p44, %p45
      %p47 = scmp.ne.s32.totalorder %s36, %s39
      %p48 = scmp.eq.s32.totalorder %s17, 3
      %p49 = por %p47, %p48
      %p50 = scmp.ne.s32.totalorder %s39, %s40
      %p51 = scmp.eq.s32.totalorder %s17, 0
      %p52 = por %p50, %p51
      %p53 = scmp.ne.s32.totalorder %s39, %s40
      %p54 = scmp.eq.s32.totalorder %s18, 3
      %p55 = por %p53, %p54
      %p57 = scmp.ne.s32.totalorder %s40, %s56
      %p58 = scmp.eq.s32.totalorder %s18, 0
      %p59 = por %p57, %p58
      %s61 = sadd.s32 %s60, 1
      %p64 = scmp.eq.s32.totalorder %s12, 3
      %p65 = scmp.ne.s32.totalorder %s60, %s62
      %p66 = scmp.eq.s32.totalorder %s12, 0
      %p67 = por %p65, %p66
      %p68 = scmp.ne.s32.totalorder %s60, %s62
      %p69 = scmp.eq.s32.totalorder %s17, 3
      %p70 = por %p68, %p69
      %p71 = scmp.ne.s32.totalorder %s62, %s63
      %p72 = scmp.eq.s32.totalorder %s17, 0
      %p73 = por %p71, %p72
      %p74 = scmp.ne.s32.totalorder %s62, %s63
      %p75 = scmp.eq.s32.totalorder %s18, 3
      %p76 = por %p74, %p75
      %p78 = scmp.ne.s32.totalorder %s63, %s77
      %p79 = scmp.eq.s32.totalorder %s18, 0
      %p80 = por %p78, %p79
      %s82 = sadd.s32 %s81, 1
      %p85 = scmp.eq.s32.totalorder %s12, 3
      %p86 = scmp.ne.s32.totalorder %s81, %s83
      %p87 = scmp.eq.s32.totalorder %s12, 0
      %p88 = por %p86, %p87
      %p89 = scmp.ne.s32.totalorder %s81, %s83
      %p90 = scmp.eq.s32.totalorder %s17, 3
      %p91 = por %p89, %p90
      %p92 = scmp.ne.s32.totalorder %s83, %s84
      %p93 = scmp.eq.s32.totalorder %s17, 0
      %p94 = por %p92, %p93
      %p95 = scmp.ne.s32.totalorder %s83, %s84
      %p96 = scmp.eq.s32.totalorder %s18, 3
      %p97 = por %p95, %p96
      %p99 = scmp.ne.s32.totalorder %s84, %s98
      %p100 = scmp.eq.s32.totalorder %s18, 0
      %p101 = por %p99, %p100
      %s103 = sadd.s32 %s102, 1
      %p106 = scmp.eq.s32.totalorder %s12, 3
      %p107 = scmp.ne.s32.totalorder %s102, %s104
      %p108 = scmp.eq.s32.totalorder %s12, 0
      %p109 = por %p107, %p108
      %p110 = scmp.ne.s32.totalorder %s102, %s104
      %p111 = scmp.eq.s32.totalorder %s17, 3
      %p112 = por %p110, %p111
      %p113 = scmp.ne.s32.totalorder %s104, %s105
      %p114 = scmp.eq.s32.totalorder %s17, 0
      %p115 = por %p113, %p114
      %p116 = scmp.ne.s32.totalorder %s104, %s105
      %p117 = scmp.eq.s32.totalorder %s18, 3
      %p118 = por %p116, %p117
      %p120 = scmp.ne.s32.totalorder %s105, %s119
      %p121 = scmp.eq.s32.totalorder %s18, 0
      %p122 = por %p120, %p121
      %s123 = ssub.s32 %s19, %s31
      %s124 = ssub.s32 %s20, %s27
      %s125 = sor.u32 %s123, %s124
      %p126 = scmp.eq.s32.totalorder %s125, 0
      %s128 = sadd.s32 %s127, 1
      %s129 = scalar_select %p126, %s127, %s128
      %p132 = pneg %p126
      %p133 = scmp.eq.s32.totalorder %s12, 3
      %p134 = por %p132, %p133
      %p135 = scmp.ne.s32.totalorder %s127, %s130
      %p136 = scmp.eq.s32.totalorder %s12, 0
      %p137 = por %p135, %p136
      %p138 = scmp.ne.s32.totalorder %s127, %s130
      %p139 = scmp.eq.s32.totalorder %s17, 3
      %p140 = por %p138, %p139
      %p141 = scmp.ne.s32.totalorder %s130, %s131
      %p142 = scmp.eq.s32.totalorder %s17, 0
      %p143 = por %p141, %p142
      %p144 = scmp.ne.s32.totalorder %s130, %s131
      %p145 = scmp.eq.s32.totalorder %s18, 3
      %p146 = por %p144, %p145
      %p148 = scmp.ne.s32.totalorder %s131, %s147
      %p149 = scmp.eq.s32.totalorder %s18, 0
      %p150 = por %p148, %p149
      %s151 = ssub.s32 %s19, %s31
      %s152 = ssub.s32 %s20, %s27
      %s153 = sor.u32 %s151, %s152
      %p154 = scmp.eq.s32.totalorder %s153, 0
      %s156 = sadd.s32 %s155, 1
      %s157 = scalar_select %p154, %s155, %s156
      %p160 = pneg %p154
      %p161 = scmp.eq.s32.totalorder %s12, 3
      %p162 = por %p160, %p161
      %p163 = scmp.ne.s32.totalorder %s155, %s158
      %p164 = scmp.eq.s32.totalorder %s12, 0
      %p165 = por %p163, %p164
      %p166 = scmp.ne.s32.totalorder %s155, %s158
      %p167 = scmp.eq.s32.totalorder %s17, 3
      %p168 = por %p166, %p167
      %p169 = scmp.ne.s32.totalorder %s158, %s159
      %p170 = scmp.eq.s32.totalorder %s17, 0
      %p171 = por %p169, %p170
      %p172 = scmp.ne.s32.totalorder %s158, %s159
      %p173 = scmp.eq.s32.totalorder %s18, 3
      %p174 = por %p172, %p173
      %p176 = scmp.ne.s32.totalorder %s159, %s175
      %p177 = scmp.eq.s32.totalorder %s18, 0
      %p178 = por %p176, %p177
      %p179 = scmp.le.s32.totalorder 1, %s12
      %p180 = scmp.lt.s32.totalorder %s12, 5
      %p181 = pnand %p179, %p180
      %p182 = pneg %p181
      // Predicated region
      $region9: #{bottleneck_pallas.6} parent=5 // pred_check
        _
      $region10: #{bottleneck_pallas.6} parent=5 // pred_check_branch
        %184 = sbr.rel (%p181) target = $region12
      $region11: #{bottleneck_pallas.6} parent=5 // pred_region
        %s185 = ssub.s32 %s12, 1
        // Predicated region
        $region13: #{bottleneck_pallas.6} parent=11 // pred_check
          %p186 = pneg %p73
        $region14: #{bottleneck_pallas.6} parent=11 // pred_check_branch
          %188 = sbr.rel (%p186) target = $region16
        $region15: #{bottleneck_pallas.6} parent=11 // pred_region
          _
        $region16: #{bottleneck_pallas.6} parent=11 // pred_fallthru
          _
        // Predicated region
        $region17: #{bottleneck_pallas.6} parent=11 // pred_check
          %p189 = pneg %p94
        $region18: #{bottleneck_pallas.6} parent=11 // pred_check_branch
          %191 = sbr.rel (%p189) target = $region20
        $region19: #{bottleneck_pallas.6} parent=11 // pred_region
          _
        $region20: #{bottleneck_pallas.6} parent=11 // pred_fallthru
          _
        // Predicated region
        $region21: #{bottleneck_pallas.6} parent=11 // pred_check
          %p192 = pneg %p115
        $region22: #{bottleneck_pallas.6} parent=11 // pred_check_branch
          %194 = sbr.rel (%p192) target = $region24
        $region23: #{bottleneck_pallas.6} parent=11 // pred_region
          _
        $region24: #{bottleneck_pallas.6} parent=11 // pred_fallthru
          _
      $region12: #{bottleneck_pallas.6} parent=5 // pred_fallthru
        _
      %p195 = scmp.lt.s32.totalorder %s12, 4
      // Predicated region
      $region25: #{bottleneck_pallas.6} parent=5 // pred_check
        %p196 = pneg %p195
      $region26: #{bottleneck_pallas.6} parent=5 // pred_check_branch
        %198 = sbr.rel (%p196) target = $region28
      $region27: #{bottleneck_pallas.6} parent=5 // pred_region
        // Predicated region
        $region29: #{bottleneck_pallas.6} parent=27 // pred_check
          %p199 = pneg %p46
        $region30: #{bottleneck_pallas.6} parent=27 // pred_check_branch
          %201 = sbr.rel (%p199) target = $region32
        $region31: #{bottleneck_pallas.6} parent=27 // pred_region
          %p202 = scmp.lt.s32.totalorder %s19, 1
          %s203 = scalar_select %p202, %s19, 1
          %p204 = scmp.lt.s32.totalorder %s20, 1
          %s205 = scalar_select %p204, %s20, 1
          %s206 = smul.addr %s203, 2
          %s207 = sadd.s32 %s205, %s206
          %s208 = smul.addr %s207, 2
          %s209 = scalar_lea.vmem %s0, %s208
        $region32: #{bottleneck_pallas.6} parent=27 // pred_fallthru
          _
      $region28: #{bottleneck_pallas.6} parent=5 // pred_fallthru
        _
      %p210 = scmp.le.s32.totalorder 1, %s12
      %p211 = scmp.lt.s32.totalorder %s12, 5
      %p212 = pnand %p210, %p211
      %p213 = pneg %p212
      // Predicated region
      $region33: #{bottleneck_pallas.6} parent=5 // pred_check
        _
      $region34: #{bottleneck_pallas.6} parent=5 // pred_check_branch
        %215 = sbr.rel (%p212) target = $region36
      $region35: #{bottleneck_pallas.6} parent=5 // pred_region
        %s216 = ssub.s32 %s12, 1
        %p217 = scmp.lt.s32.totalorder %s21, 1
        %s218 = scalar_select %p217, %s21, 1
        %p219 = scmp.lt.s32.totalorder %s22, 1
        %s220 = scalar_select %p219, %s22, 1
        %s221 = smul.addr %s218, 2
        %s222 = sadd.s32 %s220, %s221
        %s223 = smul.addr %s222, 2
        %s224 = scalar_lea.vmem %s0, %s223
        %p225 = pneg %p52
        %p226 = pneg %p49
        %p227 = pneg %p73
        %p228 = pneg %p70
        %p229 = pneg %p94
        %p230 = pneg %p91
        %p231 = pneg %p115
        %p232 = pneg %p112
        %p233 = pneg %p143
        %p234 = pneg %p140
        %s235 = sand.u32 %s130, 1
        %s236 = sand.u32 %s130, 1
        %s237 = smul.addr %s236, 8
        %s238 = scalar_lea.vmem [#allocation2], %s237
        %p239 = pneg %p171
        %p240 = pneg %p168
        %p241 = scmp.lt.s32.totalorder %s21, 1
        %s242 = scalar_select %p241, %s21, 1
        %p243 = scmp.lt.s32.totalorder %s22, 1
        %s244 = scalar_select %p243, %s22, 1
        %s245 = smul.addr %s244, 2
        %s246 = smul.addr %s242, 4
        %s247 = sadd.s32 %s245, %s246
        %s248 = smul.addr %s247, 8
        %s249 = scalar_lea.vmem %s5, %s248
        %p250 = scmp.lt.s32.totalorder %s21, 1
        %s251 = scalar_select %p250, %s21, 1
        %p252 = scmp.lt.s32.totalorder %s22, 1
        %s253 = scalar_select %p252, %s22, 1
        %s254 = smul.addr %s251, 2
        %s255 = sadd.s32 %s253, %s254
        %s256 = smul.addr %s255, 2
        %s257 = scalar_lea.vmem %s0, %s256
        %p258 = scmp.lt.s32.totalorder %s21, 1
        %s259 = scalar_select %p258, %s21, 1
        %p260 = scmp.lt.s32.totalorder %s22, 1
        %s261 = scalar_select %p260, %s22, 1
        %s262 = smul.addr %s261, 2
        %s263 = smul.addr %s259, 4
        %s264 = sadd.s32 %s262, %s263
        %s265 = smul.addr %s264, 8
        %s266 = scalar_lea.vmem %s5, %s265
        %v268 = vld [vmem:[%s257] sm:$0x3]
        %v269 = vunpack.c.l.bf16 %v268
        %v270 = vld [vmem:[%s1] sm:$0xf]
        %272 = vset.pattern.permute.xlu0 0
        %273 = vperm.xlu0 %272, %v270
        %v274 = vpop.permute.xlu0 %273
        %v276 = vmul.f32 %v269, %v274
        %v277 = vld [vmem:[%s2] sm:$0xf]
        %279 = vset.pattern.permute.xlu0 0
        %280 = vperm.xlu0 %279, %v277
        %v281 = vpop.permute.xlu0 %280
        %v283 = vadd.f32 %v276, %v281
        %v284 = vmax.f32 %v283, 0.0
        %v285 = vld [vmem:[%s3] sm:$0xf]
        %v286 = vld [vmem:[%s3 + $0x4] sm:$0xf]
        %v287 = vpack.c.bf16 %v284, %v284
        %v290 = vunpack.c.l.b16 %v285
        %v291 = vunpack.c.l.b16 %v286
        %v292 = vpack.c.b16 %v291, %v290
        %vm293 = vcmask 31744
        %v295 = vsel %vm293, %v292, 0
        %vm297 = vcmask 1041408
        %v299 = vsel %vm297, %v287, 0
        %301 = vmatprep.subr.bf16.mxu0 0
        %302 = vmatpush1.bf16.msra.mxu0 %v299
        %303 = vmatprep.subr.bf16.mxu0 0
        %304 = vmatpush1.bf16.msra.mxu0 0
        %305 = vmatprep.subr.bf16.mxu0 0
        %306 = vmatpush1.bf16.msra.mxu0 0
        %307 = vmatprep.subr.bf16.mxu0 0
        %308 = vmatpush1.bf16.msra.mxu0 0
        %309 = vmatprep.subr.bf16.mxu0 0
        %310 = vmatpush1.bf16.msra.mxu0 0
        %311 = vmatprep.subr.bf16.mxu0 0
        %312 = vmatpush1.bf16.msra.mxu0 0
        %313 = vmatprep.subr.bf16.mxu0 0
        %314 = vmatpush1.bf16.msra.mxu0 0
        %315 = vmatprep.subr.bf16.mxu0 0
        %316 = vmatpush1.bf16.msra.mxu0 0
        %317 = vmatprep.subr.bf16.mxu0 0
        %318 = vmatpush1.bf16.msra.mxu0 0
        %319 = vmatprep.subr.bf16.mxu0 0
        %320 = vmatpush1.bf16.msra.mxu0 0
        %321 = vmatprep.subr.bf16.mxu0 0
        %322 = vmatpush1.bf16.msra.mxu0 0
        %323 = vmatprep.subr.bf16.mxu0 0
        %324 = vmatpush1.bf16.msra.mxu0 0
        %325 = vmatprep.subr.bf16.mxu0 0
        %326 = vmatpush1.bf16.msra.mxu0 0
        %327 = vmatprep.subr.bf16.mxu0 0
        %328 = vmatpush1.bf16.msra.mxu0 0
        %329 = vmatprep.subr.bf16.mxu0 0
        %330 = vmatpush1.bf16.msra.mxu0 0
        %331 = vmatprep.subr.bf16.mxu0 0
        %332 = vmatpush1.bf16.msra.mxu0 0
        %333 = vmatprep.mubr.bf16.mxu0 0
        %334 = vmatmul.mubr.bf16.gmra.mrb[0].mxu0 %v295
        %v335 = vpop.f32.mrb[0].mxu0
        %v336 = vadd.f32 0.0, %v335
        %v337 = vpop.f32.mrb[0].mxu0
        %v338 = vpop.f32.mrb[0].mxu0
        %v339 = vadd.f32 0.0, %v338
        %v340 = vpop.f32.mrb[0].mxu0
        %341 = vdwg.mxu0
        %v342 = vpack.c.bf16 %v339, %v336
        %v344 = vunpack.c.l.b16 %v342
        %v345 = vunpack.c.h.b16 %v342
        %v346 = vpack.c.b16 %v344, %v344
        %v347 = vpack.c.b16 %v345, %v345
        %350 = vst [vmem:[%s238] sm:$0xf] %v346
        %351 = vst [vmem:[%s238 + $0x4] sm:$0xf] %v347
        %v352 = vunpack.c.l.bf16 %v342
        %v353 = vunpack.c.h.bf16 %v342
        %354 = vadd.xlane.f32.xlu0 %v352
        %v355 = vpop.xlane.xlu0 %354
        %356 = vadd.xlane.f32.xlu0 %v353
        %v357 = vpop.xlane.xlu0 %356
        %v358 = vmul.f32 %v352, %v352
        %v359 = vmul.f32 %v353, %v353
        %360 = vadd.xlane.f32.xlu0 %v358
        %v361 = vpop.xlane.xlu0 %360
        %362 = vadd.xlane.f32.xlu0 %v359
        %v363 = vpop.xlane.xlu0 %362
        %vm364 = vcmask 7168
        %v365 = vsel %vm364, %v355, %v361
        %v366 = vsel %vm364, %v357, %v363
        %vm367 = vcmask 15360
        %368 = vst.msk [vmem:[%s266] sm:$0xff] %vm367, %v365
        %369 = vst.msk [vmem:[%s266 + $0x8] sm:$0xff] %vm367, %v366
        %s370 = sand.u32 %s130, 1
        %s371 = sand.u32 %s130, 1
        %s372 = smul.addr %s371, 8
        %s373 = scalar_lea.vmem [#allocation2], %s372
        %p374 = scmp.lt.s32.totalorder %s21, 1
        %s375 = scalar_select %p374, %s21, 1
        %p376 = scmp.lt.s32.totalorder %s22, 1
        %s377 = scalar_select %p376, %s22, 1
        %s378 = smul.addr %s377, 2
        %s379 = smul.addr %s375, 4
        %s380 = sadd.s32 %s378, %s379
        %s381 = smul.addr %s380, 8
        %s382 = scalar_lea.vmem %s5, %s381
        // Predicated region
        $region37: #{bottleneck_pallas.6} parent=35 // pred_check
          %p383 = pneg %p140
        $region38: #{bottleneck_pallas.6} parent=35 // pred_check_branch
          %385 = sbr.rel (%p383) target = $region40
        $region39: #{bottleneck_pallas.6} parent=35 // pred_region
          %s386 = smul.addr %s21, 4
          %s387 = sadd.s32 %s22, %s386
          %s388 = smul.addr %s387, 4
          %s389 = scalar_lea.vmem %s4, %s388
          // Predicated region
          $region41: #{bottleneck_pallas.6} parent=39 // pred_check
            _
          $region42: #{bottleneck_pallas.6} parent=39 // pred_check_branch
            %391 = sbr.rel (0) target = $region44
          $region43: #{bottleneck_pallas.6} parent=39 // pred_region
            // Predicated region
            $region45: #{bottleneck_pallas.6} parent=43 // pred_check
              _
            $region46: #{bottleneck_pallas.6} parent=43 // pred_check_branch
              %393 = sbr.rel target = $region48
            $region47: #{bottleneck_pallas.6} parent=43 // pred_region
              // Predicated region
              $region60: #{bottleneck_pallas.6} parent=47 // pred_check
                _
              $region61: #{bottleneck_pallas.6} parent=47 // pred_check_branch
                %410 = sbr.rel (0) target = $region63
              $region62: #{bottleneck_pallas.6} parent=47 // pred_region
                loop: start=0, step=1, limit=1
                $region64: #{bottleneck_pallas.6} parent=62 // loop_pre_header
                  _
                $region65: #{bottleneck_pallas.6} parent=62 // loop_header
                  %s412 = sphi 0, %s416
                  %p413 = scmp.ge.s32.totalorder %s412, 1
                  %s417 = sphi %s373, %s373
                  %s418 = sphi %s389, %s389
                $region66: #{bottleneck_pallas.6} parent=62 // loop_header_branch
                  %415 = sbr.rel (%p413) target = $region70
                $region67: #{bottleneck_pallas.6} parent=62 // loop_body
                  _
                $region68: #{bottleneck_pallas.6} parent=62 // loop_footer
                  %s416 = sadd.s32 1, %s412
                $region69: #{bottleneck_pallas.6} parent=62 // loop_footer_branch
                  %411 = sbr.rel target = $region65
                $region70: #{bottleneck_pallas.6} parent=62 // loop_exit
                  _
                loop: start=0, step=1, limit=1
                $region71: #{bottleneck_pallas.6} parent=62 // loop_pre_header
                  _
                $region72: #{bottleneck_pallas.6} parent=62 // loop_header
                  %s421 = sphi 0, %s425
                  %p422 = scmp.ge.s32.totalorder %s421, 1
                  %s426 = sphi %s373, %s373
                  %s427 = sphi %s389, %s389
                $region73: #{bottleneck_pallas.6} parent=62 // loop_header_branch
                  %424 = sbr.rel (%p422) target = $region77
                $region74: #{bottleneck_pallas.6} parent=62 // loop_body
                  %v428 = vld [vmem:[%s426] sm:$0xf]
                  %429 = vst [vmem:[%s427] sm:$0xf] %v428
                  %v430 = vld [vmem:[%s426 + $0x4] sm:$0xf]
                  %431 = vst [vmem:[%s427 + $0x8] sm:$0xf] %v430
                $region75: #{bottleneck_pallas.6} parent=62 // loop_footer
                  %s425 = sadd.s32 1, %s421
                $region76: #{bottleneck_pallas.6} parent=62 // loop_footer_branch
                  %420 = sbr.rel target = $region72
                $region77: #{bottleneck_pallas.6} parent=62 // loop_exit
                  _
              $region63: #{bottleneck_pallas.6} parent=47 // pred_fallthru
                _
            $region48: #{bottleneck_pallas.6} parent=43 // pred_fallthru
              _
            // Predicated region
            $region49: #{bottleneck_pallas.6} parent=43 // pred_check
              _
            $region50: #{bottleneck_pallas.6} parent=43 // pred_check_branch
              %395 = sbr.rel (0) target = $region52
            $region51: #{bottleneck_pallas.6} parent=43 // pred_region
              loop: start=0, step=1, limit=1
              $region53: #{bottleneck_pallas.6} parent=51 // loop_pre_header
                _
              $region54: #{bottleneck_pallas.6} parent=51 // loop_header
                %s398 = sphi 0, %s402
                %p399 = scmp.ge.s32.totalorder %s398, 1
                %s403 = sphi %s373, %s373
                %s404 = sphi %s389, %s389
              $region55: #{bottleneck_pallas.6} parent=51 // loop_header_branch
                %401 = sbr.rel (%p399) target = $region59
              $region56: #{bottleneck_pallas.6} parent=51 // loop_body
                %v405 = vld [vmem:[%s403] sm:$0xf]
                %406 = vst [vmem:[%s404] sm:$0xf] %v405
                %v407 = vld [vmem:[%s403 + $0x4] sm:$0xf]
                %408 = vst [vmem:[%s404 + $0x8] sm:$0xf] %v407
              $region57: #{bottleneck_pallas.6} parent=51 // loop_footer
                %s402 = sadd.s32 1, %s398
              $region58: #{bottleneck_pallas.6} parent=51 // loop_footer_branch
                %397 = sbr.rel target = $region54
              $region59: #{bottleneck_pallas.6} parent=51 // loop_exit
                _
            $region52: #{bottleneck_pallas.6} parent=43 // pred_fallthru
              _
          $region44: #{bottleneck_pallas.6} parent=39 // pred_fallthru
            _
          %432 = vnop
        $region40: #{bottleneck_pallas.6} parent=35 // pred_fallthru
          _
        // Predicated region
        $region78: #{bottleneck_pallas.6} parent=35 // pred_check
          %p433 = pneg %p168
        $region79: #{bottleneck_pallas.6} parent=35 // pred_check_branch
          %435 = sbr.rel (%p433) target = $region81
        $region80: #{bottleneck_pallas.6} parent=35 // pred_region
          _
        $region81: #{bottleneck_pallas.6} parent=35 // pred_fallthru
          _
      $region36: #{bottleneck_pallas.6} parent=5 // pred_fallthru
        _
      %p436 = scmp.le.s32.totalorder 2, %s12
      // Predicated region
      $region82: #{bottleneck_pallas.6} parent=5 // pred_check
        %p437 = pneg %p436
      $region83: #{bottleneck_pallas.6} parent=5 // pred_check_branch
        %439 = sbr.rel (%p437) target = $region85
      $region84: #{bottleneck_pallas.6} parent=5 // pred_region
        %s440 = ssub.s32 %s12, 2
        // Predicated region
        $region86: #{bottleneck_pallas.6} parent=84 // pred_check
          %p441 = pneg %p146
        $region87: #{bottleneck_pallas.6} parent=84 // pred_check_branch
          %443 = sbr.rel (%p441) target = $region89
        $region88: #{bottleneck_pallas.6} parent=84 // pred_region
          %s444 = sand.u32 %s131, 1
          %s445 = sand.u32 %s131, 1
          %s446 = smul.addr %s445, 8
          %s447 = scalar_lea.vmem [#allocation2], %s446
        $region89: #{bottleneck_pallas.6} parent=84 // pred_fallthru
          _
        // Predicated region
        $region90: #{bottleneck_pallas.6} parent=84 // pred_check
          %p448 = pneg %p174
        $region91: #{bottleneck_pallas.6} parent=84 // pred_check_branch
          %450 = sbr.rel (%p448) target = $region93
        $region92: #{bottleneck_pallas.6} parent=84 // pred_region
          %p451 = scmp.lt.s32.totalorder %s23, 1
          %s452 = scalar_select %p451, %s23, 1
          %p453 = scmp.lt.s32.totalorder %s24, 1
          %s454 = scalar_select %p453, %s24, 1
          %s455 = smul.addr %s454, 2
          %s456 = smul.addr %s452, 4
          %s457 = sadd.s32 %s455, %s456
          %s458 = smul.addr %s457, 8
          %s459 = scalar_lea.vmem %s5, %s458
        $region93: #{bottleneck_pallas.6} parent=84 // pred_fallthru
          _
      $region85: #{bottleneck_pallas.6} parent=5 // pred_fallthru
        _
    $region6: #{bottleneck_pallas.6} parent=1 // loop_footer
      %s16 = sadd.s32 1, %s12
    $region7: #{bottleneck_pallas.6} parent=1 // loop_footer_branch
      %11 = sbr.rel target = $region3
    $region8: #{bottleneck_pallas.6} parent=1 // loop_exit
      _

// kernel: bottleneck_pallas.5
$region0: #{bottleneck_pallas.5}
  #allocation0 [shape = 'u32[]', space=smem, size = 0x4, offset = 0x4, fixed_abs, tag = 'smem constant byte address 0x4 - core index']
  #allocation1 [shape = 'u32[144,128]{1,0:T(1,128)}', space=vmem, size = 0x12000, scoped, tag = 'internal scratch']
  %s0 = inlined_call_operand.vmem [shape: bf16[2,4,256], index: 0, kind: input, shape index: {}]
  %s1 = inlined_call_operand.vmem [shape: f32[4,1], index: 1, kind: input, shape index: {}]
  %s2 = inlined_call_operand.vmem [shape: f32[4,1], index: 2, kind: input, shape index: {}]
  %s3 = inlined_call_operand.vmem [shape: bf16[3,384,128], index: 3, kind: input, shape index: {}]
  %s4 = inlined_call_operand.vmem [shape: bf16[2,4,256], index: 4, kind: output, shape index: {0}]
  %s5 = inlined_call_operand.vmem [shape: f32[2,4,2], index: 5, kind: output, shape index: {1}]
  %6 = xla_tuple %s4, %s5
  %s7 = sld [smem:[#allocation0]]
  $region57: #{bottleneck_pallas.5} parent=0
    _
  %s9 = ssub.s32 1, %s7
  %s10 = scalar_select 0, %s9, %s7
  loop: start=0, step=1, limit=4
  $region2: #{bottleneck_pallas.5} parent=0 // loop_pre_header
    _
  $region3: #{bottleneck_pallas.5} parent=0 // loop_header
    %s12 = sphi 0, %s16
    %p13 = scmp.ge.s32.totalorder %s12, 4
    %s22 = sphi 0, %s24
    %s25 = sphi 0, %s22
    %s26 = sphi 0, %s25
    %s42 = sphi 0, %s26
    %s46 = sphi 0, %s46
    %s48 = sphi 0, %s46
    %s49 = sphi 0, %s48
    %s63 = sphi 0, %s49
    %s67 = sphi 0, %s67
    %s69 = sphi 0, %s67
    %s70 = sphi 0, %s69
    %s84 = sphi 0, %s70
    %s88 = sphi 0, %s88
    %s90 = sphi 0, %s88
    %s91 = sphi 0, %s90
    %s105 = sphi 0, %s91
    %s111 = sphi 0, %s113
    %s114 = sphi 0, %s111
    %s115 = sphi 0, %s114
    %s131 = sphi 0, %s115
    %s137 = sphi 0, %s139
    %s140 = sphi 0, %s137
    %s141 = sphi 0, %s140
    %s157 = sphi 0, %s141
  $region4: #{bottleneck_pallas.5} parent=0 // loop_header_branch
    %15 = sbr.rel (%p13) target = $region8
  $region5: #{bottleneck_pallas.5} parent=0 // loop_body
    %s17 = ssub.s32 %s12, 1
    %s18 = ssub.s32 %s12, 2
    %s19 = sadd.s32 %s12, 1
    %s20 = ssub.s32 %s12, %s19
    %p21 = scmp.eq.s32.totalorder %s20, 0
    %s23 = sadd.s32 %s22, 1
    %s24 = scalar_select %p21, %s22, %s23
    %p27 = pneg %p21
    %p28 = scmp.eq.s32.totalorder %s12, 1
    %p29 = por %p27, %p28
    %p30 = scmp.ne.s32.totalorder %s22, %s25
    %p31 = scmp.eq.s32.totalorder %s12, 0
    %p32 = por %p30, %p31
    %p33 = scmp.ne.s32.totalorder %s22, %s25
    %p34 = scmp.eq.s32.totalorder %s17, 1
    %p35 = por %p33, %p34
    %p36 = scmp.ne.s32.totalorder %s25, %s26
    %p37 = scmp.eq.s32.totalorder %s17, 0
    %p38 = por %p36, %p37
    %p39 = scmp.ne.s32.totalorder %s25, %s26
    %p40 = scmp.eq.s32.totalorder %s18, 1
    %p41 = por %p39, %p40
    %p43 = scmp.ne.s32.totalorder %s26, %s42
    %p44 = scmp.eq.s32.totalorder %s18, 0
    %p45 = por %p43, %p44
    %s47 = sadd.s32 %s46, 1
    %p50 = scmp.eq.s32.totalorder %s12, 1
    %p51 = scmp.ne.s32.totalorder %s46, %s48
    %p52 = scmp.eq.s32.totalorder %s12, 0
    %p53 = por %p51, %p52
    %p54 = scmp.ne.s32.totalorder %s46, %s48
    %p55 = scmp.eq.s32.totalorder %s17, 1
    %p56 = por %p54, %p55
    %p57 = scmp.ne.s32.totalorder %s48, %s49
    %p58 = scmp.eq.s32.totalorder %s17, 0
    %p59 = por %p57, %p58
    %p60 = scmp.ne.s32.totalorder %s48, %s49
    %p61 = scmp.eq.s32.totalorder %s18, 1
    %p62 = por %p60, %p61
    %p64 = scmp.ne.s32.totalorder %s49, %s63
    %p65 = scmp.eq.s32.totalorder %s18, 0
    %p66 = por %p64, %p65
    %s68 = sadd.s32 %s67, 1
    %p71 = scmp.eq.s32.totalorder %s12, 1
    %p72 = scmp.ne.s32.totalorder %s67, %s69
    %p73 = scmp.eq.s32.totalorder %s12, 0
    %p74 = por %p72, %p73
    %p75 = scmp.ne.s32.totalorder %s67, %s69
    %p76 = scmp.eq.s32.totalorder %s17, 1
    %p77 = por %p75, %p76
    %p78 = scmp.ne.s32.totalorder %s69, %s70
    %p79 = scmp.eq.s32.totalorder %s17, 0
    %p80 = por %p78, %p79
    %p81 = scmp.ne.s32.totalorder %s69, %s70
    %p82 = scmp.eq.s32.totalorder %s18, 1
    %p83 = por %p81, %p82
    %p85 = scmp.ne.s32.totalorder %s70, %s84
    %p86 = scmp.eq.s32.totalorder %s18, 0
    %p87 = por %p85, %p86
    %s89 = sadd.s32 %s88, 1
    %p92 = scmp.eq.s32.totalorder %s12, 1
    %p93 = scmp.ne.s32.totalorder %s88, %s90
    %p94 = scmp.eq.s32.totalorder %s12, 0
    %p95 = por %p93, %p94
    %p96 = scmp.ne.s32.totalorder %s88, %s90
    %p97 = scmp.eq.s32.totalorder %s17, 1
    %p98 = por %p96, %p97
    %p99 = scmp.ne.s32.totalorder %s90, %s91
    %p100 = scmp.eq.s32.totalorder %s17, 0
    %p101 = por %p99, %p100
    %p102 = scmp.ne.s32.totalorder %s90, %s91
    %p103 = scmp.eq.s32.totalorder %s18, 1
    %p104 = por %p102, %p103
    %p106 = scmp.ne.s32.totalorder %s91, %s105
    %p107 = scmp.eq.s32.totalorder %s18, 0
    %p108 = por %p106, %p107
    %s109 = ssub.s32 %s12, %s19
    %p110 = scmp.eq.s32.totalorder %s109, 0
    %s112 = sadd.s32 %s111, 1
    %s113 = scalar_select %p110, %s111, %s112
    %p116 = pneg %p110
    %p117 = scmp.eq.s32.totalorder %s12, 1
    %p118 = por %p116, %p117
    %p119 = scmp.ne.s32.totalorder %s111, %s114
    %p120 = scmp.eq.s32.totalorder %s12, 0
    %p121 = por %p119, %p120
    %p122 = scmp.ne.s32.totalorder %s111, %s114
    %p123 = scmp.eq.s32.totalorder %s17, 1
    %p124 = por %p122, %p123
    %p125 = scmp.ne.s32.totalorder %s114, %s115
    %p126 = scmp.eq.s32.totalorder %s17, 0
    %p127 = por %p125, %p126
    %p128 = scmp.ne.s32.totalorder %s114, %s115
    %p129 = scmp.eq.s32.totalorder %s18, 1
    %p130 = por %p128, %p129
    %p132 = scmp.ne.s32.totalorder %s115, %s131
    %p133 = scmp.eq.s32.totalorder %s18, 0
    %p134 = por %p132, %p133
    %s135 = ssub.s32 %s12, %s19
    %p136 = scmp.eq.s32.totalorder %s135, 0
    %s138 = sadd.s32 %s137, 1
    %s139 = scalar_select %p136, %s137, %s138
    %p142 = pneg %p136
    %p143 = scmp.eq.s32.totalorder %s12, 1
    %p144 = por %p142, %p143
    %p145 = scmp.ne.s32.totalorder %s137, %s140
    %p146 = scmp.eq.s32.totalorder %s12, 0
    %p147 = por %p145, %p146
    %p148 = scmp.ne.s32.totalorder %s137, %s140
    %p149 = scmp.eq.s32.totalorder %s17, 1
    %p150 = por %p148, %p149
    %p151 = scmp.ne.s32.totalorder %s140, %s141
    %p152 = scmp.eq.s32.totalorder %s17, 0
    %p153 = por %p151, %p152
    %p154 = scmp.ne.s32.totalorder %s140, %s141
    %p155 = scmp.eq.s32.totalorder %s18, 1
    %p156 = por %p154, %p155
    %p158 = scmp.ne.s32.totalorder %s141, %s157
    %p159 = scmp.eq.s32.totalorder %s18, 0
    %p160 = por %p158, %p159
    %p161 = scmp.le.s32.totalorder 1, %s12
    %p162 = scmp.lt.s32.totalorder %s12, 3
    %p163 = pnand %p161, %p162
    %p164 = pneg %p163
    // Predicated region
    $region9: #{bottleneck_pallas.5} parent=5 // pred_check
      _
    $region10: #{bottleneck_pallas.5} parent=5 // pred_check_branch
      %166 = sbr.rel (%p163) target = $region12
    $region11: #{bottleneck_pallas.5} parent=5 // pred_region
      %s167 = ssub.s32 %s12, 1
      // Predicated region
      $region13: #{bottleneck_pallas.5} parent=11 // pred_check
        %p168 = pneg %p59
      $region14: #{bottleneck_pallas.5} parent=11 // pred_check_branch
        %170 = sbr.rel (%p168) target = $region16
      $region15: #{bottleneck_pallas.5} parent=11 // pred_region
        _
      $region16: #{bottleneck_pallas.5} parent=11 // pred_fallthru
        _
      // Predicated region
      $region17: #{bottleneck_pallas.5} parent=11 // pred_check
        %p171 = pneg %p80
      $region18: #{bottleneck_pallas.5} parent=11 // pred_check_branch
        %173 = sbr.rel (%p171) target = $region20
      $region19: #{bottleneck_pallas.5} parent=11 // pred_region
        _
      $region20: #{bottleneck_pallas.5} parent=11 // pred_fallthru
        _
      // Predicated region
      $region21: #{bottleneck_pallas.5} parent=11 // pred_check
        %p174 = pneg %p101
      $region22: #{bottleneck_pallas.5} parent=11 // pred_check_branch
        %176 = sbr.rel (%p174) target = $region24
      $region23: #{bottleneck_pallas.5} parent=11 // pred_region
        _
      $region24: #{bottleneck_pallas.5} parent=11 // pred_fallthru
        _
    $region12: #{bottleneck_pallas.5} parent=5 // pred_fallthru
      _
    %p177 = scmp.lt.s32.totalorder %s12, 2
    // Predicated region
    $region25: #{bottleneck_pallas.5} parent=5 // pred_check
      %p178 = pneg %p177
    $region26: #{bottleneck_pallas.5} parent=5 // pred_check_branch
      %180 = sbr.rel (%p178) target = $region28
    $region27: #{bottleneck_pallas.5} parent=5 // pred_region
      // Predicated region
      $region29: #{bottleneck_pallas.5} parent=27 // pred_check
        %p181 = pneg %p32
      $region30: #{bottleneck_pallas.5} parent=27 // pred_check_branch
        %183 = sbr.rel (%p181) target = $region32
      $region31: #{bottleneck_pallas.5} parent=27 // pred_region
        %p184 = scmp.lt.s32.totalorder %s12, 1
        %s185 = scalar_select %p184, %s12, 1
        %s186 = smul.addr %s185, 2
        %s187 = smul.addr %s186, 2
        %s188 = scalar_lea.vmem %s0, %s187
      $region32: #{bottleneck_pallas.5} parent=27 // pred_fallthru
        _
    $region28: #{bottleneck_pallas.5} parent=5 // pred_fallthru
      _
    %p189 = scmp.le.s32.totalorder 1, %s12
    %p190 = scmp.lt.s32.totalorder %s12, 3
    %p191 = pnand %p189, %p190
    %p192 = pneg %p191
    // Predicated region
    $region33: #{bottleneck_pallas.5} parent=5 // pred_check
      _
    $region34: #{bottleneck_pallas.5} parent=5 // pred_check_branch
      %194 = sbr.rel (%p191) target = $region36
    $region35: #{bottleneck_pallas.5} parent=5 // pred_region
      %s195 = ssub.s32 %s12, 1
      %p196 = scmp.lt.s32.totalorder %s17, 1
      %s197 = scalar_select %p196, %s17, 1
      %s198 = smul.addr %s197, 2
      %s199 = smul.addr %s198, 2
      %s200 = scalar_lea.vmem %s0, %s199
      %p201 = pneg %p38
      %p202 = pneg %p35
      %p203 = pneg %p59
      %p204 = pneg %p56
      %p205 = pneg %p80
      %p206 = pneg %p77
      %p207 = pneg %p101
      %p208 = pneg %p98
      %p209 = pneg %p127
      %p210 = pneg %p124
      %p211 = scmp.lt.s32.totalorder %s17, 1
      %s212 = scalar_select %p211, %s17, 1
      %s213 = smul.addr %s212, 2
      %s214 = smul.addr %s213, 2
      %s215 = scalar_lea.vmem %s4, %s214
      %p216 = pneg %p153
      %p217 = pneg %p150
      %p218 = scmp.lt.s32.totalorder %s17, 1
      %s219 = scalar_select %p218, %s17, 1
      %s220 = smul.addr %s219, 4
      %s221 = scalar_lea.vmem %s5, %s220
      %p222 = scmp.lt.s32.totalorder %s17, 1
      %s223 = scalar_select %p222, %s17, 1
      %s224 = smul.addr %s223, 2
      %s225 = smul.addr %s224, 2
      %s226 = scalar_lea.vmem %s0, %s225
      %p227 = scmp.lt.s32.totalorder %s17, 1
      %s228 = scalar_select %p227, %s17, 1
      %s229 = smul.addr %s228, 2
      %s230 = smul.addr %s229, 2
      %s231 = scalar_lea.vmem %s4, %s230
      %p232 = scmp.lt.s32.totalorder %s17, 1
      %s233 = scalar_select %p232, %s17, 1
      %s234 = smul.addr %s233, 4
      %s235 = scalar_lea.vmem %s5, %s234
      %v237 = vld [vmem:[%s226] sm:$0xf]
      %v238 = vunpack.c.l.bf16 %v237
      %v239 = vld [vmem:[%s1] sm:$0xf]
      %241 = vset.pattern.permute.xlu0 0
      %242 = vperm.xlu0 %241, %v239
      %v243 = vpop.permute.xlu0 %242
      %v245 = vunpack.c.l.s4 839922192
      %v246 = vunpack.c.0.s8 %v245
      %v247 = vlaneseq
      %v248 = vshrl.u32 %v247, 7
      %v249 = vsub.s32 %v246, %v248
      %v250 = vrot.slane %v243, %v249
      %v252 = vmul.f32 %v238, %v250
      %v253 = vld [vmem:[%s2] sm:$0xf]
      %255 = vset.pattern.permute.xlu0 0
      %256 = vperm.xlu0 %255, %v253
      %v257 = vpop.permute.xlu0 %256
      %v259 = vunpack.c.l.s4 839922192
      %v260 = vunpack.c.0.s8 %v259
      %v261 = vlaneseq
      %v262 = vshrl.u32 %v261, 7
      %v263 = vsub.s32 %v260, %v262
      %v264 = vrot.slane %v257, %v263
      %v266 = vadd.f32 %v252, %v264
      %v267 = vmax.f32 %v266, 0.0
      %v269 = vcombine.high %v267, %v267
      %vm271 = vcmask 1043456
      %v272 = vsel %vm271, %v267, 0.0
      %v273 = vsel %vm271, %v269, 0.0
      %274 = vxpose.xlu0.b32.start [1/16] %v272, 128
      %275 = vxpose.xlu0.b32.cont [2/16] 0.0, 128
      %276 = vxpose.xlu0.b32.cont [3/16] 0.0, 128
      %277 = vxpose.xlu0.b32.cont [4/16] 0.0, 128
      %278 = vxpose.xlu0.b32.cont [5/16] 0.0, 128
      %279 = vxpose.xlu0.b32.cont [6/16] 0.0, 128
      %280 = vxpose.xlu0.b32.cont [7/16] 0.0, 128
      %281 = vxpose.xlu0.b32.cont [8/16] 0.0, 128
      %282 = vxpose.xlu0.b32.cont [9/16] 0.0, 128
      %283 = vxpose.xlu0.b32.cont [10/16] 0.0, 128
      %284 = vxpose.xlu0.b32.cont [11/16] 0.0, 128
      %285 = vxpose.xlu0.b32.cont [12/16] 0.0, 128
      %286 = vxpose.xlu0.b32.cont [13/16] 0.0, 128
      %287 = vxpose.xlu0.b32.cont [14/16] 0.0, 128
      %288 = vxpose.xlu0.b32.cont [15/16] 0.0, 128
      %289 = vxpose.xlu0.b32.end [16/16] 0.0, 128
      %v290 = vpop.trf.xlu0
      %v291 = vpop.trf.xlu0
      %v292 = vpop.trf.xlu0
      %v293 = vpop.trf.xlu0
      %v294 = vpop.trf.xlu0
      %v295 = vpop.trf.xlu0
      %v296 = vpop.trf.xlu0
      %v297 = vpop.trf.xlu0
      %v298 = vpop.trf.xlu0
      %v299 = vpop.trf.xlu0
      %v300 = vpop.trf.xlu0
      %v301 = vpop.trf.xlu0
      %v302 = vpop.trf.xlu0
      %v303 = vpop.trf.xlu0
      %v304 = vpop.trf.xlu0
      %v305 = vpop.trf.xlu0
      %306 = vxpose.xlu0.b32.start [1/16] %v273, 128
      %307 = vxpose.xlu0.b32.cont [2/16] 0.0, 128
      %308 = vxpose.xlu0.b32.cont [3/16] 0.0, 128
      %309 = vxpose.xlu0.b32.cont [4/16] 0.0, 128
      %310 = vxpose.xlu0.b32.cont [5/16] 0.0, 128
      %311 = vxpose.xlu0.b32.cont [6/16] 0.0, 128
      %312 = vxpose.xlu0.b32.cont [7/16] 0.0, 128
      %313 = vxpose.xlu0.b32.cont [8/16] 0.0, 128
      %314 = vxpose.xlu0.b32.cont [9/16] 0.0, 128
      %315 = vxpose.xlu0.b32.cont [10/16] 0.0, 128
      %316 = vxpose.xlu0.b32.cont [11/16] 0.0, 128
      %317 = vxpose.xlu0.b32.cont [12/16] 0.0, 128
      %318 = vxpose.xlu0.b32.cont [13/16] 0.0, 128
      %319 = vxpose.xlu0.b32.cont [14/16] 0.0, 128
      %320 = vxpose.xlu0.b32.cont [15/16] 0.0, 128
      %321 = vxpose.xlu0.b32.end [16/16] 0.0, 128
      %v322 = vpop.trf.xlu0
      %v323 = vpop.trf.xlu0
      %v324 = vpop.trf.xlu0
      %v325 = vpop.trf.xlu0
      %v326 = vpop.trf.xlu0
      %v327 = vpop.trf.xlu0
      %v328 = vpop.trf.xlu0
      %v329 = vpop.trf.xlu0
      %v330 = vpop.trf.xlu0
      %v331 = vpop.trf.xlu0
      %v332 = vpop.trf.xlu0
      %v333 = vpop.trf.xlu0
      %v334 = vpop.trf.xlu0
      %v335 = vpop.trf.xlu0
      %v336 = vpop.trf.xlu0
      %v337 = vpop.trf.xlu0
      %v338 = vpack.c.bf16 %v291, %v290
      %v339 = vpack.c.bf16 %v293, %v292
      %v340 = vpack.c.bf16 %v295, %v294
      %v341 = vpack.c.bf16 %v297, %v296
      %v342 = vpack.c.bf16 %v299, %v298
      %v343 = vpack.c.bf16 %v301, %v300
      %v344 = vpack.c.bf16 %v303, %v302
      %v345 = vpack.c.bf16 %v305, %v304
      %v346 = vpack.c.bf16 %v323, %v322
      %v347 = vpack.c.bf16 %v325, %v324
      %v348 = vpack.c.bf16 %v327, %v326
      %v349 = vpack.c.bf16 %v329, %v328
      %v350 = vpack.c.bf16 %v331, %v330
      %v351 = vpack.c.bf16 %v333, %v332
      %v352 = vpack.c.bf16 %v335, %v334
      %v353 = vpack.c.bf16 %v337, %v336
      %v355 = vshrl.u32 %v338, 16
      %v357 = vrot.slane %v355, 7
      %v358 = vshll.u32 %v338, 16
      %v360 = vor.u32 %v357, %v358
      %v362 = vshrl.u32 %v339, 16
      %v364 = vrot.slane %v362, 7
      %v365 = vshll.u32 %v339, 16
      %v367 = vor.u32 %v364, %v365
      %v369 = vshrl.u32 %v340, 16
      %v371 = vrot.slane %v369, 7
      %v372 = vshll.u32 %v340, 16
      %v374 = vor.u32 %v371, %v372
      %v376 = vshrl.u32 %v341, 16
      %v378 = vrot.slane %v376, 7
      %v379 = vshll.u32 %v341, 16
      %v381 = vor.u32 %v378, %v379
      %v383 = vshrl.u32 %v342, 16
      %v385 = vrot.slane %v383, 7
      %v386 = vshll.u32 %v342, 16
      %v388 = vor.u32 %v385, %v386
      %v390 = vshrl.u32 %v343, 16
      %v392 = vrot.slane %v390, 7
      %v393 = vshll.u32 %v343, 16
      %v395 = vor.u32 %v392, %v393
      %v397 = vshrl.u32 %v344, 16
      %v399 = vrot.slane %v397, 7
      %v400 = vshll.u32 %v344, 16
      %v402 = vor.u32 %v399, %v400
      %v404 = vshrl.u32 %v345, 16
      %v406 = vrot.slane %v404, 7
      %v407 = vshll.u32 %v345, 16
      %v409 = vor.u32 %v406, %v407
      %v411 = vshrl.u32 %v346, 16
      %v413 = vrot.slane %v411, 7
      %v414 = vshll.u32 %v346, 16
      %v416 = vor.u32 %v413, %v414
      %v418 = vshrl.u32 %v347, 16
      %v420 = vrot.slane %v418, 7
      %v421 = vshll.u32 %v347, 16
      %v423 = vor.u32 %v420, %v421
      %v425 = vshrl.u32 %v348, 16
      %v427 = vrot.slane %v425, 7
      %v428 = vshll.u32 %v348, 16
      %v430 = vor.u32 %v427, %v428
      %v432 = vshrl.u32 %v349, 16
      %v434 = vrot.slane %v432, 7
      %v435 = vshll.u32 %v349, 16
      %v437 = vor.u32 %v434, %v435
      %v439 = vshrl.u32 %v350, 16
      %v441 = vrot.slane %v439, 7
      %v442 = vshll.u32 %v350, 16
      %v444 = vor.u32 %v441, %v442
      %v446 = vshrl.u32 %v351, 16
      %v448 = vrot.slane %v446, 7
      %v449 = vshll.u32 %v351, 16
      %v451 = vor.u32 %v448, %v449
      %v453 = vshrl.u32 %v352, 16
      %v455 = vrot.slane %v453, 7
      %v456 = vshll.u32 %v352, 16
      %v458 = vor.u32 %v455, %v456
      %v460 = vshrl.u32 %v353, 16
      %v462 = vrot.slane %v460, 7
      %v463 = vshll.u32 %v353, 16
      %v465 = vor.u32 %v462, %v463
      %vm498 = vcmask 1040384
      %vm499 = vsmask.f32 256
      %vm500 = vmand %vm498, %vm499
      %v501 = vsel %vm500, 0, %v360
      %v502 = vsel %vm500, 0, %v367
      %v503 = vsel %vm500, 0, %v374
      %v504 = vsel %vm500, 0, %v381
      %v505 = vsel %vm500, 0, %v388
      %v506 = vsel %vm500, 0, %v395
      %v507 = vsel %vm500, 0, %v402
      %v508 = vsel %vm500, 0, %v409
      %v509 = vsel %vm500, 0, %v416
      %v510 = vsel %vm500, 0, %v423
      %v511 = vsel %vm500, 0, %v430
      %v512 = vsel %vm500, 0, %v437
      %v513 = vsel %vm500, 0, %v444
      %v514 = vsel %vm500, 0, %v451
      %v515 = vsel %vm500, 0, %v458
      %v516 = vsel %vm500, 0, %v465
      %v517 = vsel %vm500, %v357, 0
      %v518 = vsel %vm500, %v364, 0
      %v519 = vsel %vm500, %v371, 0
      %v520 = vsel %vm500, %v378, 0
      %v521 = vsel %vm500, %v385, 0
      %v522 = vsel %vm500, %v392, 0
      %v523 = vsel %vm500, %v399, 0
      %v524 = vsel %vm500, %v406, 0
      %v525 = vsel %vm500, %v413, 0
      %v526 = vsel %vm500, %v420, 0
      %v527 = vsel %vm500, %v427, 0
      %v528 = vsel %vm500, %v434, 0
      %v529 = vsel %vm500, %v441, 0
      %v530 = vsel %vm500, %v448, 0
      %v531 = vsel %vm500, %v455, 0
      %v532 = vsel %vm500, %v462, 0
      %vm533 = vsmask.f32 7424
      %v535 = vshrl.u32 %v501, 16
      %v537 = vshll.u32 %v501, 16
      %v539 = vrot.slane %v537, 1
      %v540 = vor.u32 %v535, %v539
      %v542 = vshll.u32 %v517, 16
      %v544 = vrot.slane %v542, 1
      %v545 = vsel %vm533, %v540, %v544
      %v547 = vshrl.u32 %v502, 16
      %v549 = vshll.u32 %v502, 16
      %v551 = vrot.slane %v549, 1
      %v552 = vor.u32 %v547, %v551
      %v554 = vshll.u32 %v518, 16
      %v556 = vrot.slane %v554, 1
      %v557 = vsel %vm533, %v552, %v556
      %v559 = vshrl.u32 %v503, 16
      %v561 = vshll.u32 %v503, 16
      %v563 = vrot.slane %v561, 1
      %v564 = vor.u32 %v559, %v563
      %v566 = vshll.u32 %v519, 16
      %v568 = vrot.slane %v566, 1
      %v569 = vsel %vm533, %v564, %v568
      %v571 = vshrl.u32 %v504, 16
      %v573 = vshll.u32 %v504, 16
      %v575 = vrot.slane %v573, 1
      %v576 = vor.u32 %v571, %v575
      %v578 = vshll.u32 %v520, 16
      %v580 = vrot.slane %v578, 1
      %v581 = vsel %vm533, %v576, %v580
      %v583 = vshrl.u32 %v505, 16
      %v585 = vshll.u32 %v505, 16
      %v587 = vrot.slane %v585, 1
      %v588 = vor.u32 %v583, %v587
      %v590 = vshll.u32 %v521, 16
      %v592 = vrot.slane %v590, 1
      %v593 = vsel %vm533, %v588, %v592
      %v595 = vshrl.u32 %v506, 16
      %v597 = vshll.u32 %v506, 16
      %v599 = vrot.slane %v597, 1
      %v600 = vor.u32 %v595, %v599
      %v602 = vshll.u32 %v522, 16
      %v604 = vrot.slane %v602, 1
      %v605 = vsel %vm533, %v600, %v604
      %v607 = vshrl.u32 %v507, 16
      %v609 = vshll.u32 %v507, 16
      %v611 = vrot.slane %v609, 1
      %v612 = vor.u32 %v607, %v611
      %v614 = vshll.u32 %v523, 16
      %v616 = vrot.slane %v614, 1
      %v617 = vsel %vm533, %v612, %v616
      %v619 = vshrl.u32 %v508, 16
      %v621 = vshll.u32 %v508, 16
      %v623 = vrot.slane %v621, 1
      %v624 = vor.u32 %v619, %v623
      %v626 = vshll.u32 %v524, 16
      %v628 = vrot.slane %v626, 1
      %v629 = vsel %vm533, %v624, %v628
      %v631 = vshrl.u32 %v509, 16
      %v633 = vshll.u32 %v509, 16
      %v635 = vrot.slane %v633, 1
      %v636 = vor.u32 %v631, %v635
      %v638 = vshll.u32 %v525, 16
      %v640 = vrot.slane %v638, 1
      %v641 = vsel %vm533, %v636, %v640
      %v643 = vshrl.u32 %v510, 16
      %v645 = vshll.u32 %v510, 16
      %v647 = vrot.slane %v645, 1
      %v648 = vor.u32 %v643, %v647
      %v650 = vshll.u32 %v526, 16
      %v652 = vrot.slane %v650, 1
      %v653 = vsel %vm533, %v648, %v652
      %v655 = vshrl.u32 %v511, 16
      %v657 = vshll.u32 %v511, 16
      %v659 = vrot.slane %v657, 1
      %v660 = vor.u32 %v655, %v659
      %v662 = vshll.u32 %v527, 16
      %v664 = vrot.slane %v662, 1
      %v665 = vsel %vm533, %v660, %v664
      %v667 = vshrl.u32 %v512, 16
      %v669 = vshll.u32 %v512, 16
      %v671 = vrot.slane %v669, 1
      %v672 = vor.u32 %v667, %v671
      %v674 = vshll.u32 %v528, 16
      %v676 = vrot.slane %v674, 1
      %v677 = vsel %vm533, %v672, %v676
      %v679 = vshrl.u32 %v513, 16
      %v681 = vshll.u32 %v513, 16
      %v683 = vrot.slane %v681, 1
      %v684 = vor.u32 %v679, %v683
      %v686 = vshll.u32 %v529, 16
      %v688 = vrot.slane %v686, 1
      %v689 = vsel %vm533, %v684, %v688
      %v691 = vshrl.u32 %v514, 16
      %v693 = vshll.u32 %v514, 16
      %v695 = vrot.slane %v693, 1
      %v696 = vor.u32 %v691, %v695
      %v698 = vshll.u32 %v530, 16
      %v700 = vrot.slane %v698, 1
      %v701 = vsel %vm533, %v696, %v700
      %v703 = vshrl.u32 %v515, 16
      %v705 = vshll.u32 %v515, 16
      %v707 = vrot.slane %v705, 1
      %v708 = vor.u32 %v703, %v707
      %v710 = vshll.u32 %v531, 16
      %v712 = vrot.slane %v710, 1
      %v713 = vsel %vm533, %v708, %v712
      %v715 = vshrl.u32 %v516, 16
      %v717 = vshll.u32 %v516, 16
      %v719 = vrot.slane %v717, 1
      %v720 = vor.u32 %v715, %v719
      %v722 = vshll.u32 %v532, 16
      %v724 = vrot.slane %v722, 1
      %v725 = vsel %vm533, %v720, %v724
      %vm774 = vcmask 1046528
      %v775 = vrot.slane %v501, 1
      %v776 = vrot.slane %v517, 1
      %v777 = vsel %vm774, %v775, %v776
      %v778 = vrot.slane %v502, 1
      %v779 = vrot.slane %v518, 1
      %v780 = vsel %vm774, %v778, %v779
      %v781 = vrot.slane %v503, 1
      %v782 = vrot.slane %v519, 1
      %v783 = vsel %vm774, %v781, %v782
      %v784 = vrot.slane %v504, 1
      %v785 = vrot.slane %v520, 1
      %v786 = vsel %vm774, %v784, %v785
      %v787 = vrot.slane %v505, 1
      %v788 = vrot.slane %v521, 1
      %v789 = vsel %vm774, %v787, %v788
      %v790 = vrot.slane %v506, 1
      %v791 = vrot.slane %v522, 1
      %v792 = vsel %vm774, %v790, %v791
      %v793 = vrot.slane %v507, 1
      %v794 = vrot.slane %v523, 1
      %v795 = vsel %vm774, %v793, %v794
      %v796 = vrot.slane %v508, 1
      %v797 = vrot.slane %v524, 1
      %v798 = vsel %vm774, %v796, %v797
      %v799 = vrot.slane %v509, 1
      %v800 = vrot.slane %v525, 1
      %v801 = vsel %vm774, %v799, %v800
      %v802 = vrot.slane %v510, 1
      %v803 = vrot.slane %v526, 1
      %v804 = vsel %vm774, %v802, %v803
      %v805 = vrot.slane %v511, 1
      %v806 = vrot.slane %v527, 1
      %v807 = vsel %vm774, %v805, %v806
      %v808 = vrot.slane %v512, 1
      %v809 = vrot.slane %v528, 1
      %v810 = vsel %vm774, %v808, %v809
      %v811 = vrot.slane %v513, 1
      %v812 = vrot.slane %v529, 1
      %v813 = vsel %vm774, %v811, %v812
      %v814 = vrot.slane %v514, 1
      %v815 = vrot.slane %v530, 1
      %v816 = vsel %vm774, %v814, %v815
      %v817 = vrot.slane %v515, 1
      %v818 = vrot.slane %v531, 1
      %v819 = vsel %vm774, %v817, %v818
      %v820 = vrot.slane %v516, 1
      %v821 = vrot.slane %v532, 1
      %v822 = vsel %vm774, %v820, %v821
      %v839 = vld [vmem:[%s3] sm:$0xf]
      %v840 = vld [vmem:[%s3 + $0x4] sm:$0xf]
      %v841 = vld [vmem:[%s3 + $0x8] sm:$0xf]
      %v842 = vld [vmem:[%s3 + $0xc] sm:$0xf]
      %v843 = vld [vmem:[%s3 + $0x10] sm:$0xf]
      %v844 = vld [vmem:[%s3 + $0x14] sm:$0xf]
      %v845 = vld [vmem:[%s3 + $0x18] sm:$0xf]
      %v846 = vld [vmem:[%s3 + $0x1c] sm:$0xf]
      %v847 = vld [vmem:[%s3 + $0x20] sm:$0xf]
      %v848 = vld [vmem:[%s3 + $0x24] sm:$0xf]
      %v849 = vld [vmem:[%s3 + $0x28] sm:$0xf]
      %v850 = vld [vmem:[%s3 + $0x2c] sm:$0xf]
      %v851 = vld [vmem:[%s3 + $0x30] sm:$0xf]
      %v852 = vld [vmem:[%s3 + $0x34] sm:$0xf]
      %v853 = vld [vmem:[%s3 + $0x38] sm:$0xf]
      %v854 = vld [vmem:[%s3 + $0x3c] sm:$0xf]
      %v855 = vld [vmem:[%s3 + $0x40] sm:$0xf]
      %v856 = vld [vmem:[%s3 + $0x44] sm:$0xf]
      %v857 = vld [vmem:[%s3 + $0x48] sm:$0xf]
      %v858 = vld [vmem:[%s3 + $0x4c] sm:$0xf]
      %v859 = vld [vmem:[%s3 + $0x50] sm:$0xf]
      %v860 = vld [vmem:[%s3 + $0x54] sm:$0xf]
      %v861 = vld [vmem:[%s3 + $0x58] sm:$0xf]
      %v862 = vld [vmem:[%s3 + $0x5c] sm:$0xf]
      %v863 = vld [vmem:[%s3 + $0x60] sm:$0xf]
      %v864 = vld [vmem:[%s3 + $0x64] sm:$0xf]
      %v865 = vld [vmem:[%s3 + $0x68] sm:$0xf]
      %v866 = vld [vmem:[%s3 + $0x6c] sm:$0xf]
      %v867 = vld [vmem:[%s3 + $0x70] sm:$0xf]
      %v868 = vld [vmem:[%s3 + $0x74] sm:$0xf]
      %v869 = vld [vmem:[%s3 + $0x78] sm:$0xf]
      %v870 = vld [vmem:[%s3 + $0x7c] sm:$0xf]
      %v871 = vld [vmem:[%s3 + $0x80] sm:$0xf]
      %v872 = vld [vmem:[%s3 + $0x84] sm:$0xf]
      %v873 = vld [vmem:[%s3 + $0x88] sm:$0xf]
      %v874 = vld [vmem:[%s3 + $0x8c] sm:$0xf]
      %v875 = vld [vmem:[%s3 + $0x90] sm:$0xf]
      %v876 = vld [vmem:[%s3 + $0x94] sm:$0xf]
      %v877 = vld [vmem:[%s3 + $0x98] sm:$0xf]
      %v878 = vld [vmem:[%s3 + $0x9c] sm:$0xf]
      %v879 = vld [vmem:[%s3 + $0xa0] sm:$0xf]
      %v880 = vld [vmem:[%s3 + $0xa4] sm:$0xf]
      %v881 = vld [vmem:[%s3 + $0xa8] sm:$0xf]
      %v882 = vld [vmem:[%s3 + $0xac] sm:$0xf]
      %v883 = vld [vmem:[%s3 + $0xb0] sm:$0xf]
      %v884 = vld [vmem:[%s3 + $0xb4] sm:$0xf]
      %v885 = vld [vmem:[%s3 + $0xb8] sm:$0xf]
      %v886 = vld [vmem:[%s3 + $0xbc] sm:$0xf]
      %s887 = scalar_lea.vmem %s3, 192
      %v888 = vld [vmem:[%s887] sm:$0xf]
      %v889 = vld [vmem:[%s887 + $0x4] sm:$0xf]
      %v890 = vld [vmem:[%s887 + $0x8] sm:$0xf]
      %v891 = vld [vmem:[%s887 + $0xc] sm:$0xf]
      %v892 = vld [vmem:[%s887 + $0x10] sm:$0xf]
      %v893 = vld [vmem:[%s887 + $0x14] sm:$0xf]
      %v894 = vld [vmem:[%s887 + $0x18] sm:$0xf]
      %v895 = vld [vmem:[%s887 + $0x1c] sm:$0xf]
      %v896 = vld [vmem:[%s887 + $0x20] sm:$0xf]
      %v897 = vld [vmem:[%s887 + $0x24] sm:$0xf]
      %v898 = vld [vmem:[%s887 + $0x28] sm:$0xf]
      %v899 = vld [vmem:[%s887 + $0x2c] sm:$0xf]
      %v900 = vld [vmem:[%s887 + $0x30] sm:$0xf]
      %v901 = vld [vmem:[%s887 + $0x34] sm:$0xf]
      %v902 = vld [vmem:[%s887 + $0x38] sm:$0xf]
      %v903 = vld [vmem:[%s887 + $0x3c] sm:$0xf]
      %v904 = vld [vmem:[%s887 + $0x40] sm:$0xf]
      %v905 = vld [vmem:[%s887 + $0x44] sm:$0xf]
      %v906 = vld [vmem:[%s887 + $0x48] sm:$0xf]
      %v907 = vld [vmem:[%s887 + $0x4c] sm:$0xf]
      %v908 = vld [vmem:[%s887 + $0x50] sm:$0xf]
      %v909 = vld [vmem:[%s887 + $0x54] sm:$0xf]
      %v910 = vld [vmem:[%s887 + $0x58] sm:$0xf]
      %v911 = vld [vmem:[%s887 + $0x5c] sm:$0xf]
      %v912 = vld [vmem:[%s887 + $0x60] sm:$0xf]
      %v913 = vld [vmem:[%s887 + $0x64] sm:$0xf]
      %v914 = vld [vmem:[%s887 + $0x68] sm:$0xf]
      %v915 = vld [vmem:[%s887 + $0x6c] sm:$0xf]
      %v916 = vld [vmem:[%s887 + $0x70] sm:$0xf]
      %v917 = vld [vmem:[%s887 + $0x74] sm:$0xf]
      %v918 = vld [vmem:[%s887 + $0x78] sm:$0xf]
      %v919 = vld [vmem:[%s887 + $0x7c] sm:$0xf]
      %v920 = vld [vmem:[%s887 + $0x80] sm:$0xf]
      %v921 = vld [vmem:[%s887 + $0x84] sm:$0xf]
      %v922 = vld [vmem:[%s887 + $0x88] sm:$0xf]
      %v923 = vld [vmem:[%s887 + $0x8c] sm:$0xf]
      %v924 = vld [vmem:[%s887 + $0x90] sm:$0xf]
      %v925 = vld [vmem:[%s887 + $0x94] sm:$0xf]
      %v926 = vld [vmem:[%s887 + $0x98] sm:$0xf]
      %v927 = vld [vmem:[%s887 + $0x9c] sm:$0xf]
      %v928 = vld [vmem:[%s887 + $0xa0] sm:$0xf]
      %v929 = vld [vmem:[%s887 + $0xa4] sm:$0xf]
      %v930 = vld [vmem:[%s887 + $0xa8] sm:$0xf]
      %v931 = vld [vmem:[%s887 + $0xac] sm:$0xf]
      %v932 = vld [vmem:[%s887 + $0xb0] sm:$0xf]
      %v933 = vld [vmem:[%s887 + $0xb4] sm:$0xf]
      %v934 = vld [vmem:[%s887 + $0xb8] sm:$0xf]
      %v935 = vld [vmem:[%s887 + $0xbc] sm:$0xf]
      %v984 = vunpack.c.l.b16 %v888
      %v985 = vunpack.c.l.b16 %v889
      %v986 = vunpack.c.l.b16 %v890
      %v987 = vunpack.c.l.b16 %v891
      %v988 = vunpack.c.l.b16 %v892
      %v989 = vunpack.c.l.b16 %v893
      %v990 = vunpack.c.l.b16 %v894
      %v991 = vunpack.c.l.b16 %v895
      %v992 = vunpack.c.l.b16 %v896
      %v993 = vunpack.c.l.b16 %v897
      %v994 = vunpack.c.l.b16 %v898
      %v995 = vunpack.c.l.b16 %v899
      %v996 = vunpack.c.l.b16 %v900
      %v997 = vunpack.c.l.b16 %v901
      %v998 = vunpack.c.l.b16 %v902
      %v999 = vunpack.c.l.b16 %v903
      %v1000 = vunpack.c.l.b16 %v904
      %v1001 = vunpack.c.l.b16 %v905
      %v1002 = vunpack.c.l.b16 %v906
      %v1003 = vunpack.c.l.b16 %v907
      %v1004 = vunpack.c.l.b16 %v908
      %v1005 = vunpack.c.l.b16 %v909
      %v1006 = vunpack.c.l.b16 %v910
      %v1007 = vunpack.c.l.b16 %v911
      %v1008 = vunpack.c.l.b16 %v912
      %v1009 = vunpack.c.l.b16 %v913
      %v1010 = vunpack.c.l.b16 %v914
      %v1011 = vunpack.c.l.b16 %v915
      %v1012 = vunpack.c.l.b16 %v916
      %v1013 = vunpack.c.l.b16 %v917
      %v1014 = vunpack.c.l.b16 %v918
      %v1015 = vunpack.c.l.b16 %v919
      %v1016 = vunpack.c.l.b16 %v920
      %v1017 = vunpack.c.l.b16 %v921
      %v1018 = vunpack.c.l.b16 %v922
      %v1019 = vunpack.c.l.b16 %v923
      %v1020 = vunpack.c.l.b16 %v924
      %v1021 = vunpack.c.l.b16 %v925
      %v1022 = vunpack.c.l.b16 %v926
      %v1023 = vunpack.c.l.b16 %v927
      %v1024 = vunpack.c.l.b16 %v928
      %v1025 = vunpack.c.l.b16 %v929
      %v1026 = vunpack.c.l.b16 %v930
      %v1027 = vunpack.c.l.b16 %v931
      %v1028 = vunpack.c.l.b16 %v932
      %v1029 = vunpack.c.l.b16 %v933
      %v1030 = vunpack.c.l.b16 %v934
      %v1031 = vunpack.c.l.b16 %v935
      %v1032 = vpack.c.b16 %v985, %v984
      %v1033 = vpack.c.b16 %v987, %v986
      %v1034 = vpack.c.b16 %v989, %v988
      %v1035 = vpack.c.b16 %v991, %v990
      %v1036 = vpack.c.b16 %v993, %v992
      %v1037 = vpack.c.b16 %v995, %v994
      %v1038 = vpack.c.b16 %v997, %v996
      %v1039 = vpack.c.b16 %v999, %v998
      %v1040 = vpack.c.b16 %v1001, %v1000
      %v1041 = vpack.c.b16 %v1003, %v1002
      %v1042 = vpack.c.b16 %v1005, %v1004
      %v1043 = vpack.c.b16 %v1007, %v1006
      %v1044 = vpack.c.b16 %v1009, %v1008
      %v1045 = vpack.c.b16 %v1011, %v1010
      %v1046 = vpack.c.b16 %v1013, %v1012
      %v1047 = vpack.c.b16 %v1015, %v1014
      %v1048 = vpack.c.b16 %v1017, %v1016
      %v1049 = vpack.c.b16 %v1019, %v1018
      %v1050 = vpack.c.b16 %v1021, %v1020
      %v1051 = vpack.c.b16 %v1023, %v1022
      %v1052 = vpack.c.b16 %v1025, %v1024
      %v1053 = vpack.c.b16 %v1027, %v1026
      %v1054 = vpack.c.b16 %v1029, %v1028
      %v1055 = vpack.c.b16 %v1031, %v1030
      %1080 = vmatprep.subr.bf16.mxu0 0
      %1081 = vmatpush1.bf16.msra.mxu0 %v1032
      %1082 = vmatprep.subr.bf16.mxu0 0
      %1083 = vmatpush1.bf16.msra.mxu0 %v1033
      %1084 = vmatprep.subr.bf16.mxu0 0
      %1085 = vmatpush1.bf16.msra.mxu0 %v1034
      %1086 = vmatprep.subr.bf16.mxu0 0
      %1087 = vmatpush1.bf16.msra.mxu0 %v1035
      %1088 = vmatprep.subr.bf16.mxu0 0
      %1089 = vmatpush1.bf16.msra.mxu0 %v1036
      %1090 = vmatprep.subr.bf16.mxu0 0
      %1091 = vmatpush1.bf16.msra.mxu0 %v1037
      %1092 = vmatprep.subr.bf16.mxu0 0
      %1093 = vmatpush1.bf16.msra.mxu0 %v1038
      %1094 = vmatprep.subr.bf16.mxu0 0
      %1095 = vmatpush1.bf16.msra.mxu0 %v1039
      %1096 = vmatprep.subr.bf16.mxu0 0
      %1097 = vmatpush1.bf16.msra.mxu0 %v1040
      %1098 = vmatprep.subr.bf16.mxu0 0
      %1099 = vmatpush1.bf16.msra.mxu0 %v1041
      %1100 = vmatprep.subr.bf16.mxu0 0
      %1101 = vmatpush1.bf16.msra.mxu0 %v1042
      %1102 = vmatprep.subr.bf16.mxu0 0
      %1103 = vmatpush1.bf16.msra.mxu0 %v1043
      %1104 = vmatprep.subr.bf16.mxu0 0
      %1105 = vmatpush1.bf16.msra.mxu0 %v1044
      %1106 = vmatprep.subr.bf16.mxu0 0
      %1107 = vmatpush1.bf16.msra.mxu0 %v1045
      %1108 = vmatprep.subr.bf16.mxu0 0
      %1109 = vmatpush1.bf16.msra.mxu0 %v1046
      %1110 = vmatprep.subr.bf16.mxu0 0
      %1111 = vmatpush1.bf16.msra.mxu0 %v1047
      %1112 = vmatprep.mubr.bf16.mxu0 %v545
      %1113 = vmatmul.mubr.bf16.gmra.mrb[0].mxu0 %v501
      %v1114 = vpop.f32.mrb[0].mxu0
      %v1115 = vadd.f32 0.0, %v1114
      %v1116 = vpop.f32.mrb[0].mxu0
      %v1117 = vpop.f32.mrb[0].mxu0
      %v1118 = vadd.f32 0.0, %v1117
      %v1119 = vpop.f32.mrb[0].mxu0
      %1120 = vmatprep.mubr.bf16.mxu0 %v557
      %1121 = vmatmul.mubr.bf16.gmra.mrb[0].mxu0 %v502
      %v1122 = vpop.f32.mrb[0].mxu0
      %v1123 = vadd.f32 0.0, %v1122
      %v1124 = vpop.f32.mrb[0].mxu0
      %v1125 = vpop.f32.mrb[0].mxu0
      %v1126 = vadd.f32 0.0, %v1125
      %v1127 = vpop.f32.mrb[0].mxu0
      %1128 = vmatprep.mubr.bf16.mxu0 %v569
      %1129 = vmatmul.mubr.bf16.gmra.mrb[0].mxu0 %v503
      %v1130 = vpop.f32.mrb[0].mxu0
      %v1131 = vadd.f32 0.0, %v1130
      %v1132 = vpop.f32.mrb[0].mxu0
      %v1133 = vpop.f32.mrb[0].mxu0
      %v1134 = vadd.f32 0.0, %v1133
      %v1135 = vpop.f32.mrb[0].mxu0
      %1136 = vmatprep.mubr.bf16.mxu0 %v581
      %1137 = vmatmul.mubr.bf16.gmra.mrb[0].mxu0 %v504
      %v1138 = vpop.f32.mrb[0].mxu0
      %v1139 = vadd.f32 0.0, %v1138
      %v1140 = vpop.f32.mrb[0].mxu0
      %v1141 = vpop.f32.mrb[0].mxu0
      %v1142 = vadd.f32 0.0, %v1141
      %v1143 = vpop.f32.mrb[0].mxu0
      %1144 = vmatprep.mubr.bf16.mxu0 %v593
      %1145 = vmatmul.mubr.bf16.gmra.mrb[0].mxu0 %v505
      %v1146 = vpop.f32.mrb[0].mxu0
      %v1147 = vadd.f32 0.0, %v1146
      %v1148 = vpop.f32.mrb[0].mxu0
      %v1149 = vpop.f32.mrb[0].mxu0
      %v1150 = vadd.f32 0.0, %v1149
      %v1151 = vpop.f32.mrb[0].mxu0
      %1152 = vmatprep.mubr.bf16.mxu0 %v605
      %1153 = vmatmul.mubr.bf16.gmra.mrb[0].mxu0 %v506
      %v1154 = vpop.f32.mrb[0].mxu0
      %v1155 = vadd.f32 0.0, %v1154
      %v1156 = vpop.f32.mrb[0].mxu0
      %v1157 = vpop.f32.mrb[0].mxu0
      %v1158 = vadd.f32 0.0, %v1157
      %v1159 = vpop.f32.mrb[0].mxu0
      %1160 = vmatprep.mubr.bf16.mxu0 %v617
      %1161 = vmatmul.mubr.bf16.gmra.mrb[0].mxu0 %v507
      %v1162 = vpop.f32.mrb[0].mxu0
      %v1163 = vadd.f32 0.0, %v1162
      %v1164 = vpop.f32.mrb[0].mxu0
      %v1165 = vpop.f32.mrb[0].mxu0
      %v1166 = vadd.f32 0.0, %v1165
      %v1167 = vpop.f32.mrb[0].mxu0
      %1168 = vmatprep.mubr.bf16.mxu0 %v629
      %1169 = vmatmul.mubr.bf16.gmra.mrb[0].mxu0 %v508
      %v1170 = vpop.f32.mrb[0].mxu0
      %v1171 = vadd.f32 0.0, %v1170
      %v1172 = vpop.f32.mrb[0].mxu0
      %v1173 = vpop.f32.mrb[0].mxu0
      %v1174 = vadd.f32 0.0, %v1173
      %v1175 = vpop.f32.mrb[0].mxu0
      %1176 = vmatprep.mubr.bf16.mxu0 %v641
      %1177 = vmatmul.mubr.bf16.gmra.mrb[0].mxu0 %v509
      %v1178 = vpop.f32.mrb[0].mxu0
      %v1179 = vadd.f32 0.0, %v1178
      %v1180 = vpop.f32.mrb[0].mxu0
      %v1181 = vpop.f32.mrb[0].mxu0
      %v1182 = vadd.f32 0.0, %v1181
      %v1183 = vpop.f32.mrb[0].mxu0
      %1184 = vmatprep.mubr.bf16.mxu0 %v653
      %1185 = vmatmul.mubr.bf16.gmra.mrb[0].mxu0 %v510
      %v1186 = vpop.f32.mrb[0].mxu0
      %v1187 = vadd.f32 0.0, %v1186
      %v1188 = vpop.f32.mrb[0].mxu0
      %v1189 = vpop.f32.mrb[0].mxu0
      %v1190 = vadd.f32 0.0, %v1189
      %v1191 = vpop.f32.mrb[0].mxu0
      %1192 = vmatprep.mubr.bf16.mxu0 %v665
      %1193 = vmatmul.mubr.bf16.gmra.mrb[0].mxu0 %v511
      %v1194 = vpop.f32.mrb[0].mxu0
      %v1195 = vadd.f32 0.0, %v1194
      %v1196 = vpop.f32.mrb[0].mxu0
      %v1197 = vpop.f32.mrb[0].mxu0
      %v1198 = vadd.f32 0.0, %v1197
      %v1199 = vpop.f32.mrb[0].mxu0
      %1200 = vmatprep.mubr.bf16.mxu0 %v677
      %1201 = vmatmul.mubr.bf16.gmra.mrb[0].mxu0 %v512
      %v1202 = vpop.f32.mrb[0].mxu0
      %v1203 = vadd.f32 0.0, %v1202
      %v1204 = vpop.f32.mrb[0].mxu0
      %v1205 = vpop.f32.mrb[0].mxu0
      %v1206 = vadd.f32 0.0, %v1205
      %v1207 = vpop.f32.mrb[0].mxu0
      %1208 = vmatprep.mubr.bf16.mxu0 %v689
      %1209 = vmatmul.mubr.bf16.gmra.mrb[0].mxu0 %v513
      %v1210 = vpop.f32.mrb[0].mxu0
      %v1211 = vadd.f32 0.0, %v1210
      %v1212 = vpop.f32.mrb[0].mxu0
      %v1213 = vpop.f32.mrb[0].mxu0
      %v1214 = vadd.f32 0.0, %v1213
      %v1215 = vpop.f32.mrb[0].mxu0
      %1216 = vmatprep.mubr.bf16.mxu0 %v701
      %1217 = vmatmul.mubr.bf16.gmra.mrb[0].mxu0 %v514
      %v1218 = vpop.f32.mrb[0].mxu0
      %v1219 = vadd.f32 0.0, %v1218
      %v1220 = vpop.f32.mrb[0].mxu0
      %v1221 = vpop.f32.mrb[0].mxu0
      %v1222 = vadd.f32 0.0, %v1221
      %v1223 = vpop.f32.mrb[0].mxu0
      %1224 = vmatprep.mubr.bf16.mxu0 %v713
      %1225 = vmatmul.mubr.bf16.gmra.mrb[0].mxu0 %v515
      %v1226 = vpop.f32.mrb[0].mxu0
      %v1227 = vadd.f32 0.0, %v1226
      %v1228 = vpop.f32.mrb[0].mxu0
      %v1229 = vpop.f32.mrb[0].mxu0
      %v1230 = vadd.f32 0.0, %v1229
      %v1231 = vpop.f32.mrb[0].mxu0
      %1232 = vmatprep.mubr.bf16.mxu0 %v725
      %1233 = vmatmul.mubr.bf16.gmra.mrb[0].mxu0 %v516
      %v1234 = vpop.f32.mrb[0].mxu0
      %v1235 = vadd.f32 0.0, %v1234
      %v1236 = vpop.f32.mrb[0].mxu0
      %v1237 = vpop.f32.mrb[0].mxu0
      %v1238 = vadd.f32 0.0, %v1237
      %v1239 = vpop.f32.mrb[0].mxu0
      %1240 = vdwg.mxu0
      %1241 = vmatprep.subr.bf16.mxu0 0
      %1242 = vmatpush1.bf16.msra.mxu0 %v1048
      %1243 = vmatprep.subr.bf16.mxu0 0
      %1244 = vmatpush1.bf16.msra.mxu0 %v1049
      %1245 = vmatprep.subr.bf16.mxu0 0
      %1246 = vmatpush1.bf16.msra.mxu0 %v1050
      %1247 = vmatprep.subr.bf16.mxu0 0
      %1248 = vmatpush1.bf16.msra.mxu0 %v1051
      %1249 = vmatprep.subr.bf16.mxu0 0
      %1250 = vmatpush1.bf16.msra.mxu0 %v1052
      %1251 = vmatprep.subr.bf16.mxu0 0
      %1252 = vmatpush1.bf16.msra.mxu0 %v1053
      %1253 = vmatprep.subr.bf16.mxu0 0
      %1254 = vmatpush1.bf16.msra.mxu0 %v1054
      %1255 = vmatprep.subr.bf16.mxu0 0
      %1256 = vmatpush1.bf16.msra.mxu0 %v1055
      %1257 = vmatprep.subr.bf16.mxu0 0
      %1258 = vmatpush1.bf16.msra.mxu0 0
      %1259 = vmatprep.subr.bf16.mxu0 0
      %1260 = vmatpush1.bf16.msra.mxu0 0
      %1261 = vmatprep.subr.bf16.mxu0 0
      %1262 = vmatpush1.bf16.msra.mxu0 0
      %1263 = vmatprep.subr.bf16.mxu0 0
      %1264 = vmatpush1.bf16.msra.mxu0 0
      %1265 = vmatprep.subr.bf16.mxu0 0
      %1266 = vmatpush1.bf16.msra.mxu0 0
      %1267 = vmatprep.subr.bf16.mxu0 0
      %1268 = vmatpush1.bf16.msra.mxu0 0
      %1269 = vmatprep.subr.bf16.mxu0 0
      %1270 = vmatpush1.bf16.msra.mxu0 0
      %1271 = vmatprep.subr.bf16.mxu0 0
      %1272 = vmatpush1.bf16.msra.mxu0 0
      %1273 = vmatprep.mubr.bf16.mxu0 0
      %1274 = vmatmul.mubr.bf16.gmra.mrb[0].mxu0 %v777
      %v1275 = vpop.f32.mrb[0].mxu0
      %v1276 = vadd.f32 %v1115, %v1275
      %v1277 = vpop.f32.mrb[0].mxu0
      %v1278 = vpop.f32.mrb[0].mxu0
      %v1279 = vadd.f32 %v1118, %v1278
      %v1280 = vpop.f32.mrb[0].mxu0
      %1281 = vmatprep.mubr.bf16.mxu0 0
      %1282 = vmatmul.mubr.bf16.gmra.mrb[0].mxu0 %v780
      %v1283 = vpop.f32.mrb[0].mxu0
      %v1284 = vadd.f32 %v1123, %v1283
      %v1285 = vpop.f32.mrb[0].mxu0
      %v1286 = vpop.f32.mrb[0].mxu0
      %v1287 = vadd.f32 %v1126, %v1286
      %v1288 = vpop.f32.mrb[0].mxu0
      %1289 = vmatprep.mubr.bf16.mxu0 0
      %1290 = vmatmul.mubr.bf16.gmra.mrb[0].mxu0 %v783
      %v1291 = vpop.f32.mrb[0].mxu0
      %v1292 = vadd.f32 %v1131, %v1291
      %v1293 = vpop.f32.mrb[0].mxu0
      %v1294 = vpop.f32.mrb[0].mxu0
      %v1295 = vadd.f32 %v1134, %v1294
      %v1296 = vpop.f32.mrb[0].mxu0
      %1297 = vmatprep.mubr.bf16.mxu0 0
      %1298 = vmatmul.mubr.bf16.gmra.mrb[0].mxu0 %v786
      %v1299 = vpop.f32.mrb[0].mxu0
      %v1300 = vadd.f32 %v1139, %v1299
      %v1301 = vpop.f32.mrb[0].mxu0
      %v1302 = vpop.f32.mrb[0].mxu0
      %v1303 = vadd.f32 %v1142, %v1302
      %v1304 = vpop.f32.mrb[0].mxu0
      %1305 = vmatprep.mubr.bf16.mxu0 0
      %1306 = vmatmul.mubr.bf16.gmra.mrb[0].mxu0 %v789
      %v1307 = vpop.f32.mrb[0].mxu0
      %v1308 = vadd.f32 %v1147, %v1307
      %v1309 = vpop.f32.mrb[0].mxu0
      %v1310 = vpop.f32.mrb[0].mxu0
      %v1311 = vadd.f32 %v1150, %v1310
      %v1312 = vpop.f32.mrb[0].mxu0
      %1313 = vmatprep.mubr.bf16.mxu0 0
      %1314 = vmatmul.mubr.bf16.gmra.mrb[0].mxu0 %v792
      %v1315 = vpop.f32.mrb[0].mxu0
      %v1316 = vadd.f32 %v1155, %v1315
      %v1317 = vpop.f32.mrb[0].mxu0
      %v1318 = vpop.f32.mrb[0].mxu0
      %v1319 = vadd.f32 %v1158, %v1318
      %v1320 = vpop.f32.mrb[0].mxu0
      %1321 = vmatprep.mubr.bf16.mxu0 0
      %1322 = vmatmul.mubr.bf16.gmra.mrb[0].mxu0 %v795
      %v1323 = vpop.f32.mrb[0].mxu0
      %v1324 = vadd.f32 %v1163, %v1323
      %v1325 = vpop.f32.mrb[0].mxu0
      %v1326 = vpop.f32.mrb[0].mxu0
      %v1327 = vadd.f32 %v1166, %v1326
      %v1328 = vpop.f32.mrb[0].mxu0
      %1329 = vmatprep.mubr.bf16.mxu0 0
      %1330 = vmatmul.mubr.bf16.gmra.mrb[0].mxu0 %v798
      %v1331 = vpop.f32.mrb[0].mxu0
      %v1332 = vadd.f32 %v1171, %v1331
      %v1333 = vpop.f32.mrb[0].mxu0
      %v1334 = vpop.f32.mrb[0].mxu0
      %v1335 = vadd.f32 %v1174, %v1334
      %v1336 = vpop.f32.mrb[0].mxu0
      %1337 = vmatprep.mubr.bf16.mxu0 0
      %1338 = vmatmul.mubr.bf16.gmra.mrb[0].mxu0 %v801
      %v1339 = vpop.f32.mrb[0].mxu0
      %v1340 = vadd.f32 %v1179, %v1339
      %v1341 = vpop.f32.mrb[0].mxu0
      %v1342 = vpop.f32.mrb[0].mxu0
      %v1343 = vadd.f32 %v1182, %v1342
      %v1344 = vpop.f32.mrb[0].mxu0
      %1345 = vmatprep.mubr.bf16.mxu0 0
      %1346 = vmatmul.mubr.bf16.gmra.mrb[0].mxu0 %v804
      %v1347 = vpop.f32.mrb[0].mxu0
      %v1348 = vadd.f32 %v1187, %v1347
      %v1349 = vpop.f32.mrb[0].mxu0
      %v1350 = vpop.f32.mrb[0].mxu0
      %v1351 = vadd.f32 %v1190, %v1350
      %v1352 = vpop.f32.mrb[0].mxu0
      %1353 = vmatprep.mubr.bf16.mxu0 0
      %1354 = vmatmul.mubr.bf16.gmra.mrb[0].mxu0 %v807
      %v1355 = vpop.f32.mrb[0].mxu0
      %v1356 = vadd.f32 %v1195, %v1355
      %v1357 = vpop.f32.mrb[0].mxu0
      %v1358 = vpop.f32.mrb[0].mxu0
      %v1359 = vadd.f32 %v1198, %v1358
      %v1360 = vpop.f32.mrb[0].mxu0
      %1361 = vmatprep.mubr.bf16.mxu0 0
      %1362 = vmatmul.mubr.bf16.gmra.mrb[0].mxu0 %v810
      %v1363 = vpop.f32.mrb[0].mxu0
      %v1364 = vadd.f32 %v1203, %v1363
      %v1365 = vpop.f32.mrb[0].mxu0
      %v1366 = vpop.f32.mrb[0].mxu0
      %v1367 = vadd.f32 %v1206, %v1366
      %v1368 = vpop.f32.mrb[0].mxu0
      %1369 = vmatprep.mubr.bf16.mxu0 0
      %1370 = vmatmul.mubr.bf16.gmra.mrb[0].mxu0 %v813
      %v1371 = vpop.f32.mrb[0].mxu0
      %v1372 = vadd.f32 %v1211, %v1371
      %v1373 = vpop.f32.mrb[0].mxu0
      %v1374 = vpop.f32.mrb[0].mxu0
      %v1375 = vadd.f32 %v1214, %v1374
      %v1376 = vpop.f32.mrb[0].mxu0
      %1377 = vmatprep.mubr.bf16.mxu0 0
      %1378 = vmatmul.mubr.bf16.gmra.mrb[0].mxu0 %v816
      %v1379 = vpop.f32.mrb[0].mxu0
      %v1380 = vadd.f32 %v1219, %v1379
      %v1381 = vpop.f32.mrb[0].mxu0
      %v1382 = vpop.f32.mrb[0].mxu0
      %v1383 = vadd.f32 %v1222, %v1382
      %v1384 = vpop.f32.mrb[0].mxu0
      %1385 = vmatprep.mubr.bf16.mxu0 0
      %1386 = vmatmul.mubr.bf16.gmra.mrb[0].mxu0 %v819
      %v1387 = vpop.f32.mrb[0].mxu0
      %v1388 = vadd.f32 %v1227, %v1387
      %v1389 = vpop.f32.mrb[0].mxu0
      %v1390 = vpop.f32.mrb[0].mxu0
      %v1391 = vadd.f32 %v1230, %v1390
      %v1392 = vpop.f32.mrb[0].mxu0
      %1393 = vmatprep.mubr.bf16.mxu0 0
      %1394 = vmatmul.mubr.bf16.gmra.mrb[0].mxu0 %v822
      %v1395 = vpop.f32.mrb[0].mxu0
      %v1396 = vadd.f32 %v1235, %v1395
      %v1397 = vpop.f32.mrb[0].mxu0
      %v1398 = vpop.f32.mrb[0].mxu0
      %v1399 = vadd.f32 %v1238, %v1398
      %v1400 = vpop.f32.mrb[0].mxu0
      %1401 = vdwg.mxu0
      %v1450 = vunpack.c.l.b16 %v839
      %v1451 = vunpack.c.l.b16 %v840
      %v1452 = vunpack.c.l.b16 %v841
      %v1453 = vunpack.c.l.b16 %v842
      %v1454 = vunpack.c.l.b16 %v843
      %v1455 = vunpack.c.l.b16 %v844
      %v1456 = vunpack.c.l.b16 %v845
      %v1457 = vunpack.c.l.b16 %v846
      %v1458 = vunpack.c.l.b16 %v847
      %v1459 = vunpack.c.l.b16 %v848
      %v1460 = vunpack.c.l.b16 %v849
      %v1461 = vunpack.c.l.b16 %v850
      %v1462 = vunpack.c.l.b16 %v851
      %v1463 = vunpack.c.l.b16 %v852
      %v1464 = vunpack.c.l.b16 %v853
      %v1465 = vunpack.c.l.b16 %v854
      %v1466 = vunpack.c.l.b16 %v855
      %v1467 = vunpack.c.l.b16 %v856
      %v1468 = vunpack.c.l.b16 %v857
      %v1469 = vunpack.c.l.b16 %v858
      %v1470 = vunpack.c.l.b16 %v859
      %v1471 = vunpack.c.l.b16 %v860
      %v1472 = vunpack.c.l.b16 %v861
      %v1473 = vunpack.c.l.b16 %v862
      %v1474 = vunpack.c.l.b16 %v863
      %v1475 = vunpack.c.l.b16 %v864
      %v1476 = vunpack.c.l.b16 %v865
      %v1477 = vunpack.c.l.b16 %v866
      %v1478 = vunpack.c.l.b16 %v867
      %v1479 = vunpack.c.l.b16 %v868
      %v1480 = vunpack.c.l.b16 %v869
      %v1481 = vunpack.c.l.b16 %v870
      %v1482 = vunpack.c.l.b16 %v871
      %v1483 = vunpack.c.l.b16 %v872
      %v1484 = vunpack.c.l.b16 %v873
      %v1485 = vunpack.c.l.b16 %v874
      %v1486 = vunpack.c.l.b16 %v875
      %v1487 = vunpack.c.l.b16 %v876
      %v1488 = vunpack.c.l.b16 %v877
      %v1489 = vunpack.c.l.b16 %v878
      %v1490 = vunpack.c.l.b16 %v879
      %v1491 = vunpack.c.l.b16 %v880
      %v1492 = vunpack.c.l.b16 %v881
      %v1493 = vunpack.c.l.b16 %v882
      %v1494 = vunpack.c.l.b16 %v883
      %v1495 = vunpack.c.l.b16 %v884
      %v1496 = vunpack.c.l.b16 %v885
      %v1497 = vunpack.c.l.b16 %v886
      %v1498 = vpack.c.b16 %v1451, %v1450
      %v1499 = vpack.c.b16 %v1453, %v1452
      %v1500 = vpack.c.b16 %v1455, %v1454
      %v1501 = vpack.c.b16 %v1457, %v1456
      %v1502 = vpack.c.b16 %v1459, %v1458
      %v1503 = vpack.c.b16 %v1461, %v1460
      %v1504 = vpack.c.b16 %v1463, %v1462
      %v1505 = vpack.c.b16 %v1465, %v1464
      %v1506 = vpack.c.b16 %v1467, %v1466
      %v1507 = vpack.c.b16 %v1469, %v1468
      %v1508 = vpack.c.b16 %v1471, %v1470
      %v1509 = vpack.c.b16 %v1473, %v1472
      %v1510 = vpack.c.b16 %v1475, %v1474
      %v1511 = vpack.c.b16 %v1477, %v1476
      %v1512 = vpack.c.b16 %v1479, %v1478
      %v1513 = vpack.c.b16 %v1481, %v1480
      %v1514 = vpack.c.b16 %v1483, %v1482
      %v1515 = vpack.c.b16 %v1485, %v1484
      %v1516 = vpack.c.b16 %v1487, %v1486
      %v1517 = vpack.c.b16 %v1489, %v1488
      %v1518 = vpack.c.b16 %v1491, %v1490
      %v1519 = vpack.c.b16 %v1493, %v1492
      %v1520 = vpack.c.b16 %v1495, %v1494
      %v1521 = vpack.c.b16 %v1497, %v1496
      %1546 = vmatprep.subr.bf16.mxu0 0
      %1547 = vmatpush1.bf16.msra.mxu0 %v1498
      %1548 = vmatprep.subr.bf16.mxu0 0
      %1549 = vmatpush1.bf16.msra.mxu0 %v1499
      %1550 = vmatprep.subr.bf16.mxu0 0
      %1551 = vmatpush1.bf16.msra.mxu0 %v1500
      %1552 = vmatprep.subr.bf16.mxu0 0
      %1553 = vmatpush1.bf16.msra.mxu0 %v1501
      %1554 = vmatprep.subr.bf16.mxu0 0
      %1555 = vmatpush1.bf16.msra.mxu0 %v1502
      %1556 = vmatprep.subr.bf16.mxu0 0
      %1557 = vmatpush1.bf16.msra.mxu0 %v1503
      %1558 = vmatprep.subr.bf16.mxu0 0
      %1559 = vmatpush1.bf16.msra.mxu0 %v1504
      %1560 = vmatprep.subr.bf16.mxu0 0
      %1561 = vmatpush1.bf16.msra.mxu0 %v1505
      %1562 = vmatprep.subr.bf16.mxu0 0
      %1563 = vmatpush1.bf16.msra.mxu0 %v1506
      %1564 = vmatprep.subr.bf16.mxu0 0
      %1565 = vmatpush1.bf16.msra.mxu0 %v1507
      %1566 = vmatprep.subr.bf16.mxu0 0
      %1567 = vmatpush1.bf16.msra.mxu0 %v1508
      %1568 = vmatprep.subr.bf16.mxu0 0
      %1569 = vmatpush1.bf16.msra.mxu0 %v1509
      %1570 = vmatprep.subr.bf16.mxu0 0
      %1571 = vmatpush1.bf16.msra.mxu0 %v1510
      %1572 = vmatprep.subr.bf16.mxu0 0
      %1573 = vmatpush1.bf16.msra.mxu0 %v1511
      %1574 = vmatprep.subr.bf16.mxu0 0
      %1575 = vmatpush1.bf16.msra.mxu0 %v1512
      %1576 = vmatprep.subr.bf16.mxu0 0
      %1577 = vmatpush1.bf16.msra.mxu0 %v1513
      %1578 = vmatprep.mubr.bf16.mxu0 0
      %1579 = vmatmul.mubr.bf16.gmra.mrb[0].mxu0 0
      %v1580 = vpop.f32.mrb[0].mxu0
      %v1581 = vadd.f32 %v1276, %v1580
      %v1582 = vpop.f32.mrb[0].mxu0
      %v1583 = vpop.f32.mrb[0].mxu0
      %v1584 = vadd.f32 %v1279, %v1583
      %v1585 = vpop.f32.mrb[0].mxu0
      %1586 = vmatprep.mubr.bf16.mxu0 %v545
      %1587 = vmatmul.mubr.bf16.gmra.mrb[0].mxu0 %v501
      %v1588 = vpop.f32.mrb[0].mxu0
      %v1589 = vadd.f32 %v1284, %v1588
      %v1590 = vpop.f32.mrb[0].mxu0
      %v1591 = vpop.f32.mrb[0].mxu0
      %v1592 = vadd.f32 %v1287, %v1591
      %v1593 = vpop.f32.mrb[0].mxu0
      %1594 = vmatprep.mubr.bf16.mxu0 %v557
      %1595 = vmatmul.mubr.bf16.gmra.mrb[0].mxu0 %v502
      %v1596 = vpop.f32.mrb[0].mxu0
      %v1597 = vadd.f32 %v1292, %v1596
      %v1598 = vpop.f32.mrb[0].mxu0
      %v1599 = vpop.f32.mrb[0].mxu0
      %v1600 = vadd.f32 %v1295, %v1599
      %v1601 = vpop.f32.mrb[0].mxu0
      %1602 = vmatprep.mubr.bf16.mxu0 %v569
      %1603 = vmatmul.mubr.bf16.gmra.mrb[0].mxu0 %v503
      %v1604 = vpop.f32.mrb[0].mxu0
      %v1605 = vadd.f32 %v1300, %v1604
      %v1606 = vpop.f32.mrb[0].mxu0
      %v1607 = vpop.f32.mrb[0].mxu0
      %v1608 = vadd.f32 %v1303, %v1607
      %v1609 = vpop.f32.mrb[0].mxu0
      %1610 = vmatprep.mubr.bf16.mxu0 %v581
      %1611 = vmatmul.mubr.bf16.gmra.mrb[0].mxu0 %v504
      %v1612 = vpop.f32.mrb[0].mxu0
      %v1613 = vadd.f32 %v1308, %v1612
      %v1614 = vpop.f32.mrb[0].mxu0
      %v1615 = vpop.f32.mrb[0].mxu0
      %v1616 = vadd.f32 %v1311, %v1615
      %v1617 = vpop.f32.mrb[0].mxu0
      %1618 = vmatprep.mubr.bf16.mxu0 %v593
      %1619 = vmatmul.mubr.bf16.gmra.mrb[0].mxu0 %v505
      %v1620 = vpop.f32.mrb[0].mxu0
      %v1621 = vadd.f32 %v1316, %v1620
      %v1622 = vpop.f32.mrb[0].mxu0
      %v1623 = vpop.f32.mrb[0].mxu0
      %v1624 = vadd.f32 %v1319, %v1623
      %v1625 = vpop.f32.mrb[0].mxu0
      %1626 = vmatprep.mubr.bf16.mxu0 %v605
      %1627 = vmatmul.mubr.bf16.gmra.mrb[0].mxu0 %v506
      %v1628 = vpop.f32.mrb[0].mxu0
      %v1629 = vadd.f32 %v1324, %v1628
      %v1630 = vpop.f32.mrb[0].mxu0
      %v1631 = vpop.f32.mrb[0].mxu0
      %v1632 = vadd.f32 %v1327, %v1631
      %v1633 = vpop.f32.mrb[0].mxu0
      %1634 = vmatprep.mubr.bf16.mxu0 %v617
      %1635 = vmatmul.mubr.bf16.gmra.mrb[0].mxu0 %v507
      %v1636 = vpop.f32.mrb[0].mxu0
      %v1637 = vadd.f32 %v1332, %v1636
      %v1638 = vpop.f32.mrb[0].mxu0
      %v1639 = vpop.f32.mrb[0].mxu0
      %v1640 = vadd.f32 %v1335, %v1639
      %v1641 = vpop.f32.mrb[0].mxu0
      %1642 = vmatprep.mubr.bf16.mxu0 %v629
      %1643 = vmatmul.mubr.bf16.gmra.mrb[0].mxu0 %v508
      %v1644 = vpop.f32.mrb[0].mxu0
      %v1645 = vadd.f32 %v1340, %v1644
      %v1646 = vpop.f32.mrb[0].mxu0
      %v1647 = vpop.f32.mrb[0].mxu0
      %v1648 = vadd.f32 %v1343, %v1647
      %v1649 = vpop.f32.mrb[0].mxu0
      %1650 = vmatprep.mubr.bf16.mxu0 %v641
      %1651 = vmatmul.mubr.bf16.gmra.mrb[0].mxu0 %v509
      %v1652 = vpop.f32.mrb[0].mxu0
      %v1653 = vadd.f32 %v1348, %v1652
      %v1654 = vpop.f32.mrb[0].mxu0
      %v1655 = vpop.f32.mrb[0].mxu0
      %v1656 = vadd.f32 %v1351, %v1655
      %v1657 = vpop.f32.mrb[0].mxu0
      %1658 = vmatprep.mubr.bf16.mxu0 %v653
      %1659 = vmatmul.mubr.bf16.gmra.mrb[0].mxu0 %v510
      %v1660 = vpop.f32.mrb[0].mxu0
      %v1661 = vadd.f32 %v1356, %v1660
      %v1662 = vpop.f32.mrb[0].mxu0
      %v1663 = vpop.f32.mrb[0].mxu0
      %v1664 = vadd.f32 %v1359, %v1663
      %v1665 = vpop.f32.mrb[0].mxu0
      %1666 = vmatprep.mubr.bf16.mxu0 %v665
      %1667 = vmatmul.mubr.bf16.gmra.mrb[0].mxu0 %v511
      %v1668 = vpop.f32.mrb[0].mxu0
      %v1669 = vadd.f32 %v1364, %v1668
      %v1670 = vpop.f32.mrb[0].mxu0
      %v1671 = vpop.f32.mrb[0].mxu0
      %v1672 = vadd.f32 %v1367, %v1671
      %v1673 = vpop.f32.mrb[0].mxu0
      %1674 = vmatprep.mubr.bf16.mxu0 %v677
      %1675 = vmatmul.mubr.bf16.gmra.mrb[0].mxu0 %v512
      %v1676 = vpop.f32.mrb[0].mxu0
      %v1677 = vadd.f32 %v1372, %v1676
      %v1678 = vpop.f32.mrb[0].mxu0
      %v1679 = vpop.f32.mrb[0].mxu0
      %v1680 = vadd.f32 %v1375, %v1679
      %v1681 = vpop.f32.mrb[0].mxu0
      %1682 = vmatprep.mubr.bf16.mxu0 %v689
      %1683 = vmatmul.mubr.bf16.gmra.mrb[0].mxu0 %v513
      %v1684 = vpop.f32.mrb[0].mxu0
      %v1685 = vadd.f32 %v1380, %v1684
      %v1686 = vpop.f32.mrb[0].mxu0
      %v1687 = vpop.f32.mrb[0].mxu0
      %v1688 = vadd.f32 %v1383, %v1687
      %v1689 = vpop.f32.mrb[0].mxu0
      %1690 = vmatprep.mubr.bf16.mxu0 %v701
      %1691 = vmatmul.mubr.bf16.gmra.mrb[0].mxu0 %v514
      %v1692 = vpop.f32.mrb[0].mxu0
      %v1693 = vadd.f32 %v1388, %v1692
      %v1694 = vpop.f32.mrb[0].mxu0
      %v1695 = vpop.f32.mrb[0].mxu0
      %v1696 = vadd.f32 %v1391, %v1695
      %v1697 = vpop.f32.mrb[0].mxu0
      %1698 = vmatprep.mubr.bf16.mxu0 %v713
      %1699 = vmatmul.mubr.bf16.gmra.mrb[0].mxu0 %v515
      %v1700 = vpop.f32.mrb[0].mxu0
      %v1701 = vadd.f32 %v1396, %v1700
      %v1702 = vpop.f32.mrb[0].mxu0
      %v1703 = vpop.f32.mrb[0].mxu0
      %v1704 = vadd.f32 %v1399, %v1703
      %v1705 = vpop.f32.mrb[0].mxu0
      %1706 = vdwg.mxu0
      %1707 = vmatprep.subr.bf16.mxu0 0
      %1708 = vmatpush1.bf16.msra.mxu0 %v1514
      %1709 = vmatprep.subr.bf16.mxu0 0
      %1710 = vmatpush1.bf16.msra.mxu0 %v1515
      %1711 = vmatprep.subr.bf16.mxu0 0
      %1712 = vmatpush1.bf16.msra.mxu0 %v1516
      %1713 = vmatprep.subr.bf16.mxu0 0
      %1714 = vmatpush1.bf16.msra.mxu0 %v1517
      %1715 = vmatprep.subr.bf16.mxu0 0
      %1716 = vmatpush1.bf16.msra.mxu0 %v1518
      %1717 = vmatprep.subr.bf16.mxu0 0
      %1718 = vmatpush1.bf16.msra.mxu0 %v1519
      %1719 = vmatprep.subr.bf16.mxu0 0
      %1720 = vmatpush1.bf16.msra.mxu0 %v1520
      %1721 = vmatprep.subr.bf16.mxu0 0
      %1722 = vmatpush1.bf16.msra.mxu0 %v1521
      %1723 = vmatprep.subr.bf16.mxu0 0
      %1724 = vmatpush1.bf16.msra.mxu0 0
      %1725 = vmatprep.subr.bf16.mxu0 0
      %1726 = vmatpush1.bf16.msra.mxu0 0
      %1727 = vmatprep.subr.bf16.mxu0 0
      %1728 = vmatpush1.bf16.msra.mxu0 0
      %1729 = vmatprep.subr.bf16.mxu0 0
      %1730 = vmatpush1.bf16.msra.mxu0 0
      %1731 = vmatprep.subr.bf16.mxu0 0
      %1732 = vmatpush1.bf16.msra.mxu0 0
      %1733 = vmatprep.subr.bf16.mxu0 0
      %1734 = vmatpush1.bf16.msra.mxu0 0
      %1735 = vmatprep.subr.bf16.mxu0 0
      %1736 = vmatpush1.bf16.msra.mxu0 0
      %1737 = vmatprep.subr.bf16.mxu0 0
      %1738 = vmatpush1.bf16.msra.mxu0 0
      %1739 = vmatprep.mubr.bf16.mxu0 0
      %1740 = vmatmul.mubr.bf16.gmra.mrb[0].mxu0 0
      %v1741 = vpop.f32.mrb[0].mxu0
      %v1742 = vadd.f32 %v1581, %v1741
      %v1743 = vpop.f32.mrb[0].mxu0
      %v1744 = vpop.f32.mrb[0].mxu0
      %v1745 = vadd.f32 %v1584, %v1744
      %v1746 = vpop.f32.mrb[0].mxu0
      %1747 = vmatprep.mubr.bf16.mxu0 0
      %1748 = vmatmul.mubr.bf16.gmra.mrb[0].mxu0 %v777
      %v1749 = vpop.f32.mrb[0].mxu0
      %v1750 = vadd.f32 %v1589, %v1749
      %v1751 = vpop.f32.mrb[0].mxu0
      %v1752 = vpop.f32.mrb[0].mxu0
      %v1753 = vadd.f32 %v1592, %v1752
      %v1754 = vpop.f32.mrb[0].mxu0
      %1755 = vmatprep.mubr.bf16.mxu0 0
      %1756 = vmatmul.mubr.bf16.gmra.mrb[0].mxu0 %v780
      %v1757 = vpop.f32.mrb[0].mxu0
      %v1758 = vadd.f32 %v1597, %v1757
      %v1759 = vpop.f32.mrb[0].mxu0
      %v1760 = vpop.f32.mrb[0].mxu0
      %v1761 = vadd.f32 %v1600, %v1760
      %v1762 = vpop.f32.mrb[0].mxu0
      %1763 = vmatprep.mubr.bf16.mxu0 0
      %1764 = vmatmul.mubr.bf16.gmra.mrb[0].mxu0 %v783
      %v1765 = vpop.f32.mrb[0].mxu0
      %v1766 = vadd.f32 %v1605, %v1765
      %v1767 = vpop.f32.mrb[0].mxu0
      %v1768 = vpop.f32.mrb[0].mxu0
      %v1769 = vadd.f32 %v1608, %v1768
      %v1770 = vpop.f32.mrb[0].mxu0
      %1771 = vmatprep.mubr.bf16.mxu0 0
      %1772 = vmatmul.mubr.bf16.gmra.mrb[0].mxu0 %v786
      %v1773 = vpop.f32.mrb[0].mxu0
      %v1774 = vadd.f32 %v1613, %v1773
      %v1775 = vpop.f32.mrb[0].mxu0
      %v1776 = vpop.f32.mrb[0].mxu0
      %v1777 = vadd.f32 %v1616, %v1776
      %v1778 = vpop.f32.mrb[0].mxu0
      %1779 = vmatprep.mubr.bf16.mxu0 0
      %1780 = vmatmul.mubr.bf16.gmra.mrb[0].mxu0 %v789
      %v1781 = vpop.f32.mrb[0].mxu0
      %v1782 = vadd.f32 %v1621, %v1781
      %v1783 = vpop.f32.mrb[0].mxu0
      %v1784 = vpop.f32.mrb[0].mxu0
      %v1785 = vadd.f32 %v1624, %v1784
      %v1786 = vpop.f32.mrb[0].mxu0
      %1787 = vmatprep.mubr.bf16.mxu0 0
      %1788 = vmatmul.mubr.bf16.gmra.mrb[0].mxu0 %v792
      %v1789 = vpop.f32.mrb[0].mxu0
      %v1790 = vadd.f32 %v1629, %v1789
      %v1791 = vpop.f32.mrb[0].mxu0
      %v1792 = vpop.f32.mrb[0].mxu0
      %v1793 = vadd.f32 %v1632, %v1792
      %v1794 = vpop.f32.mrb[0].mxu0
      %1795 = vmatprep.mubr.bf16.mxu0 0
      %1796 = vmatmul.mubr.bf16.gmra.mrb[0].mxu0 %v795
      %v1797 = vpop.f32.mrb[0].mxu0
      %v1798 = vadd.f32 %v1637, %v1797
      %v1799 = vpop.f32.mrb[0].mxu0
      %v1800 = vpop.f32.mrb[0].mxu0
      %v1801 = vadd.f32 %v1640, %v1800
      %v1802 = vpop.f32.mrb[0].mxu0
      %1803 = vmatprep.mubr.bf16.mxu0 0
      %1804 = vmatmul.mubr.bf16.gmra.mrb[0].mxu0 %v798
      %v1805 = vpop.f32.mrb[0].mxu0
      %v1806 = vadd.f32 %v1645, %v1805
      %v1807 = vpop.f32.mrb[0].mxu0
      %v1808 = vpop.f32.mrb[0].mxu0
      %v1809 = vadd.f32 %v1648, %v1808
      %v1810 = vpop.f32.mrb[0].mxu0
      %1811 = vmatprep.mubr.bf16.mxu0 0
      %1812 = vmatmul.mubr.bf16.gmra.mrb[0].mxu0 %v801
      %v1813 = vpop.f32.mrb[0].mxu0
      %v1814 = vadd.f32 %v1653, %v1813
      %v1815 = vpop.f32.mrb[0].mxu0
      %v1816 = vpop.f32.mrb[0].mxu0
      %v1817 = vadd.f32 %v1656, %v1816
      %v1818 = vpop.f32.mrb[0].mxu0
      %1819 = vmatprep.mubr.bf16.mxu0 0
      %1820 = vmatmul.mubr.bf16.gmra.mrb[0].mxu0 %v804
      %v1821 = vpop.f32.mrb[0].mxu0
      %v1822 = vadd.f32 %v1661, %v1821
      %v1823 = vpop.f32.mrb[0].mxu0
      %v1824 = vpop.f32.mrb[0].mxu0
      %v1825 = vadd.f32 %v1664, %v1824
      %v1826 = vpop.f32.mrb[0].mxu0
      %1827 = vmatprep.mubr.bf16.mxu0 0
      %1828 = vmatmul.mubr.bf16.gmra.mrb[0].mxu0 %v807
      %v1829 = vpop.f32.mrb[0].mxu0
      %v1830 = vadd.f32 %v1669, %v1829
      %v1831 = vpop.f32.mrb[0].mxu0
      %v1832 = vpop.f32.mrb[0].mxu0
      %v1833 = vadd.f32 %v1672, %v1832
      %v1834 = vpop.f32.mrb[0].mxu0
      %1835 = vmatprep.mubr.bf16.mxu0 0
      %1836 = vmatmul.mubr.bf16.gmra.mrb[0].mxu0 %v810
      %v1837 = vpop.f32.mrb[0].mxu0
      %v1838 = vadd.f32 %v1677, %v1837
      %v1839 = vpop.f32.mrb[0].mxu0
      %v1840 = vpop.f32.mrb[0].mxu0
      %v1841 = vadd.f32 %v1680, %v1840
      %v1842 = vpop.f32.mrb[0].mxu0
      %1843 = vmatprep.mubr.bf16.mxu0 0
      %1844 = vmatmul.mubr.bf16.gmra.mrb[0].mxu0 %v813
      %v1845 = vpop.f32.mrb[0].mxu0
      %v1846 = vadd.f32 %v1685, %v1845
      %v1847 = vpop.f32.mrb[0].mxu0
      %v1848 = vpop.f32.mrb[0].mxu0
      %v1849 = vadd.f32 %v1688, %v1848
      %v1850 = vpop.f32.mrb[0].mxu0
      %1851 = vmatprep.mubr.bf16.mxu0 0
      %1852 = vmatmul.mubr.bf16.gmra.mrb[0].mxu0 %v816
      %v1853 = vpop.f32.mrb[0].mxu0
      %v1854 = vadd.f32 %v1693, %v1853
      %v1855 = vpop.f32.mrb[0].mxu0
      %v1856 = vpop.f32.mrb[0].mxu0
      %v1857 = vadd.f32 %v1696, %v1856
      %v1858 = vpop.f32.mrb[0].mxu0
      %1859 = vmatprep.mubr.bf16.mxu0 0
      %1860 = vmatmul.mubr.bf16.gmra.mrb[0].mxu0 %v819
      %v1861 = vpop.f32.mrb[0].mxu0
      %v1862 = vadd.f32 %v1701, %v1861
      %v1863 = vpop.f32.mrb[0].mxu0
      %v1864 = vpop.f32.mrb[0].mxu0
      %v1865 = vadd.f32 %v1704, %v1864
      %v1866 = vpop.f32.mrb[0].mxu0
      %1867 = vdwg.mxu0
      %s1868 = scalar_lea.vmem %s3, 384
      %v1869 = vld [vmem:[%s1868] sm:$0xf]
      %v1870 = vld [vmem:[%s1868 + $0x4] sm:$0xf]
      %v1871 = vld [vmem:[%s1868 + $0x8] sm:$0xf]
      %v1872 = vld [vmem:[%s1868 + $0xc] sm:$0xf]
      %v1873 = vld [vmem:[%s1868 + $0x10] sm:$0xf]
      %v1874 = vld [vmem:[%s1868 + $0x14] sm:$0xf]
      %v1875 = vld [vmem:[%s1868 + $0x18] sm:$0xf]
      %v1876 = vld [vmem:[%s1868 + $0x1c] sm:$0xf]
      %v1877 = vld [vmem:[%s1868 + $0x20] sm:$0xf]
      %v1878 = vld [vmem:[%s1868 + $0x24] sm:$0xf]
      %v1879 = vld [vmem:[%s1868 + $0x28] sm:$0xf]
      %v1880 = vld [vmem:[%s1868 + $0x2c] sm:$0xf]
      %v1881 = vld [vmem:[%s1868 + $0x30] sm:$0xf]
      %v1882 = vld [vmem:[%s1868 + $0x34] sm:$0xf]
      %v1883 = vld [vmem:[%s1868 + $0x38] sm:$0xf]
      %v1884 = vld [vmem:[%s1868 + $0x3c] sm:$0xf]
      %v1885 = vld [vmem:[%s1868 + $0x40] sm:$0xf]
      %v1886 = vld [vmem:[%s1868 + $0x44] sm:$0xf]
      %v1887 = vld [vmem:[%s1868 + $0x48] sm:$0xf]
      %v1888 = vld [vmem:[%s1868 + $0x4c] sm:$0xf]
      %v1889 = vld [vmem:[%s1868 + $0x50] sm:$0xf]
      %v1890 = vld [vmem:[%s1868 + $0x54] sm:$0xf]
      %v1891 = vld [vmem:[%s1868 + $0x58] sm:$0xf]
      %v1892 = vld [vmem:[%s1868 + $0x5c] sm:$0xf]
      %v1893 = vld [vmem:[%s1868 + $0x60] sm:$0xf]
      %v1894 = vld [vmem:[%s1868 + $0x64] sm:$0xf]
      %v1895 = vld [vmem:[%s1868 + $0x68] sm:$0xf]
      %v1896 = vld [vmem:[%s1868 + $0x6c] sm:$0xf]
      %v1897 = vld [vmem:[%s1868 + $0x70] sm:$0xf]
      %v1898 = vld [vmem:[%s1868 + $0x74] sm:$0xf]
      %v1899 = vld [vmem:[%s1868 + $0x78] sm:$0xf]
      %v1900 = vld [vmem:[%s1868 + $0x7c] sm:$0xf]
      %v1901 = vld [vmem:[%s1868 + $0x80] sm:$0xf]
      %v1902 = vld [vmem:[%s1868 + $0x84] sm:$0xf]
      %v1903 = vld [vmem:[%s1868 + $0x88] sm:$0xf]
      %v1904 = vld [vmem:[%s1868 + $0x8c] sm:$0xf]
      %v1905 = vld [vmem:[%s1868 + $0x90] sm:$0xf]
      %v1906 = vld [vmem:[%s1868 + $0x94] sm:$0xf]
      %v1907 = vld [vmem:[%s1868 + $0x98] sm:$0xf]
      %v1908 = vld [vmem:[%s1868 + $0x9c] sm:$0xf]
      %v1909 = vld [vmem:[%s1868 + $0xa0] sm:$0xf]
      %v1910 = vld [vmem:[%s1868 + $0xa4] sm:$0xf]
      %v1911 = vld [vmem:[%s1868 + $0xa8] sm:$0xf]
      %v1912 = vld [vmem:[%s1868 + $0xac] sm:$0xf]
      %v1913 = vld [vmem:[%s1868 + $0xb0] sm:$0xf]
      %v1914 = vld [vmem:[%s1868 + $0xb4] sm:$0xf]
      %v1915 = vld [vmem:[%s1868 + $0xb8] sm:$0xf]
      %v1916 = vld [vmem:[%s1868 + $0xbc] sm:$0xf]
      %v1965 = vunpack.c.l.b16 %v1869
      %v1966 = vunpack.c.l.b16 %v1870
      %v1967 = vunpack.c.l.b16 %v1871
      %v1968 = vunpack.c.l.b16 %v1872
      %v1969 = vunpack.c.l.b16 %v1873
      %v1970 = vunpack.c.l.b16 %v1874
      %v1971 = vunpack.c.l.b16 %v1875
      %v1972 = vunpack.c.l.b16 %v1876
      %v1973 = vunpack.c.l.b16 %v1877
      %v1974 = vunpack.c.l.b16 %v1878
      %v1975 = vunpack.c.l.b16 %v1879
      %v1976 = vunpack.c.l.b16 %v1880
      %v1977 = vunpack.c.l.b16 %v1881
      %v1978 = vunpack.c.l.b16 %v1882
      %v1979 = vunpack.c.l.b16 %v1883
      %v1980 = vunpack.c.l.b16 %v1884
      %v1981 = vunpack.c.l.b16 %v1885
      %v1982 = vunpack.c.l.b16 %v1886
      %v1983 = vunpack.c.l.b16 %v1887
      %v1984 = vunpack.c.l.b16 %v1888
      %v1985 = vunpack.c.l.b16 %v1889
      %v1986 = vunpack.c.l.b16 %v1890
      %v1987 = vunpack.c.l.b16 %v1891
      %v1988 = vunpack.c.l.b16 %v1892
      %v1989 = vunpack.c.l.b16 %v1893
      %v1990 = vunpack.c.l.b16 %v1894
      %v1991 = vunpack.c.l.b16 %v1895
      %v1992 = vunpack.c.l.b16 %v1896
      %v1993 = vunpack.c.l.b16 %v1897
      %v1994 = vunpack.c.l.b16 %v1898
      %v1995 = vunpack.c.l.b16 %v1899
      %v1996 = vunpack.c.l.b16 %v1900
      %v1997 = vunpack.c.l.b16 %v1901
      %v1998 = vunpack.c.l.b16 %v1902
      %v1999 = vunpack.c.l.b16 %v1903
      %v2000 = vunpack.c.l.b16 %v1904
      %v2001 = vunpack.c.l.b16 %v1905
      %v2002 = vunpack.c.l.b16 %v1906
      %v2003 = vunpack.c.l.b16 %v1907
      %v2004 = vunpack.c.l.b16 %v1908
      %v2005 = vunpack.c.l.b16 %v1909
      %v2006 = vunpack.c.l.b16 %v1910
      %v2007 = vunpack.c.l.b16 %v1911
      %v2008 = vunpack.c.l.b16 %v1912
      %v2009 = vunpack.c.l.b16 %v1913
      %v2010 = vunpack.c.l.b16 %v1914
      %v2011 = vunpack.c.l.b16 %v1915
      %v2012 = vunpack.c.l.b16 %v1916
      %v2013 = vpack.c.b16 %v1966, %v1965
      %v2014 = vpack.c.b16 %v1968, %v1967
      %v2015 = vpack.c.b16 %v1970, %v1969
      %v2016 = vpack.c.b16 %v1972, %v1971
      %v2017 = vpack.c.b16 %v1974, %v1973
      %v2018 = vpack.c.b16 %v1976, %v1975
      %v2019 = vpack.c.b16 %v1978, %v1977
      %v2020 = vpack.c.b16 %v1980, %v1979
      %v2021 = vpack.c.b16 %v1982, %v1981
      %v2022 = vpack.c.b16 %v1984, %v1983
      %v2023 = vpack.c.b16 %v1986, %v1985
      %v2024 = vpack.c.b16 %v1988, %v1987
      %v2025 = vpack.c.b16 %v1990, %v1989
      %v2026 = vpack.c.b16 %v1992, %v1991
      %v2027 = vpack.c.b16 %v1994, %v1993
      %v2028 = vpack.c.b16 %v1996, %v1995
      %v2029 = vpack.c.b16 %v1998, %v1997
      %v2030 = vpack.c.b16 %v2000, %v1999
      %v2031 = vpack.c.b16 %v2002, %v2001
      %v2032 = vpack.c.b16 %v2004, %v2003
      %v2033 = vpack.c.b16 %v2006, %v2005
      %v2034 = vpack.c.b16 %v2008, %v2007
      %v2035 = vpack.c.b16 %v2010, %v2009
      %v2036 = vpack.c.b16 %v2012, %v2011
      %2061 = vmatprep.subr.bf16.mxu0 0
      %2062 = vmatpush1.bf16.msra.mxu0 %v2013
      %2063 = vmatprep.subr.bf16.mxu0 0
      %2064 = vmatpush1.bf16.msra.mxu0 %v2014
      %2065 = vmatprep.subr.bf16.mxu0 0
      %2066 = vmatpush1.bf16.msra.mxu0 %v2015
      %2067 = vmatprep.subr.bf16.mxu0 0
      %2068 = vmatpush1.bf16.msra.mxu0 %v2016
      %2069 = vmatprep.subr.bf16.mxu0 0
      %2070 = vmatpush1.bf16.msra.mxu0 %v2017
      %2071 = vmatprep.subr.bf16.mxu0 0
      %2072 = vmatpush1.bf16.msra.mxu0 %v2018
      %2073 = vmatprep.subr.bf16.mxu0 0
      %2074 = vmatpush1.bf16.msra.mxu0 %v2019
      %2075 = vmatprep.subr.bf16.mxu0 0
      %2076 = vmatpush1.bf16.msra.mxu0 %v2020
      %2077 = vmatprep.subr.bf16.mxu0 0
      %2078 = vmatpush1.bf16.msra.mxu0 %v2021
      %2079 = vmatprep.subr.bf16.mxu0 0
      %2080 = vmatpush1.bf16.msra.mxu0 %v2022
      %2081 = vmatprep.subr.bf16.mxu0 0
      %2082 = vmatpush1.bf16.msra.mxu0 %v2023
      %2083 = vmatprep.subr.bf16.mxu0 0
      %2084 = vmatpush1.bf16.msra.mxu0 %v2024
      %2085 = vmatprep.subr.bf16.mxu0 0
      %2086 = vmatpush1.bf16.msra.mxu0 %v2025
      %2087 = vmatprep.subr.bf16.mxu0 0
      %2088 = vmatpush1.bf16.msra.mxu0 %v2026
      %2089 = vmatprep.subr.bf16.mxu0 0
      %2090 = vmatpush1.bf16.msra.mxu0 %v2027
      %2091 = vmatprep.subr.bf16.mxu0 0
      %2092 = vmatpush1.bf16.msra.mxu0 %v2028
      %2093 = vmatprep.mubr.bf16.mxu0 %v557
      %2094 = vmatmul.mubr.bf16.gmra.mrb[0].mxu0 %v502
      %v2095 = vpop.f32.mrb[0].mxu0
      %v2096 = vadd.f32 0.0, %v2095
      %v2097 = vpop.f32.mrb[0].mxu0
      %v2098 = vpop.f32.mrb[0].mxu0
      %v2099 = vadd.f32 0.0, %v2098
      %v2100 = vpop.f32.mrb[0].mxu0
      %2101 = vmatprep.mubr.bf16.mxu0 %v569
      %2102 = vmatmul.mubr.bf16.gmra.mrb[0].mxu0 %v503
      %v2103 = vpop.f32.mrb[0].mxu0
      %v2104 = vadd.f32 0.0, %v2103
      %v2105 = vpop.f32.mrb[0].mxu0
      %v2106 = vpop.f32.mrb[0].mxu0
      %v2107 = vadd.f32 0.0, %v2106
      %v2108 = vpop.f32.mrb[0].mxu0
      %2109 = vmatprep.mubr.bf16.mxu0 %v581
      %2110 = vmatmul.mubr.bf16.gmra.mrb[0].mxu0 %v504
      %v2111 = vpop.f32.mrb[0].mxu0
      %v2112 = vadd.f32 0.0, %v2111
      %v2113 = vpop.f32.mrb[0].mxu0
      %v2114 = vpop.f32.mrb[0].mxu0
      %v2115 = vadd.f32 0.0, %v2114
      %v2116 = vpop.f32.mrb[0].mxu0
      %2117 = vmatprep.mubr.bf16.mxu0 %v593
      %2118 = vmatmul.mubr.bf16.gmra.mrb[0].mxu0 %v505
      %v2119 = vpop.f32.mrb[0].mxu0
      %v2120 = vadd.f32 0.0, %v2119
      %v2121 = vpop.f32.mrb[0].mxu0
      %v2122 = vpop.f32.mrb[0].mxu0
      %v2123 = vadd.f32 0.0, %v2122
      %v2124 = vpop.f32.mrb[0].mxu0
      %2125 = vmatprep.mubr.bf16.mxu0 %v605
      %2126 = vmatmul.mubr.bf16.gmra.mrb[0].mxu0 %v506
      %v2127 = vpop.f32.mrb[0].mxu0
      %v2128 = vadd.f32 0.0, %v2127
      %v2129 = vpop.f32.mrb[0].mxu0
      %v2130 = vpop.f32.mrb[0].mxu0
      %v2131 = vadd.f32 0.0, %v2130
      %v2132 = vpop.f32.mrb[0].mxu0
      %2133 = vmatprep.mubr.bf16.mxu0 %v617
      %2134 = vmatmul.mubr.bf16.gmra.mrb[0].mxu0 %v507
      %v2135 = vpop.f32.mrb[0].mxu0
      %v2136 = vadd.f32 0.0, %v2135
      %v2137 = vpop.f32.mrb[0].mxu0
      %v2138 = vpop.f32.mrb[0].mxu0
      %v2139 = vadd.f32 0.0, %v2138
      %v2140 = vpop.f32.mrb[0].mxu0
      %2141 = vmatprep.mubr.bf16.mxu0 %v629
      %2142 = vmatmul.mubr.bf16.gmra.mrb[0].mxu0 %v508
      %v2143 = vpop.f32.mrb[0].mxu0
      %v2144 = vadd.f32 0.0, %v2143
      %v2145 = vpop.f32.mrb[0].mxu0
      %v2146 = vpop.f32.mrb[0].mxu0
      %v2147 = vadd.f32 0.0, %v2146
      %v2148 = vpop.f32.mrb[0].mxu0
      %2149 = vmatprep.mubr.bf16.mxu0 %v641
      %2150 = vmatmul.mubr.bf16.gmra.mrb[0].mxu0 %v509
      %v2151 = vpop.f32.mrb[0].mxu0
      %v2152 = vadd.f32 0.0, %v2151
      %v2153 = vpop.f32.mrb[0].mxu0
      %v2154 = vpop.f32.mrb[0].mxu0
      %v2155 = vadd.f32 0.0, %v2154
      %v2156 = vpop.f32.mrb[0].mxu0
      %2157 = vmatprep.mubr.bf16.mxu0 %v653
      %2158 = vmatmul.mubr.bf16.gmra.mrb[0].mxu0 %v510
      %v2159 = vpop.f32.mrb[0].mxu0
      %v2160 = vadd.f32 0.0, %v2159
      %v2161 = vpop.f32.mrb[0].mxu0
      %v2162 = vpop.f32.mrb[0].mxu0
      %v2163 = vadd.f32 0.0, %v2162
      %v2164 = vpop.f32.mrb[0].mxu0
      %2165 = vmatprep.mubr.bf16.mxu0 %v665
      %2166 = vmatmul.mubr.bf16.gmra.mrb[0].mxu0 %v511
      %v2167 = vpop.f32.mrb[0].mxu0
      %v2168 = vadd.f32 0.0, %v2167
      %v2169 = vpop.f32.mrb[0].mxu0
      %v2170 = vpop.f32.mrb[0].mxu0
      %v2171 = vadd.f32 0.0, %v2170
      %v2172 = vpop.f32.mrb[0].mxu0
      %2173 = vmatprep.mubr.bf16.mxu0 %v677
      %2174 = vmatmul.mubr.bf16.gmra.mrb[0].mxu0 %v512
      %v2175 = vpop.f32.mrb[0].mxu0
      %v2176 = vadd.f32 0.0, %v2175
      %v2177 = vpop.f32.mrb[0].mxu0
      %v2178 = vpop.f32.mrb[0].mxu0
      %v2179 = vadd.f32 0.0, %v2178
      %v2180 = vpop.f32.mrb[0].mxu0
      %2181 = vmatprep.mubr.bf16.mxu0 %v689
      %2182 = vmatmul.mubr.bf16.gmra.mrb[0].mxu0 %v513
      %v2183 = vpop.f32.mrb[0].mxu0
      %v2184 = vadd.f32 0.0, %v2183
      %v2185 = vpop.f32.mrb[0].mxu0
      %v2186 = vpop.f32.mrb[0].mxu0
      %v2187 = vadd.f32 0.0, %v2186
      %v2188 = vpop.f32.mrb[0].mxu0
      %2189 = vmatprep.mubr.bf16.mxu0 %v701
      %2190 = vmatmul.mubr.bf16.gmra.mrb[0].mxu0 %v514
      %v2191 = vpop.f32.mrb[0].mxu0
      %v2192 = vadd.f32 0.0, %v2191
      %v2193 = vpop.f32.mrb[0].mxu0
      %v2194 = vpop.f32.mrb[0].mxu0
      %v2195 = vadd.f32 0.0, %v2194
      %v2196 = vpop.f32.mrb[0].mxu0
      %2197 = vmatprep.mubr.bf16.mxu0 %v713
      %2198 = vmatmul.mubr.bf16.gmra.mrb[0].mxu0 %v515
      %v2199 = vpop.f32.mrb[0].mxu0
      %v2200 = vadd.f32 0.0, %v2199
      %v2201 = vpop.f32.mrb[0].mxu0
      %v2202 = vpop.f32.mrb[0].mxu0
      %v2203 = vadd.f32 0.0, %v2202
      %v2204 = vpop.f32.mrb[0].mxu0
      %2205 = vmatprep.mubr.bf16.mxu0 %v725
      %2206 = vmatmul.mubr.bf16.gmra.mrb[0].mxu0 %v516
      %v2207 = vpop.f32.mrb[0].mxu0
      %v2208 = vadd.f32 0.0, %v2207
      %v2209 = vpop.f32.mrb[0].mxu0
      %v2210 = vpop.f32.mrb[0].mxu0
      %v2211 = vadd.f32 0.0, %v2210
      %v2212 = vpop.f32.mrb[0].mxu0
      %2213 = vmatprep.mubr.bf16.mxu0 0
      %2214 = vmatmul.mubr.bf16.gmra.mrb[0].mxu0 0
      %v2215 = vpop.f32.mrb[0].mxu0
      %v2216 = vadd.f32 0.0, %v2215
      %v2217 = vpop.f32.mrb[0].mxu0
      %v2218 = vpop.f32.mrb[0].mxu0
      %v2219 = vadd.f32 0.0, %v2218
      %v2220 = vpop.f32.mrb[0].mxu0
      %2221 = vdwg.mxu0
      %2222 = vmatprep.subr.bf16.mxu0 0
      %2223 = vmatpush1.bf16.msra.mxu0 %v2029
      %2224 = vmatprep.subr.bf16.mxu0 0
      %2225 = vmatpush1.bf16.msra.mxu0 %v2030
      %2226 = vmatprep.subr.bf16.mxu0 0
      %2227 = vmatpush1.bf16.msra.mxu0 %v2031
      %2228 = vmatprep.subr.bf16.mxu0 0
      %2229 = vmatpush1.bf16.msra.mxu0 %v2032
      %2230 = vmatprep.subr.bf16.mxu0 0
      %2231 = vmatpush1.bf16.msra.mxu0 %v2033
      %2232 = vmatprep.subr.bf16.mxu0 0
      %2233 = vmatpush1.bf16.msra.mxu0 %v2034
      %2234 = vmatprep.subr.bf16.mxu0 0
      %2235 = vmatpush1.bf16.msra.mxu0 %v2035
      %2236 = vmatprep.subr.bf16.mxu0 0
      %2237 = vmatpush1.bf16.msra.mxu0 %v2036
      %2238 = vmatprep.subr.bf16.mxu0 0
      %2239 = vmatpush1.bf16.msra.mxu0 0
      %2240 = vmatprep.subr.bf16.mxu0 0
      %2241 = vmatpush1.bf16.msra.mxu0 0
      %2242 = vmatprep.subr.bf16.mxu0 0
      %2243 = vmatpush1.bf16.msra.mxu0 0
      %2244 = vmatprep.subr.bf16.mxu0 0
      %2245 = vmatpush1.bf16.msra.mxu0 0
      %2246 = vmatprep.subr.bf16.mxu0 0
      %2247 = vmatpush1.bf16.msra.mxu0 0
      %2248 = vmatprep.subr.bf16.mxu0 0
      %2249 = vmatpush1.bf16.msra.mxu0 0
      %2250 = vmatprep.subr.bf16.mxu0 0
      %2251 = vmatpush1.bf16.msra.mxu0 0
      %2252 = vmatprep.subr.bf16.mxu0 0
      %2253 = vmatpush1.bf16.msra.mxu0 0
      %2254 = vmatprep.mubr.bf16.mxu0 0
      %2255 = vmatmul.mubr.bf16.gmra.mrb[0].mxu0 %v780
      %v2256 = vpop.f32.mrb[0].mxu0
      %v2257 = vadd.f32 %v2096, %v2256
      %v2258 = vpop.f32.mrb[0].mxu0
      %v2259 = vpop.f32.mrb[0].mxu0
      %v2260 = vadd.f32 %v2099, %v2259
      %v2261 = vpop.f32.mrb[0].mxu0
      %2262 = vmatprep.mubr.bf16.mxu0 0
      %2263 = vmatmul.mubr.bf16.gmra.mrb[0].mxu0 %v783
      %v2264 = vpop.f32.mrb[0].mxu0
      %v2265 = vadd.f32 %v2104, %v2264
      %v2266 = vpop.f32.mrb[0].mxu0
      %v2267 = vpop.f32.mrb[0].mxu0
      %v2268 = vadd.f32 %v2107, %v2267
      %v2269 = vpop.f32.mrb[0].mxu0
      %2270 = vmatprep.mubr.bf16.mxu0 0
      %2271 = vmatmul.mubr.bf16.gmra.mrb[0].mxu0 %v786
      %v2272 = vpop.f32.mrb[0].mxu0
      %v2273 = vadd.f32 %v2112, %v2272
      %v2274 = vpop.f32.mrb[0].mxu0
      %v2275 = vpop.f32.mrb[0].mxu0
      %v2276 = vadd.f32 %v2115, %v2275
      %v2277 = vpop.f32.mrb[0].mxu0
      %2278 = vmatprep.mubr.bf16.mxu0 0
      %2279 = vmatmul.mubr.bf16.gmra.mrb[0].mxu0 %v789
      %v2280 = vpop.f32.mrb[0].mxu0
      %v2281 = vadd.f32 %v2120, %v2280
      %v2282 = vpop.f32.mrb[0].mxu0
      %v2283 = vpop.f32.mrb[0].mxu0
      %v2284 = vadd.f32 %v2123, %v2283
      %v2285 = vpop.f32.mrb[0].mxu0
      %2286 = vmatprep.mubr.bf16.mxu0 0
      %2287 = vmatmul.mubr.bf16.gmra.mrb[0].mxu0 %v792
      %v2288 = vpop.f32.mrb[0].mxu0
      %v2289 = vadd.f32 %v2128, %v2288
      %v2290 = vpop.f32.mrb[0].mxu0
      %v2291 = vpop.f32.mrb[0].mxu0
      %v2292 = vadd.f32 %v2131, %v2291
      %v2293 = vpop.f32.mrb[0].mxu0
      %2294 = vmatprep.mubr.bf16.mxu0 0
      %2295 = vmatmul.mubr.bf16.gmra.mrb[0].mxu0 %v795
      %v2296 = vpop.f32.mrb[0].mxu0
      %v2297 = vadd.f32 %v2136, %v2296
      %v2298 = vpop.f32.mrb[0].mxu0
      %v2299 = vpop.f32.mrb[0].mxu0
      %v2300 = vadd.f32 %v2139, %v2299
      %v2301 = vpop.f32.mrb[0].mxu0
      %2302 = vmatprep.mubr.bf16.mxu0 0
      %2303 = vmatmul.mubr.bf16.gmra.mrb[0].mxu0 %v798
      %v2304 = vpop.f32.mrb[0].mxu0
      %v2305 = vadd.f32 %v2144, %v2304
      %v2306 = vpop.f32.mrb[0].mxu0
      %v2307 = vpop.f32.mrb[0].mxu0
      %v2308 = vadd.f32 %v2147, %v2307
      %v2309 = vpop.f32.mrb[0].mxu0
      %2310 = vmatprep.mubr.bf16.mxu0 0
      %2311 = vmatmul.mubr.bf16.gmra.mrb[0].mxu0 %v801
      %v2312 = vpop.f32.mrb[0].mxu0
      %v2313 = vadd.f32 %v2152, %v2312
      %v2314 = vpop.f32.mrb[0].mxu0
      %v2315 = vpop.f32.mrb[0].mxu0
      %v2316 = vadd.f32 %v2155, %v2315
      %v2317 = vpop.f32.mrb[0].mxu0
      %2318 = vmatprep.mubr.bf16.mxu0 0
      %2319 = vmatmul.mubr.bf16.gmra.mrb[0].mxu0 %v804
      %v2320 = vpop.f32.mrb[0].mxu0
      %v2321 = vadd.f32 %v2160, %v2320
      %v2322 = vpop.f32.mrb[0].mxu0
      %v2323 = vpop.f32.mrb[0].mxu0
      %v2324 = vadd.f32 %v2163, %v2323
      %v2325 = vpop.f32.mrb[0].mxu0
      %2326 = vmatprep.mubr.bf16.mxu0 0
      %2327 = vmatmul.mubr.bf16.gmra.mrb[0].mxu0 %v807
      %v2328 = vpop.f32.mrb[0].mxu0
      %v2329 = vadd.f32 %v2168, %v2328
      %v2330 = vpop.f32.mrb[0].mxu0
      %v2331 = vpop.f32.mrb[0].mxu0
      %v2332 = vadd.f32 %v2171, %v2331
      %v2333 = vpop.f32.mrb[0].mxu0
      %2334 = vmatprep.mubr.bf16.mxu0 0
      %2335 = vmatmul.mubr.bf16.gmra.mrb[0].mxu0 %v810
      %v2336 = vpop.f32.mrb[0].mxu0
      %v2337 = vadd.f32 %v2176, %v2336
      %v2338 = vpop.f32.mrb[0].mxu0
      %v2339 = vpop.f32.mrb[0].mxu0
      %v2340 = vadd.f32 %v2179, %v2339
      %v2341 = vpop.f32.mrb[0].mxu0
      %2342 = vmatprep.mubr.bf16.mxu0 0
      %2343 = vmatmul.mubr.bf16.gmra.mrb[0].mxu0 %v813
      %v2344 = vpop.f32.mrb[0].mxu0
      %v2345 = vadd.f32 %v2184, %v2344
      %v2346 = vpop.f32.mrb[0].mxu0
      %v2347 = vpop.f32.mrb[0].mxu0
      %v2348 = vadd.f32 %v2187, %v2347
      %v2349 = vpop.f32.mrb[0].mxu0
      %2350 = vmatprep.mubr.bf16.mxu0 0
      %2351 = vmatmul.mubr.bf16.gmra.mrb[0].mxu0 %v816
      %v2352 = vpop.f32.mrb[0].mxu0
      %v2353 = vadd.f32 %v2192, %v2352
      %v2354 = vpop.f32.mrb[0].mxu0
      %v2355 = vpop.f32.mrb[0].mxu0
      %v2356 = vadd.f32 %v2195, %v2355
      %v2357 = vpop.f32.mrb[0].mxu0
      %2358 = vmatprep.mubr.bf16.mxu0 0
      %2359 = vmatmul.mubr.bf16.gmra.mrb[0].mxu0 %v819
      %v2360 = vpop.f32.mrb[0].mxu0
      %v2361 = vadd.f32 %v2200, %v2360
      %v2362 = vpop.f32.mrb[0].mxu0
      %v2363 = vpop.f32.mrb[0].mxu0
      %v2364 = vadd.f32 %v2203, %v2363
      %v2365 = vpop.f32.mrb[0].mxu0
      %2366 = vmatprep.mubr.bf16.mxu0 0
      %2367 = vmatmul.mubr.bf16.gmra.mrb[0].mxu0 %v822
      %v2368 = vpop.f32.mrb[0].mxu0
      %v2369 = vadd.f32 %v2208, %v2368
      %v2370 = vpop.f32.mrb[0].mxu0
      %v2371 = vpop.f32.mrb[0].mxu0
      %v2372 = vadd.f32 %v2211, %v2371
      %v2373 = vpop.f32.mrb[0].mxu0
      %2374 = vmatprep.mubr.bf16.mxu0 0
      %2375 = vmatmul.mubr.bf16.gmra.mrb[0].mxu0 0
      %v2376 = vpop.f32.mrb[0].mxu0
      %v2377 = vadd.f32 %v2216, %v2376
      %v2378 = vpop.f32.mrb[0].mxu0
      %v2379 = vpop.f32.mrb[0].mxu0
      %v2380 = vadd.f32 %v2219, %v2379
      %v2381 = vpop.f32.mrb[0].mxu0
      %2382 = vdwg.mxu0
      %v2383 = vadd.f32 %v1742, %v2257
      %v2384 = vadd.f32 %v1745, %v2260
      %v2385 = vadd.f32 %v1750, %v2265
      %v2386 = vadd.f32 %v1753, %v2268
      %v2387 = vadd.f32 %v1758, %v2273
      %v2388 = vadd.f32 %v1761, %v2276
      %v2389 = vadd.f32 %v1766, %v2281
      %v2390 = vadd.f32 %v1769, %v2284
      %v2391 = vadd.f32 %v1774, %v2289
      %v2392 = vadd.f32 %v1777, %v2292
      %v2393 = vadd.f32 %v1782, %v2297
      %v2394 = vadd.f32 %v1785, %v2300
      %v2395 = vadd.f32 %v1790, %v2305
      %v2396 = vadd.f32 %v1793, %v2308
      %v2397 = vadd.f32 %v1798, %v2313
      %v2398 = vadd.f32 %v1801, %v2316
      %v2399 = vadd.f32 %v1806, %v2321
      %v2400 = vadd.f32 %v1809, %v2324
      %v2401 = vadd.f32 %v1814, %v2329
      %v2402 = vadd.f32 %v1817, %v2332
      %v2403 = vadd.f32 %v1822, %v2337
      %v2404 = vadd.f32 %v1825, %v2340
      %v2405 = vadd.f32 %v1830, %v2345
      %v2406 = vadd.f32 %v1833, %v2348
      %v2407 = vadd.f32 %v1838, %v2353
      %v2408 = vadd.f32 %v1841, %v2356
      %v2409 = vadd.f32 %v1846, %v2361
      %v2410 = vadd.f32 %v1849, %v2364
      %v2411 = vadd.f32 %v1854, %v2369
      %v2412 = vadd.f32 %v1857, %v2372
      %v2413 = vadd.f32 %v1862, %v2377
      %v2414 = vadd.f32 %v1865, %v2380
      %2415 = vxpose.xlu0.b32.start [1/16] %v2383, 128
      %2416 = vxpose.xlu0.b32.cont [2/16] %v2384, 128
      %2417 = vxpose.xlu0.b32.cont [3/16] %v2385, 128
      %2418 = vxpose.xlu0.b32.cont [4/16] %v2386, 128
      %2419 = vxpose.xlu0.b32.cont [5/16] %v2387, 128
      %2420 = vxpose.xlu0.b32.cont [6/16] %v2388, 128
      %2421 = vxpose.xlu0.b32.cont [7/16] %v2389, 128
      %2422 = vxpose.xlu0.b32.cont [8/16] %v2390, 128
      %2423 = vxpose.xlu0.b32.cont [9/16] %v2391, 128
      %2424 = vxpose.xlu0.b32.cont [10/16] %v2392, 128
      %2425 = vxpose.xlu0.b32.cont [11/16] %v2393, 128
      %2426 = vxpose.xlu0.b32.cont [12/16] %v2394, 128
      %2427 = vxpose.xlu0.b32.cont [13/16] %v2395, 128
      %2428 = vxpose.xlu0.b32.cont [14/16] %v2396, 128
      %2429 = vxpose.xlu0.b32.cont [15/16] %v2397, 128
      %2430 = vxpose.xlu0.b32.end [16/16] %v2398, 128
      %v2431 = vpop.trf.xlu0
      %v2432 = vpop.trf.xlu0
      %v2433 = vpop.trf.xlu0
      %v2434 = vpop.trf.xlu0
      %v2435 = vpop.trf.xlu0
      %v2436 = vpop.trf.xlu0
      %v2437 = vpop.trf.xlu0
      %v2438 = vpop.trf.xlu0
      %v2439 = vpop.trf.xlu0
      %v2440 = vpop.trf.xlu0
      %v2441 = vpop.trf.xlu0
      %v2442 = vpop.trf.xlu0
      %v2443 = vpop.trf.xlu0
      %v2444 = vpop.trf.xlu0
      %v2445 = vpop.trf.xlu0
      %v2446 = vpop.trf.xlu0
      %2447 = vxpose.xlu0.b32.start [1/16] %v2399, 128
      %2448 = vxpose.xlu0.b32.cont [2/16] %v2400, 128
      %2449 = vxpose.xlu0.b32.cont [3/16] %v2401, 128
      %2450 = vxpose.xlu0.b32.cont [4/16] %v2402, 128
      %2451 = vxpose.xlu0.b32.cont [5/16] %v2403, 128
      %2452 = vxpose.xlu0.b32.cont [6/16] %v2404, 128
      %2453 = vxpose.xlu0.b32.cont [7/16] %v2405, 128
      %2454 = vxpose.xlu0.b32.cont [8/16] %v2406, 128
      %2455 = vxpose.xlu0.b32.cont [9/16] %v2407, 128
      %2456 = vxpose.xlu0.b32.cont [10/16] %v2408, 128
      %2457 = vxpose.xlu0.b32.cont [11/16] %v2409, 128
      %2458 = vxpose.xlu0.b32.cont [12/16] %v2410, 128
      %2459 = vxpose.xlu0.b32.cont [13/16] %v2411, 128
      %2460 = vxpose.xlu0.b32.cont [14/16] %v2412, 128
      %2461 = vxpose.xlu0.b32.cont [15/16] %v2413, 128
      %2462 = vxpose.xlu0.b32.end [16/16] %v2414, 128
      %v2463 = vpop.trf.xlu0
      %v2464 = vpop.trf.xlu0
      %v2465 = vpop.trf.xlu0
      %v2466 = vpop.trf.xlu0
      %v2467 = vpop.trf.xlu0
      %v2468 = vpop.trf.xlu0
      %v2469 = vpop.trf.xlu0
      %v2470 = vpop.trf.xlu0
      %v2471 = vpop.trf.xlu0
      %v2472 = vpop.trf.xlu0
      %v2473 = vpop.trf.xlu0
      %v2474 = vpop.trf.xlu0
      %v2475 = vpop.trf.xlu0
      %v2476 = vpop.trf.xlu0
      %v2477 = vpop.trf.xlu0
      %v2478 = vpop.trf.xlu0
      %v2479 = vpack.c.bf16 %v2431, %v2431
      %v2480 = vpack.c.bf16 %v2463, %v2463
      %v2483 = vcombine.low %v2479, %v2480
      %v2485 = vunpack.c.l.s4 1983009808
      %v2486 = vunpack.c.0.s8 %v2485
      %v2487 = vlaneseq
      %v2488 = vshrl.u32 %v2487, 7
      %v2489 = vsub.s32 %v2486, %v2488
      %v2490 = vrot.slane %v2483, %v2489
      %2492 = vst [vmem:[%s231] sm:$0xf] %v2490
      %v2493 = vunpack.c.l.bf16 %v2479
      %v2494 = vunpack.c.l.bf16 %v2480
      %v2495 = vsel %vm271, %v2493, 0.0
      %v2496 = vsel %vm271, %v2494, 0.0
      %v2497 = vadd.f32 %v2495, %v2496
      %2498 = vadd.xlane.f32.xlu0 %v2497
      %v2499 = vpop.xlane.xlu0 %2498
      %v2500 = vmul.f32 %v2493, %v2493
      %v2501 = vmul.f32 %v2494, %v2494
      %v2502 = vsel %vm271, %v2500, 0.0
      %v2503 = vsel %vm271, %v2501, 0.0
      %v2504 = vadd.f32 %v2502, %v2503
      %2505 = vadd.xlane.f32.xlu0 %v2504
      %v2506 = vpop.xlane.xlu0 %2505
      %vm2507 = vcmask 7168
      %v2508 = vsel %vm2507, %v2499, %v2506
      %vm2509 = vcmask 11264
      %2510 = vst.msk [vmem:[%s235] sm:$0xf] %vm2509, %v2508
      %p2511 = scmp.lt.s32.totalorder %s17, 1
      %s2512 = scalar_select %p2511, %s17, 1
      %s2513 = smul.addr %s2512, 2
      %s2514 = smul.addr %s2513, 2
      %s2515 = scalar_lea.vmem %s4, %s2514
      %p2516 = scmp.lt.s32.totalorder %s17, 1
      %s2517 = scalar_select %p2516, %s17, 1
      %s2518 = smul.addr %s2517, 4
      %s2519 = scalar_lea.vmem %s5, %s2518
      // Predicated region
      $region37: #{bottleneck_pallas.5} parent=35 // pred_check
        %p2520 = pneg %p124
      $region38: #{bottleneck_pallas.5} parent=35 // pred_check_branch
        %2522 = sbr.rel (%p2520) target = $region40
      $region39: #{bottleneck_pallas.5} parent=35 // pred_region
        _
      $region40: #{bottleneck_pallas.5} parent=35 // pred_fallthru
        _
      // Predicated region
      $region41: #{bottleneck_pallas.5} parent=35 // pred_check
        %p2523 = pneg %p150
      $region42: #{bottleneck_pallas.5} parent=35 // pred_check_branch
        %2525 = sbr.rel (%p2523) target = $region44
      $region43: #{bottleneck_pallas.5} parent=35 // pred_region
        _
      $region44: #{bottleneck_pallas.5} parent=35 // pred_fallthru
        _
    $region36: #{bottleneck_pallas.5} parent=5 // pred_fallthru
      _
    %p2526 = scmp.le.s32.totalorder 2, %s12
    // Predicated region
    $region45: #{bottleneck_pallas.5} parent=5 // pred_check
      %p2527 = pneg %p2526
    $region46: #{bottleneck_pallas.5} parent=5 // pred_check_branch
      %2529 = sbr.rel (%p2527) target = $region48
    $region47: #{bottleneck_pallas.5} parent=5 // pred_region
      %s2530 = ssub.s32 %s12, 2
      // Predicated region
      $region49: #{bottleneck_pallas.5} parent=47 // pred_check
        %p2531 = pneg %p130
      $region50: #{bottleneck_pallas.5} parent=47 // pred_check_branch
        %2533 = sbr.rel (%p2531) target = $region52
      $region51: #{bottleneck_pallas.5} parent=47 // pred_region
        %p2534 = scmp.lt.s32.totalorder %s18, 1
        %s2535 = scalar_select %p2534, %s18, 1
        %s2536 = smul.addr %s2535, 2
        %s2537 = smul.addr %s2536, 2
        %s2538 = scalar_lea.vmem %s4, %s2537
      $region52: #{bottleneck_pallas.5} parent=47 // pred_fallthru
        _
      // Predicated region
      $region53: #{bottleneck_pallas.5} parent=47 // pred_check
        %p2539 = pneg %p156
      $region54: #{bottleneck_pallas.5} parent=47 // pred_check_branch
        %2541 = sbr.rel (%p2539) target = $region56
      $region55: #{bottleneck_pallas.5} parent=47 // pred_region
        %p2542 = scmp.lt.s32.totalorder %s18, 1
        %s2543 = scalar_select %p2542, %s18, 1
        %s2544 = smul.addr %s2543, 4
        %s2545 = scalar_lea.vmem %s5, %s2544
      $region56: #{bottleneck_pallas.5} parent=47 // pred_fallthru
        _
    $region48: #{bottleneck_pallas.5} parent=5 // pred_fallthru
      _
  $region6: #{bottleneck_pallas.5} parent=0 // loop_footer
    %s16 = sadd.s32 1, %s12
  $region7: #{bottleneck_pallas.5} parent=0 // loop_footer_branch
    %11 = sbr.rel target = $region3
  $region8: #{bottleneck_pallas.5} parent=0 // loop_exit
    _

</llo_original>
